<compile_context>
chip_gen: v6e
topology: v6e:2x2x1
jax: 0.10.0
libtpu: 0.0.40
codegen_flags: <defaults>
</compile_context>

<pallas_src>
import functools
import math

import jax
import jax.numpy as jnp
from jax.experimental import pallas as pl
from jax.experimental.pallas import tpu as pltpu


# ----------------------------------------------------------------------------
# In-kernel helpers (f32 epilogues)
# ----------------------------------------------------------------------------

def _layernorm(h, g, b, eps):
    mu = jnp.mean(h, axis=-1, keepdims=True)
    var = jnp.mean((h - mu) * (h - mu), axis=-1, keepdims=True)
    return (h - mu) * jax.lax.rsqrt(var + eps) * g + b


def _gelu(y):
    # tanh-approx GELU in f32 (VPU/EUP only).
    # TODO(synk): exact erf GELU for bit-parity with HF BERT if required.
    c = math.sqrt(2.0 / math.pi)
    return 0.5 * y * (1.0 + jnp.tanh(c * (y + 0.044715 * y * y * y)))


# ----------------------------------------------------------------------------
# Single fused Pallas kernel: embed-LN -> L encoder layers -> pooler -> 2FC head
# ----------------------------------------------------------------------------

def _bert_2fc_kernel(emb_ref, bias_ref,
                     eg_ref, eb_ref,
                     wqkv_ref, bqkv_ref, wo_ref, bo_ref, l1g_ref, l1b_ref,
                     wi_ref, bi_ref, wf_ref, bf_ref, l2g_ref, l2b_ref,
                     pw_ref, pb_ref, w1_ref, b1_ref, w2_ref, b2_ref,
                     o_ref, *, B, S, n_heads, n_layers, eps):
    H = emb_ref.shape[-1]
    d = H // n_heads
    T = B * S
    bf16 = jnp.bfloat16

    # ---- embedding LayerNorm (batch folded into rows) ----
    x = _layernorm(emb_ref[...].reshape(T, H), eg_ref[...], eb_ref[...], eps)

    # Additive key-side mask bias, already broadcast per (batch, head): (B*nh, 1, S)
    bias = bias_ref[...]

    def _split_heads(t):
        # (B*S, H) -> (B*n_heads, S, d): one reshape + one transpose (no per-head
        # lane slicing, no concat).
        return (t.reshape(B, S, n_heads, d)
                 .transpose(0, 2, 1, 3)
                 .reshape(B * n_heads, S, d))

    # ---- encoder layers (static unrolled loop; weights stacked over layers) ----
    for l in range(n_layers):
        # fused QKV projection on (B*S, H); 1/sqrt(d) already folded into wq.
        qkv = jnp.dot(x.astype(bf16), wqkv_ref[l],
                      preferred_element_type=jnp.float32) + bqkv_ref[l]   # (T, 3H)
        qh = _split_heads(qkv[:, 0 * H:1 * H]).astype(bf16)               # (B*nh, S, d)
        kh = _split_heads(qkv[:, 1 * H:2 * H]).astype(bf16)
        vh = _split_heads(qkv[:, 2 * H:3 * H]).astype(bf16)

        # batched attention over the fused (batch, head) axis.
        s = jnp.einsum("bqd,bkd->bqk", qh, kh,
                       preferred_element_type=jnp.float32) + bias         # (B*nh, S, S)
        s = s - jnp.max(s, axis=-1, keepdims=True)
        p = jnp.exp(s)
        p = p * pl.reciprocal(jnp.sum(p, axis=-1, keepdims=True), approx=True)
        ctx = jnp.einsum("bqk,bkd->bqd", p.astype(bf16), vh,
                         preferred_element_type=jnp.float32)              # (B*nh, S, d)
        ctx = (ctx.reshape(B, n_heads, S, d)
                  .transpose(0, 2, 1, 3)
                  .reshape(T, H))                                         # (T, H)

        # output projection + residual + LayerNorm
        attn_out = jnp.dot(ctx.astype(bf16), wo_ref[l],
                           preferred_element_type=jnp.float32) + bo_ref[l]
        x = _layernorm(attn_out + x, l1g_ref[l], l1b_ref[l], eps)

        # FFN: wi -> GELU -> wf, + residual + LayerNorm
        ff = jnp.dot(x.astype(bf16), wi_ref[l],
                     preferred_element_type=jnp.float32) + bi_ref[l]
        ff = _gelu(ff)
        ff = jnp.dot(ff.astype(bf16), wf_ref[l],
                     preferred_element_type=jnp.float32) + bf_ref[l]
        x = _layernorm(ff + x, l2g_ref[l], l2b_ref[l], eps)

    # ---- pooler (CLS rows only) + fc1 -> ReLU -> dropout(eval) -> fc2 -> LogSoftmax
    cls = x.reshape(B, S, H)[:, 0, :]                                     # (B, H)
    pooled = jnp.tanh(jnp.dot(cls.astype(bf16), pw_ref[...],
                              preferred_element_type=jnp.float32) + pb_ref[...])
    hdn = jnp.dot(pooled.astype(bf16), w1_ref[...],
                  preferred_element_type=jnp.float32) + b1_ref[...]
    hdn = jnp.maximum(hdn, 0.0)
    # nn.Dropout(0.1): identity at inference time.
    logits = jnp.dot(hdn.astype(bf16), w2_ref[...],
                     preferred_element_type=jnp.float32) + b2_ref[...]
    m = jnp.max(logits, axis=-1, keepdims=True)
    lse = jnp.log(jnp.sum(jnp.exp(logits - m), axis=-1, keepdims=True)) + m
    o_ref[...] = logits - lse


# ----------------------------------------------------------------------------
# Wrapper: one pallas_call, everything VMEM-resident
# ----------------------------------------------------------------------------

def _full_spec(shape):
    nd = len(shape)
    return pl.BlockSpec(shape, lambda i, _n=nd: (0,) * _n)


def bert_2fc_forward(params, sent_id, mask, *, n_heads, eps=1e-12):
    B, S = sent_id.shape
    H = params["tok_emb"].shape[1]
    C = params["fc2_w"].shape[1]
    n_layers = params["wqkv"].shape[0]

    # ---- tiny JAX glue: embedding gather + mask bias (data-dependent gather) ----
    emb = (jnp.take(params["tok_emb"], sent_id, axis=0)
           + params["pos_emb"][None, :S, :]
           + params["typ_emb"][0][None, None, :])                         # (B, S, H) f32
    key_bias = ((1.0 - mask.astype(jnp.float32)) * (-1e9))[:, None, :]    # (B, 1, S)
    attn_bias = jnp.repeat(key_bias, n_heads, axis=0)                     # (B*nh, 1, S)

    args = [
        emb, attn_bias,
        params["emb_ln_g"], params["emb_ln_b"],
        params["wqkv"], params["bqkv"], params["wo"], params["bo"],
        params["ln1_g"], params["ln1_b"],
        params["wi"], params["bi"], params["wf"], params["bf"],
        params["ln2_g"], params["ln2_b"],
        params["pool_w"], params["pool_b"],
        params["fc1_w"], params["fc1_b"],
        params["fc2_w"], params["fc2_b"],
    ]

    return pl.pallas_call(
        functools.partial(_bert_2fc_kernel, B=B, S=S, n_heads=n_heads,
                          n_layers=n_layers, eps=eps),
        out_shape=jax.ShapeDtypeStruct((B, C), jnp.float32),
        grid=(1,),
        in_specs=[_full_spec(a.shape) for a in args],
        out_specs=_full_spec((B, C)),
        compiler_params=pltpu.CompilerParams(
            dimension_semantics=("arbitrary",)),
    )(*args)


# ----------------------------------------------------------------------------
# Synthetic tiny-BERT backbone + 2FC head parameters
# ----------------------------------------------------------------------------

def init_params(key, *, vocab, max_pos, H, n_heads, inter, n_layers,
                fc_hidden, n_classes):
    d = H // n_heads
    keys = iter(jax.random.split(key, 64))
    nrm = lambda k, s: jax.random.normal(k, s, jnp.float32) * 0.02

    wqkv, wo, wi, wf = [], [], [], []
    for _ in range(n_layers):
        # Fold the 1/sqrt(d) attention scale into wq at init (perf review).
        wq = nrm(next(keys), (H, H)) * (1.0 / math.sqrt(d))
        wk = nrm(next(keys), (H, H))
        wv = nrm(next(keys), (H, H))
        wqkv.append(jnp.concatenate([wq, wk, wv], axis=1))                # (H, 3H)
        wo.append(nrm(next(keys), (H, H)))
        wi.append(nrm(next(keys), (H, inter)))
        wf.append(nrm(next(keys), (inter, H)))

    p = {
        "tok_emb": nrm(next(keys), (vocab, H)),
        "pos_emb": nrm(next(keys), (max_pos, H)),
        "typ_emb": nrm(next(keys), (2, H)),
        "emb_ln_g": jnp.ones((1, H), jnp.float32),
        "emb_ln_b": jnp.zeros((1, H), jnp.float32),
        # Per-layer weights stacked along a leading layer axis (bf16 matmul operands).
        "wqkv": jnp.stack(wqkv).astype(jnp.bfloat16),                     # (L, H, 3H)
        "bqkv": jnp.zeros((n_layers, 1, 3 * H), jnp.float32),
        "wo": jnp.stack(wo).astype(jnp.bfloat16),                         # (L, H, H)
        "bo": jnp.zeros((n_layers, 1, H), jnp.float32),
        "ln1_g": jnp.ones((n_layers, 1, H), jnp.float32),
        "ln1_b": jnp.zeros((n_layers, 1, H), jnp.float32),
        "wi": jnp.stack(wi).astype(jnp.bfloat16),                         # (L, H, I)
        "bi": jnp.zeros((n_layers, 1, inter), jnp.float32),
        "wf": jnp.stack(wf).astype(jnp.bfloat16),                         # (L, I, H)
        "bf": jnp.zeros((n_layers, 1, H), jnp.float32),
        "ln2_g": jnp.ones((n_layers, 1, H), jnp.float32),
        "ln2_b": jnp.zeros((n_layers, 1, H), jnp.float32),
        "pool_w": nrm(next(keys), (H, H)).astype(jnp.bfloat16),
        "pool_b": jnp.zeros((1, H), jnp.float32),
        "fc1_w": nrm(next(keys), (H, fc_hidden)).astype(jnp.bfloat16),
        "fc1_b": jnp.zeros((1, fc_hidden), jnp.float32),
        "fc2_w": nrm(next(keys), (fc_hidden, n_classes)).astype(jnp.bfloat16),
        "fc2_b": jnp.zeros((1, n_classes), jnp.float32),
    }
    return p


# ----------------------------------------------------------------------------
if __name__ == "__main__":
    # Small shapes consistent with the module (input_size == BERT hidden).
    B, S = 2, 8
    H, n_heads, inter, n_layers = 32, 2, 64, 2
    vocab, max_pos = 50, 16
    fc_hidden, n_classes = 16, 2

    key = jax.random.PRNGKey(0)
    k_param, k_ids = jax.random.split(key)

    params = init_params(k_param, vocab=vocab, max_pos=max_pos, H=H,
                         n_heads=n_heads, inter=inter, n_layers=n_layers,
                         fc_hidden=fc_hidden, n_classes=n_classes)

    sent_id = jax.random.randint(k_ids, (B, S), 0, vocab, dtype=jnp.int32)
    lengths = jnp.array([[S], [S - 2]], dtype=jnp.int32)
    mask = (jnp.arange(S, dtype=jnp.int32)[None, :] < lengths).astype(jnp.float32)

    fwd = jax.jit(functools.partial(bert_2fc_forward, n_heads=n_heads))
    out = fwd(params, sent_id, mask)
    out = jax.block_until_ready(out)
    assert out.shape == (B, n_classes)
    assert bool(jnp.all(jnp.isfinite(out)))
    print("KERNEL_OK")
</pallas_src>

<mosaic_0001>
module attributes {stable_mosaic.version = 11 : i64} {
  func.func @_bert_2fc_kernel(%arg0: i32, %arg1: memref<2x8x32xf32, #tpu.memory_space<vmem>>, %arg2: memref<4x1x8xf32, #tpu.memory_space<vmem>>, %arg3: memref<1x32xf32, #tpu.memory_space<vmem>>, %arg4: memref<1x32xf32, #tpu.memory_space<vmem>>, %arg5: memref<2x32x96xbf16, #tpu.memory_space<vmem>>, %arg6: memref<2x1x96xf32, #tpu.memory_space<vmem>>, %arg7: memref<2x32x32xbf16, #tpu.memory_space<vmem>>, %arg8: memref<2x1x32xf32, #tpu.memory_space<vmem>>, %arg9: memref<2x1x32xf32, #tpu.memory_space<vmem>>, %arg10: memref<2x1x32xf32, #tpu.memory_space<vmem>>, %arg11: memref<2x32x64xbf16, #tpu.memory_space<vmem>>, %arg12: memref<2x1x64xf32, #tpu.memory_space<vmem>>, %arg13: memref<2x64x32xbf16, #tpu.memory_space<vmem>>, %arg14: memref<2x1x32xf32, #tpu.memory_space<vmem>>, %arg15: memref<2x1x32xf32, #tpu.memory_space<vmem>>, %arg16: memref<2x1x32xf32, #tpu.memory_space<vmem>>, %arg17: memref<32x32xbf16, #tpu.memory_space<vmem>>, %arg18: memref<1x32xf32, #tpu.memory_space<vmem>>, %arg19: memref<32x16xbf16, #tpu.memory_space<vmem>>, %arg20: memref<1x16xf32, #tpu.memory_space<vmem>>, %arg21: memref<16x2xbf16, #tpu.memory_space<vmem>>, %arg22: memref<1x2xf32, #tpu.memory_space<vmem>>, %arg23: memref<2x2xf32, #tpu.memory_space<vmem>>) attributes {dimension_semantics = [#tpu.dimension_semantics<arbitrary>], iteration_bounds = array<i64: 1>, scalar_prefetch = 0 : i64, scratch_operands = 0 : i64, tpu.core_type = #tpu.core_type<tc>, window_params = [{pipeline_mode = #tpu.pipeline_mode<synchronous>, transform_indices = @transform_0, window_bounds = array<i64: 2, 8, 32>}, {pipeline_mode = #tpu.pipeline_mode<synchronous>, transform_indices = @transform_1, window_bounds = array<i64: 4, 1, 8>}, {pipeline_mode = #tpu.pipeline_mode<synchronous>, transform_indices = @transform_2, window_bounds = array<i64: 1, 32>}, {pipeline_mode = #tpu.pipeline_mode<synchronous>, transform_indices = @transform_3, window_bounds = array<i64: 1, 32>}, {pipeline_mode = #tpu.pipeline_mode<synchronous>, transform_indices = @transform_4, window_bounds = array<i64: 2, 32, 96>}, {pipeline_mode = #tpu.pipeline_mode<synchronous>, transform_indices = @transform_5, window_bounds = array<i64: 2, 1, 96>}, {pipeline_mode = #tpu.pipeline_mode<synchronous>, transform_indices = @transform_6, window_bounds = array<i64: 2, 32, 32>}, {pipeline_mode = #tpu.pipeline_mode<synchronous>, transform_indices = @transform_7, window_bounds = array<i64: 2, 1, 32>}, {pipeline_mode = #tpu.pipeline_mode<synchronous>, transform_indices = @transform_8, window_bounds = array<i64: 2, 1, 32>}, {pipeline_mode = #tpu.pipeline_mode<synchronous>, transform_indices = @transform_9, window_bounds = array<i64: 2, 1, 32>}, {pipeline_mode = #tpu.pipeline_mode<synchronous>, transform_indices = @transform_10, window_bounds = array<i64: 2, 32, 64>}, {pipeline_mode = #tpu.pipeline_mode<synchronous>, transform_indices = @transform_11, window_bounds = array<i64: 2, 1, 64>}, {pipeline_mode = #tpu.pipeline_mode<synchronous>, transform_indices = @transform_12, window_bounds = array<i64: 2, 64, 32>}, {pipeline_mode = #tpu.pipeline_mode<synchronous>, transform_indices = @transform_13, window_bounds = array<i64: 2, 1, 32>}, {pipeline_mode = #tpu.pipeline_mode<synchronous>, transform_indices = @transform_14, window_bounds = array<i64: 2, 1, 32>}, {pipeline_mode = #tpu.pipeline_mode<synchronous>, transform_indices = @transform_15, window_bounds = array<i64: 2, 1, 32>}, {pipeline_mode = #tpu.pipeline_mode<synchronous>, transform_indices = @transform_16, window_bounds = array<i64: 32, 32>}, {pipeline_mode = #tpu.pipeline_mode<synchronous>, transform_indices = @transform_17, window_bounds = array<i64: 1, 32>}, {pipeline_mode = #tpu.pipeline_mode<synchronous>, transform_indices = @transform_18, window_bounds = array<i64: 32, 16>}, {pipeline_mode = #tpu.pipeline_mode<synchronous>, transform_indices = @transform_19, window_bounds = array<i64: 1, 16>}, {pipeline_mode = #tpu.pipeline_mode<synchronous>, transform_indices = @transform_20, window_bounds = array<i64: 16, 2>}, {pipeline_mode = #tpu.pipeline_mode<synchronous>, transform_indices = @transform_21, window_bounds = array<i64: 1, 2>}, {pipeline_mode = #tpu.pipeline_mode<synchronous>, transform_indices = @transform_22, window_bounds = array<i64: 2, 2>}]} {
    %c0 = arith.constant 0 : index
    %c0_0 = arith.constant 0 : index
    %c0_1 = arith.constant 0 : index
    %0 = vector.load %arg1[%c0, %c0_0, %c0_1] : memref<2x8x32xf32, #tpu.memory_space<vmem>>, vector<2x8x32xf32>
    %1 = vector.shape_cast %0 : vector<2x8x32xf32> to vector<16x32xf32>
    %c0_2 = arith.constant 0 : index
    %c0_3 = arith.constant 0 : index
    %2 = vector.load %arg3[%c0_2, %c0_3] : memref<1x32xf32, #tpu.memory_space<vmem>>, vector<1x32xf32>
    %c0_4 = arith.constant 0 : index
    %c0_5 = arith.constant 0 : index
    %3 = vector.load %arg4[%c0_4, %c0_5] : memref<1x32xf32, #tpu.memory_space<vmem>>, vector<1x32xf32>
    %cst = arith.constant dense<0.000000e+00> : vector<16xf32>
    %4 = vector.multi_reduction <add>, %1, %cst [1] : vector<16x32xf32> to vector<16xf32>
    %5 = vector.shape_cast %4 : vector<16xf32> to vector<16x1xf32>
    %cst_6 = arith.constant 3.200000e+01 : f32
    %6 = vector.broadcast %cst_6 : f32 to vector<16x1xf32>
    %7 = arith.divf %5, %6 : vector<16x1xf32>
    %8 = vector.broadcast %7 : vector<16x1xf32> to vector<16x32xf32>
    %9 = arith.subf %1, %8 : vector<16x32xf32>
    %10 = vector.broadcast %7 : vector<16x1xf32> to vector<16x32xf32>
    %11 = arith.subf %1, %10 : vector<16x32xf32>
    %12 = arith.mulf %9, %11 : vector<16x32xf32>
    %cst_7 = arith.constant dense<0.000000e+00> : vector<16xf32>
    %13 = vector.multi_reduction <add>, %12, %cst_7 [1] : vector<16x32xf32> to vector<16xf32>
    %14 = vector.shape_cast %13 : vector<16xf32> to vector<16x1xf32>
    %cst_8 = arith.constant 3.200000e+01 : f32
    %15 = vector.broadcast %cst_8 : f32 to vector<16x1xf32>
    %16 = arith.divf %14, %15 : vector<16x1xf32>
    %17 = vector.broadcast %7 : vector<16x1xf32> to vector<16x32xf32>
    %18 = arith.subf %1, %17 : vector<16x32xf32>
    %cst_9 = arith.constant 9.99999996E-13 : f32
    %19 = vector.broadcast %cst_9 : f32 to vector<16x1xf32>
    %20 = arith.addf %16, %19 : vector<16x1xf32>
    %21 = math.rsqrt %20 : vector<16x1xf32>
    %22 = vector.broadcast %21 : vector<16x1xf32> to vector<16x32xf32>
    %23 = arith.mulf %18, %22 : vector<16x32xf32>
    %24 = vector.broadcast %2 : vector<1x32xf32> to vector<16x32xf32>
    %25 = arith.mulf %23, %24 : vector<16x32xf32>
    %26 = vector.broadcast %3 : vector<1x32xf32> to vector<16x32xf32>
    %27 = arith.addf %25, %26 : vector<16x32xf32>
    %c0_10 = arith.constant 0 : index
    %c0_11 = arith.constant 0 : index
    %c0_12 = arith.constant 0 : index
    %28 = vector.load %arg2[%c0_10, %c0_11, %c0_12] : memref<4x1x8xf32, #tpu.memory_space<vmem>>, vector<4x1x8xf32>
    %29 = arith.truncf %27 : vector<16x32xf32> to vector<16x32xbf16>
    %c0_13 = arith.constant 0 : index
    %c0_14 = arith.constant 0 : index
    %c0_15 = arith.constant 0 : index
    %30 = vector.load %arg5[%c0_13, %c0_14, %c0_15] : memref<2x32x96xbf16, #tpu.memory_space<vmem>>, vector<1x32x96xbf16>
    %31 = vector.shape_cast %30 : vector<1x32x96xbf16> to vector<32x96xbf16>
    %cst_16 = arith.constant dense<0.000000e+00> : vector<16x96xf32>
    %32 = tpu.matmul %29, %31, %cst_16 {dimension_numbers = #tpu.dot_dimension_numbers<[1], [0], [0], [1], [0, 0, 1, 1], [], []>} : vector<16x32xbf16>, vector<32x96xbf16>, vector<16x96xf32> -> vector<16x96xf32>
    %c0_17 = arith.constant 0 : index
    %c0_18 = arith.constant 0 : index
    %c0_19 = arith.constant 0 : index
    %33 = vector.load %arg6[%c0_17, %c0_18, %c0_19] : memref<2x1x96xf32, #tpu.memory_space<vmem>>, vector<1x1x96xf32>
    %34 = vector.shape_cast %33 : vector<1x1x96xf32> to vector<1x96xf32>
    %35 = vector.broadcast %34 : vector<1x96xf32> to vector<16x96xf32>
    %36 = arith.addf %32, %35 : vector<16x96xf32>
    %37 = vector.extract_strided_slice %36 {offsets = [0, 0], sizes = [16, 32], strides = [1, 1]} : vector<16x96xf32> to vector<16x32xf32>
    %38 = vector.shape_cast %37 : vector<16x32xf32> to vector<2x8x2x16xf32>
    %39 = tpu.transpose %38, [0, 2, 1, 3] : vector<2x8x2x16xf32> -> vector<2x2x8x16xf32>
    %40 = vector.shape_cast %39 : vector<2x2x8x16xf32> to vector<4x8x16xf32>
    %41 = arith.truncf %40 : vector<4x8x16xf32> to vector<4x8x16xbf16>
    %42 = vector.extract_strided_slice %36 {offsets = [0, 32], sizes = [16, 32], strides = [1, 1]} : vector<16x96xf32> to vector<16x32xf32>
    %43 = vector.shape_cast %42 : vector<16x32xf32> to vector<2x8x2x16xf32>
    %44 = tpu.transpose %43, [0, 2, 1, 3] : vector<2x8x2x16xf32> -> vector<2x2x8x16xf32>
    %45 = vector.shape_cast %44 : vector<2x2x8x16xf32> to vector<4x8x16xf32>
    %46 = arith.truncf %45 : vector<4x8x16xf32> to vector<4x8x16xbf16>
    %47 = vector.extract_strided_slice %36 {offsets = [0, 64], sizes = [16, 32], strides = [1, 1]} : vector<16x96xf32> to vector<16x32xf32>
    %48 = vector.shape_cast %47 : vector<16x32xf32> to vector<2x8x2x16xf32>
    %49 = tpu.transpose %48, [0, 2, 1, 3] : vector<2x8x2x16xf32> -> vector<2x2x8x16xf32>
    %50 = vector.shape_cast %49 : vector<2x2x8x16xf32> to vector<4x8x16xf32>
    %51 = arith.truncf %50 : vector<4x8x16xf32> to vector<4x8x16xbf16>
    "tpu.trace_start"() <{level = 10 : i32, message = "bqd,bkd->bqk"}> : () -> ()
    %cst_20 = arith.constant dense<0.000000e+00> : vector<4x8x8xf32>
    %52 = tpu.matmul %41, %46, %cst_20 {dimension_numbers = #tpu.dot_dimension_numbers<[2], [2], [1], [1], [0, 0, 0, 1, 1, 1], [0], [0]>} : vector<4x8x16xbf16>, vector<4x8x16xbf16>, vector<4x8x8xf32> -> vector<4x8x8xf32>
    "tpu.trace_stop"() : () -> ()
    %53 = vector.broadcast %28 : vector<4x1x8xf32> to vector<4x8x8xf32>
    %54 = arith.addf %52, %53 : vector<4x8x8xf32>
    %cst_21 = arith.constant dense<0xFF800000> : vector<4x8xf32>
    %55 = vector.multi_reduction <maximumf>, %54, %cst_21 [2] : vector<4x8x8xf32> to vector<4x8xf32>
    %56 = vector.shape_cast %55 : vector<4x8xf32> to vector<4x8x1xf32>
    %57 = vector.broadcast %56 : vector<4x8x1xf32> to vector<4x8x8xf32>
    %58 = arith.subf %54, %57 : vector<4x8x8xf32>
    %59 = math.exp %58 : vector<4x8x8xf32>
    %cst_22 = arith.constant dense<0.000000e+00> : vector<4x8xf32>
    %60 = vector.multi_reduction <add>, %59, %cst_22 [2] : vector<4x8x8xf32> to vector<4x8xf32>
    %61 = vector.shape_cast %60 : vector<4x8xf32> to vector<4x8x1xf32>
    %62 = tpu.reciprocal %61 {approx = true} : vector<4x8x1xf32> -> vector<4x8x1xf32>
    %63 = vector.broadcast %62 : vector<4x8x1xf32> to vector<4x8x8xf32>
    %64 = arith.mulf %59, %63 : vector<4x8x8xf32>
    %65 = arith.truncf %64 : vector<4x8x8xf32> to vector<4x8x8xbf16>
    "tpu.trace_start"() <{level = 10 : i32, message = "bqk,bkd->bqd"}> : () -> ()
    %cst_23 = arith.constant dense<0.000000e+00> : vector<4x8x16xf32>
    %66 = tpu.matmul %65, %51, %cst_23 {dimension_numbers = #tpu.dot_dimension_numbers<[2], [1], [1], [2], [0, 0, 0, 1, 1, 2], [0], [0]>} : vector<4x8x8xbf16>, vector<4x8x16xbf16>, vector<4x8x16xf32> -> vector<4x8x16xf32>
    "tpu.trace_stop"() : () -> ()
    %67 = vector.shape_cast %66 : vector<4x8x16xf32> to vector<2x2x8x16xf32>
    %68 = tpu.transpose %67, [0, 2, 1, 3] : vector<2x2x8x16xf32> -> vector<2x8x2x16xf32>
    %69 = vector.shape_cast %68 : vector<2x8x2x16xf32> to vector<16x32xf32>
    %70 = arith.truncf %69 : vector<16x32xf32> to vector<16x32xbf16>
    %c0_24 = arith.constant 0 : index
    %c0_25 = arith.constant 0 : index
    %c0_26 = arith.constant 0 : index
    %71 = vector.load %arg7[%c0_24, %c0_25, %c0_26] : memref<2x32x32xbf16, #tpu.memory_space<vmem>>, vector<1x32x32xbf16>
    %72 = vector.shape_cast %71 : vector<1x32x32xbf16> to vector<32x32xbf16>
    %cst_27 = arith.constant dense<0.000000e+00> : vector<16x32xf32>
    %73 = tpu.matmul %70, %72, %cst_27 {dimension_numbers = #tpu.dot_dimension_numbers<[1], [0], [0], [1], [0, 0, 1, 1], [], []>} : vector<16x32xbf16>, vector<32x32xbf16>, vector<16x32xf32> -> vector<16x32xf32>
    %c0_28 = arith.constant 0 : index
    %c0_29 = arith.constant 0 : index
    %c0_30 = arith.constant 0 : index
    %74 = vector.load %arg8[%c0_28, %c0_29, %c0_30] : memref<2x1x32xf32, #tpu.memory_space<vmem>>, vector<1x1x32xf32>
    %75 = vector.shape_cast %74 : vector<1x1x32xf32> to vector<1x32xf32>
    %76 = vector.broadcast %75 : vector<1x32xf32> to vector<16x32xf32>
    %77 = arith.addf %73, %76 : vector<16x32xf32>
    %78 = arith.addf %77, %27 : vector<16x32xf32>
    %c0_31 = arith.constant 0 : index
    %c0_32 = arith.constant 0 : index
    %c0_33 = arith.constant 0 : index
    %79 = vector.load %arg9[%c0_31, %c0_32, %c0_33] : memref<2x1x32xf32, #tpu.memory_space<vmem>>, vector<1x1x32xf32>
    %80 = vector.shape_cast %79 : vector<1x1x32xf32> to vector<1x32xf32>
    %c0_34 = arith.constant 0 : index
    %c0_35 = arith.constant 0 : index
    %c0_36 = arith.constant 0 : index
    %81 = vector.load %arg10[%c0_34, %c0_35, %c0_36] : memref<2x1x32xf32, #tpu.memory_space<vmem>>, vector<1x1x32xf32>
    %82 = vector.shape_cast %81 : vector<1x1x32xf32> to vector<1x32xf32>
    %cst_37 = arith.constant dense<0.000000e+00> : vector<16xf32>
    %83 = vector.multi_reduction <add>, %78, %cst_37 [1] : vector<16x32xf32> to vector<16xf32>
    %84 = vector.shape_cast %83 : vector<16xf32> to vector<16x1xf32>
    %cst_38 = arith.constant 3.200000e+01 : f32
    %85 = vector.broadcast %cst_38 : f32 to vector<16x1xf32>
    %86 = arith.divf %84, %85 : vector<16x1xf32>
    %87 = vector.broadcast %86 : vector<16x1xf32> to vector<16x32xf32>
    %88 = arith.subf %78, %87 : vector<16x32xf32>
    %89 = vector.broadcast %86 : vector<16x1xf32> to vector<16x32xf32>
    %90 = arith.subf %78, %89 : vector<16x32xf32>
    %91 = arith.mulf %88, %90 : vector<16x32xf32>
    %cst_39 = arith.constant dense<0.000000e+00> : vector<16xf32>
    %92 = vector.multi_reduction <add>, %91, %cst_39 [1] : vector<16x32xf32> to vector<16xf32>
    %93 = vector.shape_cast %92 : vector<16xf32> to vector<16x1xf32>
    %cst_40 = arith.constant 3.200000e+01 : f32
    %94 = vector.broadcast %cst_40 : f32 to vector<16x1xf32>
    %95 = arith.divf %93, %94 : vector<16x1xf32>
    %96 = vector.broadcast %86 : vector<16x1xf32> to vector<16x32xf32>
    %97 = arith.subf %78, %96 : vector<16x32xf32>
    %cst_41 = arith.constant 9.99999996E-13 : f32
    %98 = vector.broadcast %cst_41 : f32 to vector<16x1xf32>
    %99 = arith.addf %95, %98 : vector<16x1xf32>
    %100 = math.rsqrt %99 : vector<16x1xf32>
    %101 = vector.broadcast %100 : vector<16x1xf32> to vector<16x32xf32>
    %102 = arith.mulf %97, %101 : vector<16x32xf32>
    %103 = vector.broadcast %80 : vector<1x32xf32> to vector<16x32xf32>
    %104 = arith.mulf %102, %103 : vector<16x32xf32>
    %105 = vector.broadcast %82 : vector<1x32xf32> to vector<16x32xf32>
    %106 = arith.addf %104, %105 : vector<16x32xf32>
    %107 = arith.truncf %106 : vector<16x32xf32> to vector<16x32xbf16>
    %c0_42 = arith.constant 0 : index
    %c0_43 = arith.constant 0 : index
    %c0_44 = arith.constant 0 : index
    %108 = vector.load %arg11[%c0_42, %c0_43, %c0_44] : memref<2x32x64xbf16, #tpu.memory_space<vmem>>, vector<1x32x64xbf16>
    %109 = vector.shape_cast %108 : vector<1x32x64xbf16> to vector<32x64xbf16>
    %cst_45 = arith.constant dense<0.000000e+00> : vector<16x64xf32>
    %110 = tpu.matmul %107, %109, %cst_45 {dimension_numbers = #tpu.dot_dimension_numbers<[1], [0], [0], [1], [0, 0, 1, 1], [], []>} : vector<16x32xbf16>, vector<32x64xbf16>, vector<16x64xf32> -> vector<16x64xf32>
    %c0_46 = arith.constant 0 : index
    %c0_47 = arith.constant 0 : index
    %c0_48 = arith.constant 0 : index
    %111 = vector.load %arg12[%c0_46, %c0_47, %c0_48] : memref<2x1x64xf32, #tpu.memory_space<vmem>>, vector<1x1x64xf32>
    %112 = vector.shape_cast %111 : vector<1x1x64xf32> to vector<1x64xf32>
    %113 = vector.broadcast %112 : vector<1x64xf32> to vector<16x64xf32>
    %114 = arith.addf %110, %113 : vector<16x64xf32>
    %cst_49 = arith.constant 5.000000e-01 : f32
    %115 = vector.broadcast %cst_49 : f32 to vector<16x64xf32>
    %116 = arith.mulf %115, %114 : vector<16x64xf32>
    %cst_50 = arith.constant 4.471500e-02 : f32
    %117 = vector.broadcast %cst_50 : f32 to vector<16x64xf32>
    %118 = arith.mulf %117, %114 : vector<16x64xf32>
    %119 = arith.mulf %118, %114 : vector<16x64xf32>
    %120 = arith.mulf %119, %114 : vector<16x64xf32>
    %121 = arith.addf %114, %120 : vector<16x64xf32>
    %cst_51 = arith.constant 0.797884583 : f32
    %122 = vector.broadcast %cst_51 : f32 to vector<16x64xf32>
    %123 = arith.mulf %122, %121 : vector<16x64xf32>
    %124 = math.tanh %123 : vector<16x64xf32>
    %cst_52 = arith.constant 1.000000e+00 : f32
    %125 = vector.broadcast %cst_52 : f32 to vector<16x64xf32>
    %126 = arith.addf %125, %124 : vector<16x64xf32>
    %127 = arith.mulf %116, %126 : vector<16x64xf32>
    %128 = arith.truncf %127 : vector<16x64xf32> to vector<16x64xbf16>
    %c0_53 = arith.constant 0 : index
    %c0_54 = arith.constant 0 : index
    %c0_55 = arith.constant 0 : index
    %129 = vector.load %arg13[%c0_53, %c0_54, %c0_55] : memref<2x64x32xbf16, #tpu.memory_space<vmem>>, vector<1x64x32xbf16>
    %130 = vector.shape_cast %129 : vector<1x64x32xbf16> to vector<64x32xbf16>
    %cst_56 = arith.constant dense<0.000000e+00> : vector<16x32xf32>
    %131 = tpu.matmul %128, %130, %cst_56 {dimension_numbers = #tpu.dot_dimension_numbers<[1], [0], [0], [1], [0, 0, 1, 1], [], []>} : vector<16x64xbf16>, vector<64x32xbf16>, vector<16x32xf32> -> vector<16x32xf32>
    %c0_57 = arith.constant 0 : index
    %c0_58 = arith.constant 0 : index
    %c0_59 = arith.constant 0 : index
    %132 = vector.load %arg14[%c0_57, %c0_58, %c0_59] : memref<2x1x32xf32, #tpu.memory_space<vmem>>, vector<1x1x32xf32>
    %133 = vector.shape_cast %132 : vector<1x1x32xf32> to vector<1x32xf32>
    %134 = vector.broadcast %133 : vector<1x32xf32> to vector<16x32xf32>
    %135 = arith.addf %131, %134 : vector<16x32xf32>
    %136 = arith.addf %135, %106 : vector<16x32xf32>
    %c0_60 = arith.constant 0 : index
    %c0_61 = arith.constant 0 : index
    %c0_62 = arith.constant 0 : index
    %137 = vector.load %arg15[%c0_60, %c0_61, %c0_62] : memref<2x1x32xf32, #tpu.memory_space<vmem>>, vector<1x1x32xf32>
    %138 = vector.shape_cast %137 : vector<1x1x32xf32> to vector<1x32xf32>
    %c0_63 = arith.constant 0 : index
    %c0_64 = arith.constant 0 : index
    %c0_65 = arith.constant 0 : index
    %139 = vector.load %arg16[%c0_63, %c0_64, %c0_65] : memref<2x1x32xf32, #tpu.memory_space<vmem>>, vector<1x1x32xf32>
    %140 = vector.shape_cast %139 : vector<1x1x32xf32> to vector<1x32xf32>
    %cst_66 = arith.constant dense<0.000000e+00> : vector<16xf32>
    %141 = vector.multi_reduction <add>, %136, %cst_66 [1] : vector<16x32xf32> to vector<16xf32>
    %142 = vector.shape_cast %141 : vector<16xf32> to vector<16x1xf32>
    %cst_67 = arith.constant 3.200000e+01 : f32
    %143 = vector.broadcast %cst_67 : f32 to vector<16x1xf32>
    %144 = arith.divf %142, %143 : vector<16x1xf32>
    %145 = vector.broadcast %144 : vector<16x1xf32> to vector<16x32xf32>
    %146 = arith.subf %136, %145 : vector<16x32xf32>
    %147 = vector.broadcast %144 : vector<16x1xf32> to vector<16x32xf32>
    %148 = arith.subf %136, %147 : vector<16x32xf32>
    %149 = arith.mulf %146, %148 : vector<16x32xf32>
    %cst_68 = arith.constant dense<0.000000e+00> : vector<16xf32>
    %150 = vector.multi_reduction <add>, %149, %cst_68 [1] : vector<16x32xf32> to vector<16xf32>
    %151 = vector.shape_cast %150 : vector<16xf32> to vector<16x1xf32>
    %cst_69 = arith.constant 3.200000e+01 : f32
    %152 = vector.broadcast %cst_69 : f32 to vector<16x1xf32>
    %153 = arith.divf %151, %152 : vector<16x1xf32>
    %154 = vector.broadcast %144 : vector<16x1xf32> to vector<16x32xf32>
    %155 = arith.subf %136, %154 : vector<16x32xf32>
    %cst_70 = arith.constant 9.99999996E-13 : f32
    %156 = vector.broadcast %cst_70 : f32 to vector<16x1xf32>
    %157 = arith.addf %153, %156 : vector<16x1xf32>
    %158 = math.rsqrt %157 : vector<16x1xf32>
    %159 = vector.broadcast %158 : vector<16x1xf32> to vector<16x32xf32>
    %160 = arith.mulf %155, %159 : vector<16x32xf32>
    %161 = vector.broadcast %138 : vector<1x32xf32> to vector<16x32xf32>
    %162 = arith.mulf %160, %161 : vector<16x32xf32>
    %163 = vector.broadcast %140 : vector<1x32xf32> to vector<16x32xf32>
    %164 = arith.addf %162, %163 : vector<16x32xf32>
    %165 = arith.truncf %164 : vector<16x32xf32> to vector<16x32xbf16>
    %c1 = arith.constant 1 : index
    %c0_71 = arith.constant 0 : index
    %c0_72 = arith.constant 0 : index
    %166 = vector.load %arg5[%c1, %c0_71, %c0_72] : memref<2x32x96xbf16, #tpu.memory_space<vmem>>, vector<1x32x96xbf16>
    %167 = vector.shape_cast %166 : vector<1x32x96xbf16> to vector<32x96xbf16>
    %cst_73 = arith.constant dense<0.000000e+00> : vector<16x96xf32>
    %168 = tpu.matmul %165, %167, %cst_73 {dimension_numbers = #tpu.dot_dimension_numbers<[1], [0], [0], [1], [0, 0, 1, 1], [], []>} : vector<16x32xbf16>, vector<32x96xbf16>, vector<16x96xf32> -> vector<16x96xf32>
    %c1_74 = arith.constant 1 : index
    %c0_75 = arith.constant 0 : index
    %c0_76 = arith.constant 0 : index
    %169 = vector.load %arg6[%c1_74, %c0_75, %c0_76] : memref<2x1x96xf32, #tpu.memory_space<vmem>>, vector<1x1x96xf32>
    %170 = vector.shape_cast %169 : vector<1x1x96xf32> to vector<1x96xf32>
    %171 = vector.broadcast %170 : vector<1x96xf32> to vector<16x96xf32>
    %172 = arith.addf %168, %171 : vector<16x96xf32>
    %173 = vector.extract_strided_slice %172 {offsets = [0, 0], sizes = [16, 32], strides = [1, 1]} : vector<16x96xf32> to vector<16x32xf32>
    %174 = vector.shape_cast %173 : vector<16x32xf32> to vector<2x8x2x16xf32>
    %175 = tpu.transpose %174, [0, 2, 1, 3] : vector<2x8x2x16xf32> -> vector<2x2x8x16xf32>
    %176 = vector.shape_cast %175 : vector<2x2x8x16xf32> to vector<4x8x16xf32>
    %177 = arith.truncf %176 : vector<4x8x16xf32> to vector<4x8x16xbf16>
    %178 = vector.extract_strided_slice %172 {offsets = [0, 32], sizes = [16, 32], strides = [1, 1]} : vector<16x96xf32> to vector<16x32xf32>
    %179 = vector.shape_cast %178 : vector<16x32xf32> to vector<2x8x2x16xf32>
    %180 = tpu.transpose %179, [0, 2, 1, 3] : vector<2x8x2x16xf32> -> vector<2x2x8x16xf32>
    %181 = vector.shape_cast %180 : vector<2x2x8x16xf32> to vector<4x8x16xf32>
    %182 = arith.truncf %181 : vector<4x8x16xf32> to vector<4x8x16xbf16>
    %183 = vector.extract_strided_slice %172 {offsets = [0, 64], sizes = [16, 32], strides = [1, 1]} : vector<16x96xf32> to vector<16x32xf32>
    %184 = vector.shape_cast %183 : vector<16x32xf32> to vector<2x8x2x16xf32>
    %185 = tpu.transpose %184, [0, 2, 1, 3] : vector<2x8x2x16xf32> -> vector<2x2x8x16xf32>
    %186 = vector.shape_cast %185 : vector<2x2x8x16xf32> to vector<4x8x16xf32>
    %187 = arith.truncf %186 : vector<4x8x16xf32> to vector<4x8x16xbf16>
    "tpu.trace_start"() <{level = 10 : i32, message = "bqd,bkd->bqk"}> : () -> ()
    %cst_77 = arith.constant dense<0.000000e+00> : vector<4x8x8xf32>
    %188 = tpu.matmul %177, %182, %cst_77 {dimension_numbers = #tpu.dot_dimension_numbers<[2], [2], [1], [1], [0, 0, 0, 1, 1, 1], [0], [0]>} : vector<4x8x16xbf16>, vector<4x8x16xbf16>, vector<4x8x8xf32> -> vector<4x8x8xf32>
    "tpu.trace_stop"() : () -> ()
    %189 = vector.broadcast %28 : vector<4x1x8xf32> to vector<4x8x8xf32>
    %190 = arith.addf %188, %189 : vector<4x8x8xf32>
    %cst_78 = arith.constant dense<0xFF800000> : vector<4x8xf32>
    %191 = vector.multi_reduction <maximumf>, %190, %cst_78 [2] : vector<4x8x8xf32> to vector<4x8xf32>
    %192 = vector.shape_cast %191 : vector<4x8xf32> to vector<4x8x1xf32>
    %193 = vector.broadcast %192 : vector<4x8x1xf32> to vector<4x8x8xf32>
    %194 = arith.subf %190, %193 : vector<4x8x8xf32>
    %195 = math.exp %194 : vector<4x8x8xf32>
    %cst_79 = arith.constant dense<0.000000e+00> : vector<4x8xf32>
    %196 = vector.multi_reduction <add>, %195, %cst_79 [2] : vector<4x8x8xf32> to vector<4x8xf32>
    %197 = vector.shape_cast %196 : vector<4x8xf32> to vector<4x8x1xf32>
    %198 = tpu.reciprocal %197 {approx = true} : vector<4x8x1xf32> -> vector<4x8x1xf32>
    %199 = vector.broadcast %198 : vector<4x8x1xf32> to vector<4x8x8xf32>
    %200 = arith.mulf %195, %199 : vector<4x8x8xf32>
    %201 = arith.truncf %200 : vector<4x8x8xf32> to vector<4x8x8xbf16>
    "tpu.trace_start"() <{level = 10 : i32, message = "bqk,bkd->bqd"}> : () -> ()
    %cst_80 = arith.constant dense<0.000000e+00> : vector<4x8x16xf32>
    %202 = tpu.matmul %201, %187, %cst_80 {dimension_numbers = #tpu.dot_dimension_numbers<[2], [1], [1], [2], [0, 0, 0, 1, 1, 2], [0], [0]>} : vector<4x8x8xbf16>, vector<4x8x16xbf16>, vector<4x8x16xf32> -> vector<4x8x16xf32>
    "tpu.trace_stop"() : () -> ()
    %203 = vector.shape_cast %202 : vector<4x8x16xf32> to vector<2x2x8x16xf32>
    %204 = tpu.transpose %203, [0, 2, 1, 3] : vector<2x2x8x16xf32> -> vector<2x8x2x16xf32>
    %205 = vector.shape_cast %204 : vector<2x8x2x16xf32> to vector<16x32xf32>
    %206 = arith.truncf %205 : vector<16x32xf32> to vector<16x32xbf16>
    %c1_81 = arith.constant 1 : index
    %c0_82 = arith.constant 0 : index
    %c0_83 = arith.constant 0 : index
    %207 = vector.load %arg7[%c1_81, %c0_82, %c0_83] : memref<2x32x32xbf16, #tpu.memory_space<vmem>>, vector<1x32x32xbf16>
    %208 = vector.shape_cast %207 : vector<1x32x32xbf16> to vector<32x32xbf16>
    %cst_84 = arith.constant dense<0.000000e+00> : vector<16x32xf32>
    %209 = tpu.matmul %206, %208, %cst_84 {dimension_numbers = #tpu.dot_dimension_numbers<[1], [0], [0], [1], [0, 0, 1, 1], [], []>} : vector<16x32xbf16>, vector<32x32xbf16>, vector<16x32xf32> -> vector<16x32xf32>
    %c1_85 = arith.constant 1 : index
    %c0_86 = arith.constant 0 : index
    %c0_87 = arith.constant 0 : index
    %210 = vector.load %arg8[%c1_85, %c0_86, %c0_87] : memref<2x1x32xf32, #tpu.memory_space<vmem>>, vector<1x1x32xf32>
    %211 = vector.shape_cast %210 : vector<1x1x32xf32> to vector<1x32xf32>
    %212 = vector.broadcast %211 : vector<1x32xf32> to vector<16x32xf32>
    %213 = arith.addf %209, %212 : vector<16x32xf32>
    %214 = arith.addf %213, %164 : vector<16x32xf32>
    %c1_88 = arith.constant 1 : index
    %c0_89 = arith.constant 0 : index
    %c0_90 = arith.constant 0 : index
    %215 = vector.load %arg9[%c1_88, %c0_89, %c0_90] : memref<2x1x32xf32, #tpu.memory_space<vmem>>, vector<1x1x32xf32>
    %216 = vector.shape_cast %215 : vector<1x1x32xf32> to vector<1x32xf32>
    %c1_91 = arith.constant 1 : index
    %c0_92 = arith.constant 0 : index
    %c0_93 = arith.constant 0 : index
    %217 = vector.load %arg10[%c1_91, %c0_92, %c0_93] : memref<2x1x32xf32, #tpu.memory_space<vmem>>, vector<1x1x32xf32>
    %218 = vector.shape_cast %217 : vector<1x1x32xf32> to vector<1x32xf32>
    %cst_94 = arith.constant dense<0.000000e+00> : vector<16xf32>
    %219 = vector.multi_reduction <add>, %214, %cst_94 [1] : vector<16x32xf32> to vector<16xf32>
    %220 = vector.shape_cast %219 : vector<16xf32> to vector<16x1xf32>
    %cst_95 = arith.constant 3.200000e+01 : f32
    %221 = vector.broadcast %cst_95 : f32 to vector<16x1xf32>
    %222 = arith.divf %220, %221 : vector<16x1xf32>
    %223 = vector.broadcast %222 : vector<16x1xf32> to vector<16x32xf32>
    %224 = arith.subf %214, %223 : vector<16x32xf32>
    %225 = vector.broadcast %222 : vector<16x1xf32> to vector<16x32xf32>
    %226 = arith.subf %214, %225 : vector<16x32xf32>
    %227 = arith.mulf %224, %226 : vector<16x32xf32>
    %cst_96 = arith.constant dense<0.000000e+00> : vector<16xf32>
    %228 = vector.multi_reduction <add>, %227, %cst_96 [1] : vector<16x32xf32> to vector<16xf32>
    %229 = vector.shape_cast %228 : vector<16xf32> to vector<16x1xf32>
    %cst_97 = arith.constant 3.200000e+01 : f32
    %230 = vector.broadcast %cst_97 : f32 to vector<16x1xf32>
    %231 = arith.divf %229, %230 : vector<16x1xf32>
    %232 = vector.broadcast %222 : vector<16x1xf32> to vector<16x32xf32>
    %233 = arith.subf %214, %232 : vector<16x32xf32>
    %cst_98 = arith.constant 9.99999996E-13 : f32
    %234 = vector.broadcast %cst_98 : f32 to vector<16x1xf32>
    %235 = arith.addf %231, %234 : vector<16x1xf32>
    %236 = math.rsqrt %235 : vector<16x1xf32>
    %237 = vector.broadcast %236 : vector<16x1xf32> to vector<16x32xf32>
    %238 = arith.mulf %233, %237 : vector<16x32xf32>
    %239 = vector.broadcast %216 : vector<1x32xf32> to vector<16x32xf32>
    %240 = arith.mulf %238, %239 : vector<16x32xf32>
    %241 = vector.broadcast %218 : vector<1x32xf32> to vector<16x32xf32>
    %242 = arith.addf %240, %241 : vector<16x32xf32>
    %243 = arith.truncf %242 : vector<16x32xf32> to vector<16x32xbf16>
    %c1_99 = arith.constant 1 : index
    %c0_100 = arith.constant 0 : index
    %c0_101 = arith.constant 0 : index
    %244 = vector.load %arg11[%c1_99, %c0_100, %c0_101] : memref<2x32x64xbf16, #tpu.memory_space<vmem>>, vector<1x32x64xbf16>
    %245 = vector.shape_cast %244 : vector<1x32x64xbf16> to vector<32x64xbf16>
    %cst_102 = arith.constant dense<0.000000e+00> : vector<16x64xf32>
    %246 = tpu.matmul %243, %245, %cst_102 {dimension_numbers = #tpu.dot_dimension_numbers<[1], [0], [0], [1], [0, 0, 1, 1], [], []>} : vector<16x32xbf16>, vector<32x64xbf16>, vector<16x64xf32> -> vector<16x64xf32>
    %c1_103 = arith.constant 1 : index
    %c0_104 = arith.constant 0 : index
    %c0_105 = arith.constant 0 : index
    %247 = vector.load %arg12[%c1_103, %c0_104, %c0_105] : memref<2x1x64xf32, #tpu.memory_space<vmem>>, vector<1x1x64xf32>
    %248 = vector.shape_cast %247 : vector<1x1x64xf32> to vector<1x64xf32>
    %249 = vector.broadcast %248 : vector<1x64xf32> to vector<16x64xf32>
    %250 = arith.addf %246, %249 : vector<16x64xf32>
    %cst_106 = arith.constant 5.000000e-01 : f32
    %251 = vector.broadcast %cst_106 : f32 to vector<16x64xf32>
    %252 = arith.mulf %251, %250 : vector<16x64xf32>
    %cst_107 = arith.constant 4.471500e-02 : f32
    %253 = vector.broadcast %cst_107 : f32 to vector<16x64xf32>
    %254 = arith.mulf %253, %250 : vector<16x64xf32>
    %255 = arith.mulf %254, %250 : vector<16x64xf32>
    %256 = arith.mulf %255, %250 : vector<16x64xf32>
    %257 = arith.addf %250, %256 : vector<16x64xf32>
    %cst_108 = arith.constant 0.797884583 : f32
    %258 = vector.broadcast %cst_108 : f32 to vector<16x64xf32>
    %259 = arith.mulf %258, %257 : vector<16x64xf32>
    %260 = math.tanh %259 : vector<16x64xf32>
    %cst_109 = arith.constant 1.000000e+00 : f32
    %261 = vector.broadcast %cst_109 : f32 to vector<16x64xf32>
    %262 = arith.addf %261, %260 : vector<16x64xf32>
    %263 = arith.mulf %252, %262 : vector<16x64xf32>
    %264 = arith.truncf %263 : vector<16x64xf32> to vector<16x64xbf16>
    %c1_110 = arith.constant 1 : index
    %c0_111 = arith.constant 0 : index
    %c0_112 = arith.constant 0 : index
    %265 = vector.load %arg13[%c1_110, %c0_111, %c0_112] : memref<2x64x32xbf16, #tpu.memory_space<vmem>>, vector<1x64x32xbf16>
    %266 = vector.shape_cast %265 : vector<1x64x32xbf16> to vector<64x32xbf16>
    %cst_113 = arith.constant dense<0.000000e+00> : vector<16x32xf32>
    %267 = tpu.matmul %264, %266, %cst_113 {dimension_numbers = #tpu.dot_dimension_numbers<[1], [0], [0], [1], [0, 0, 1, 1], [], []>} : vector<16x64xbf16>, vector<64x32xbf16>, vector<16x32xf32> -> vector<16x32xf32>
    %c1_114 = arith.constant 1 : index
    %c0_115 = arith.constant 0 : index
    %c0_116 = arith.constant 0 : index
    %268 = vector.load %arg14[%c1_114, %c0_115, %c0_116] : memref<2x1x32xf32, #tpu.memory_space<vmem>>, vector<1x1x32xf32>
    %269 = vector.shape_cast %268 : vector<1x1x32xf32> to vector<1x32xf32>
    %270 = vector.broadcast %269 : vector<1x32xf32> to vector<16x32xf32>
    %271 = arith.addf %267, %270 : vector<16x32xf32>
    %272 = arith.addf %271, %242 : vector<16x32xf32>
    %c1_117 = arith.constant 1 : index
    %c0_118 = arith.constant 0 : index
    %c0_119 = arith.constant 0 : index
    %273 = vector.load %arg15[%c1_117, %c0_118, %c0_119] : memref<2x1x32xf32, #tpu.memory_space<vmem>>, vector<1x1x32xf32>
    %274 = vector.shape_cast %273 : vector<1x1x32xf32> to vector<1x32xf32>
    %c1_120 = arith.constant 1 : index
    %c0_121 = arith.constant 0 : index
    %c0_122 = arith.constant 0 : index
    %275 = vector.load %arg16[%c1_120, %c0_121, %c0_122] : memref<2x1x32xf32, #tpu.memory_space<vmem>>, vector<1x1x32xf32>
    %276 = vector.shape_cast %275 : vector<1x1x32xf32> to vector<1x32xf32>
    %cst_123 = arith.constant dense<0.000000e+00> : vector<16xf32>
    %277 = vector.multi_reduction <add>, %272, %cst_123 [1] : vector<16x32xf32> to vector<16xf32>
    %278 = vector.shape_cast %277 : vector<16xf32> to vector<16x1xf32>
    %cst_124 = arith.constant 3.200000e+01 : f32
    %279 = vector.broadcast %cst_124 : f32 to vector<16x1xf32>
    %280 = arith.divf %278, %279 : vector<16x1xf32>
    %281 = vector.broadcast %280 : vector<16x1xf32> to vector<16x32xf32>
    %282 = arith.subf %272, %281 : vector<16x32xf32>
    %283 = vector.broadcast %280 : vector<16x1xf32> to vector<16x32xf32>
    %284 = arith.subf %272, %283 : vector<16x32xf32>
    %285 = arith.mulf %282, %284 : vector<16x32xf32>
    %cst_125 = arith.constant dense<0.000000e+00> : vector<16xf32>
    %286 = vector.multi_reduction <add>, %285, %cst_125 [1] : vector<16x32xf32> to vector<16xf32>
    %287 = vector.shape_cast %286 : vector<16xf32> to vector<16x1xf32>
    %cst_126 = arith.constant 3.200000e+01 : f32
    %288 = vector.broadcast %cst_126 : f32 to vector<16x1xf32>
    %289 = arith.divf %287, %288 : vector<16x1xf32>
    %290 = vector.broadcast %280 : vector<16x1xf32> to vector<16x32xf32>
    %291 = arith.subf %272, %290 : vector<16x32xf32>
    %cst_127 = arith.constant 9.99999996E-13 : f32
    %292 = vector.broadcast %cst_127 : f32 to vector<16x1xf32>
    %293 = arith.addf %289, %292 : vector<16x1xf32>
    %294 = math.rsqrt %293 : vector<16x1xf32>
    %295 = vector.broadcast %294 : vector<16x1xf32> to vector<16x32xf32>
    %296 = arith.mulf %291, %295 : vector<16x32xf32>
    %297 = vector.broadcast %274 : vector<1x32xf32> to vector<16x32xf32>
    %298 = arith.mulf %296, %297 : vector<16x32xf32>
    %299 = vector.broadcast %276 : vector<1x32xf32> to vector<16x32xf32>
    %300 = arith.addf %298, %299 : vector<16x32xf32>
    %301 = vector.shape_cast %300 : vector<16x32xf32> to vector<2x8x32xf32>
    %302 = vector.extract_strided_slice %301 {offsets = [0, 0, 0], sizes = [2, 1, 32], strides = [1, 1, 1]} : vector<2x8x32xf32> to vector<2x1x32xf32>
    %303 = vector.shape_cast %302 : vector<2x1x32xf32> to vector<2x32xf32>
    %304 = arith.truncf %303 : vector<2x32xf32> to vector<2x32xbf16>
    %c0_128 = arith.constant 0 : index
    %c0_129 = arith.constant 0 : index
    %305 = vector.load %arg17[%c0_128, %c0_129] : memref<32x32xbf16, #tpu.memory_space<vmem>>, vector<32x32xbf16>
    %cst_130 = arith.constant dense<0.000000e+00> : vector<2x32xf32>
    %306 = tpu.matmul %304, %305, %cst_130 {dimension_numbers = #tpu.dot_dimension_numbers<[1], [0], [0], [1], [0, 0, 1, 1], [], []>} : vector<2x32xbf16>, vector<32x32xbf16>, vector<2x32xf32> -> vector<2x32xf32>
    %c0_131 = arith.constant 0 : index
    %c0_132 = arith.constant 0 : index
    %307 = vector.load %arg18[%c0_131, %c0_132] : memref<1x32xf32, #tpu.memory_space<vmem>>, vector<1x32xf32>
    %308 = vector.broadcast %307 : vector<1x32xf32> to vector<2x32xf32>
    %309 = arith.addf %306, %308 : vector<2x32xf32>
    %310 = math.tanh %309 : vector<2x32xf32>
    %311 = arith.truncf %310 : vector<2x32xf32> to vector<2x32xbf16>
    %c0_133 = arith.constant 0 : index
    %c0_134 = arith.constant 0 : index
    %312 = vector.load %arg19[%c0_133, %c0_134] : memref<32x16xbf16, #tpu.memory_space<vmem>>, vector<32x16xbf16>
    %cst_135 = arith.constant dense<0.000000e+00> : vector<2x16xf32>
    %313 = tpu.matmul %311, %312, %cst_135 {dimension_numbers = #tpu.dot_dimension_numbers<[1], [0], [0], [1], [0, 0, 1, 1], [], []>} : vector<2x32xbf16>, vector<32x16xbf16>, vector<2x16xf32> -> vector<2x16xf32>
    %c0_136 = arith.constant 0 : index
    %c0_137 = arith.constant 0 : index
    %314 = vector.load %arg20[%c0_136, %c0_137] : memref<1x16xf32, #tpu.memory_space<vmem>>, vector<1x16xf32>
    %315 = vector.broadcast %314 : vector<1x16xf32> to vector<2x16xf32>
    %316 = arith.addf %313, %315 : vector<2x16xf32>
    %cst_138 = arith.constant 0.000000e+00 : f32
    %317 = vector.broadcast %cst_138 : f32 to vector<2x16xf32>
    %318 = arith.maximumf %316, %317 : vector<2x16xf32>
    %319 = arith.truncf %318 : vector<2x16xf32> to vector<2x16xbf16>
    %c0_139 = arith.constant 0 : index
    %c0_140 = arith.constant 0 : index
    %320 = vector.load %arg21[%c0_139, %c0_140] : memref<16x2xbf16, #tpu.memory_space<vmem>>, vector<16x2xbf16>
    %cst_141 = arith.constant dense<0.000000e+00> : vector<2x2xf32>
    %321 = tpu.matmul %319, %320, %cst_141 {dimension_numbers = #tpu.dot_dimension_numbers<[1], [0], [0], [1], [0, 0, 1, 1], [], []>} : vector<2x16xbf16>, vector<16x2xbf16>, vector<2x2xf32> -> vector<2x2xf32>
    %c0_142 = arith.constant 0 : index
    %c0_143 = arith.constant 0 : index
    %322 = vector.load %arg22[%c0_142, %c0_143] : memref<1x2xf32, #tpu.memory_space<vmem>>, vector<1x2xf32>
    %323 = vector.broadcast %322 : vector<1x2xf32> to vector<2x2xf32>
    %324 = arith.addf %321, %323 : vector<2x2xf32>
    %cst_144 = arith.constant dense<0xFF800000> : vector<2xf32>
    %325 = vector.multi_reduction <maximumf>, %324, %cst_144 [1] : vector<2x2xf32> to vector<2xf32>
    %326 = vector.shape_cast %325 : vector<2xf32> to vector<2x1xf32>
    %327 = vector.broadcast %326 : vector<2x1xf32> to vector<2x2xf32>
    %328 = arith.subf %324, %327 : vector<2x2xf32>
    %329 = math.exp %328 : vector<2x2xf32>
    %cst_145 = arith.constant dense<0.000000e+00> : vector<2xf32>
    %330 = vector.multi_reduction <add>, %329, %cst_145 [1] : vector<2x2xf32> to vector<2xf32>
    %331 = vector.shape_cast %330 : vector<2xf32> to vector<2x1xf32>
    %332 = math.log %331 : vector<2x1xf32>
    %333 = arith.addf %332, %326 : vector<2x1xf32>
    %334 = vector.broadcast %333 : vector<2x1xf32> to vector<2x2xf32>
    %335 = arith.subf %324, %334 : vector<2x2xf32>
    %c0_146 = arith.constant 0 : index
    %c0_147 = arith.constant 0 : index
    %336 = vector.load %arg23[%c0_146, %c0_147] : memref<2x2xf32, #tpu.memory_space<vmem>>, vector<2x2xf32>
    tpu.vector_store %arg23[%c0_146, %c0_147], %335 {strides = array<i32>} : memref<2x2xf32, #tpu.memory_space<vmem>>, vector<2x2xf32>,
    return
  }
  func.func @transform_0(%arg0: i32) -> (i32, i32, i32) {
    %c0_i32 = arith.constant 0 : i32
    %c0_i32_0 = arith.constant 0 : i32
    %c0_i32_1 = arith.constant 0 : i32
    %c0_i32_2 = arith.constant 0 : i32
    return %c0_i32, %c0_i32_0, %c0_i32_1 : i32, i32, i32
  }
  func.func @transform_1(%arg0: i32) -> (i32, i32, i32) {
    %c0_i32 = arith.constant 0 : i32
    %c0_i32_0 = arith.constant 0 : i32
    %c0_i32_1 = arith.constant 0 : i32
    %c0_i32_2 = arith.constant 0 : i32
    return %c0_i32, %c0_i32_0, %c0_i32_1 : i32, i32, i32
  }
  func.func @transform_2(%arg0: i32) -> (i32, i32) {
    %c0_i32 = arith.constant 0 : i32
    %c0_i32_0 = arith.constant 0 : i32
    %c0_i32_1 = arith.constant 0 : i32
    return %c0_i32, %c0_i32_0 : i32, i32
  }
  func.func @transform_3(%arg0: i32) -> (i32, i32) {
    %c0_i32 = arith.constant 0 : i32
    %c0_i32_0 = arith.constant 0 : i32
    %c0_i32_1 = arith.constant 0 : i32
    return %c0_i32, %c0_i32_0 : i32, i32
  }
  func.func @transform_4(%arg0: i32) -> (i32, i32, i32) {
    %c0_i32 = arith.constant 0 : i32
    %c0_i32_0 = arith.constant 0 : i32
    %c0_i32_1 = arith.constant 0 : i32
    %c0_i32_2 = arith.constant 0 : i32
    return %c0_i32, %c0_i32_0, %c0_i32_1 : i32, i32, i32
  }
  func.func @transform_5(%arg0: i32) -> (i32, i32, i32) {
    %c0_i32 = arith.constant 0 : i32
    %c0_i32_0 = arith.constant 0 : i32
    %c0_i32_1 = arith.constant 0 : i32
    %c0_i32_2 = arith.constant 0 : i32
    return %c0_i32, %c0_i32_0, %c0_i32_1 : i32, i32, i32
  }
  func.func @transform_6(%arg0: i32) -> (i32, i32, i32) {
    %c0_i32 = arith.constant 0 : i32
    %c0_i32_0 = arith.constant 0 : i32
    %c0_i32_1 = arith.constant 0 : i32
    %c0_i32_2 = arith.constant 0 : i32
    return %c0_i32, %c0_i32_0, %c0_i32_1 : i32, i32, i32
  }
  func.func @transform_7(%arg0: i32) -> (i32, i32, i32) {
    %c0_i32 = arith.constant 0 : i32
    %c0_i32_0 = arith.constant 0 : i32
    %c0_i32_1 = arith.constant 0 : i32
    %c0_i32_2 = arith.constant 0 : i32
    return %c0_i32, %c0_i32_0, %c0_i32_1 : i32, i32, i32
  }
  func.func @transform_8(%arg0: i32) -> (i32, i32, i32) {
    %c0_i32 = arith.constant 0 : i32
    %c0_i32_0 = arith.constant 0 : i32
    %c0_i32_1 = arith.constant 0 : i32
    %c0_i32_2 = arith.constant 0 : i32
    return %c0_i32, %c0_i32_0, %c0_i32_1 : i32, i32, i32
  }
  func.func @transform_9(%arg0: i32) -> (i32, i32, i32) {
    %c0_i32 = arith.constant 0 : i32
    %c0_i32_0 = arith.constant 0 : i32
    %c0_i32_1 = arith.constant 0 : i32
    %c0_i32_2 = arith.constant 0 : i32
    return %c0_i32, %c0_i32_0, %c0_i32_1 : i32, i32, i32
  }
  func.func @transform_10(%arg0: i32) -> (i32, i32, i32) {
    %c0_i32 = arith.constant 0 : i32
    %c0_i32_0 = arith.constant 0 : i32
    %c0_i32_1 = arith.constant 0 : i32
    %c0_i32_2 = arith.constant 0 : i32
    return %c0_i32, %c0_i32_0, %c0_i32_1 : i32, i32, i32
  }
  func.func @transform_11(%arg0: i32) -> (i32, i32, i32) {
    %c0_i32 = arith.constant 0 : i32
    %c0_i32_0 = arith.constant 0 : i32
    %c0_i32_1 = arith.constant 0 : i32
    %c0_i32_2 = arith.constant 0 : i32
    return %c0_i32, %c0_i32_0, %c0_i32_1 : i32, i32, i32
  }
  func.func @transform_12(%arg0: i32) -> (i32, i32, i32) {
    %c0_i32 = arith.constant 0 : i32
    %c0_i32_0 = arith.constant 0 : i32
    %c0_i32_1 = arith.constant 0 : i32
    %c0_i32_2 = arith.constant 0 : i32
    return %c0_i32, %c0_i32_0, %c0_i32_1 : i32, i32, i32
  }
  func.func @transform_13(%arg0: i32) -> (i32, i32, i32) {
    %c0_i32 = arith.constant 0 : i32
    %c0_i32_0 = arith.constant 0 : i32
    %c0_i32_1 = arith.constant 0 : i32
    %c0_i32_2 = arith.constant 0 : i32
    return %c0_i32, %c0_i32_0, %c0_i32_1 : i32, i32, i32
  }
  func.func @transform_14(%arg0: i32) -> (i32, i32, i32) {
    %c0_i32 = arith.constant 0 : i32
    %c0_i32_0 = arith.constant 0 : i32
    %c0_i32_1 = arith.constant 0 : i32
    %c0_i32_2 = arith.constant 0 : i32
    return %c0_i32, %c0_i32_0, %c0_i32_1 : i32, i32, i32
  }
  func.func @transform_15(%arg0: i32) -> (i32, i32, i32) {
    %c0_i32 = arith.constant 0 : i32
    %c0_i32_0 = arith.constant 0 : i32
    %c0_i32_1 = arith.constant 0 : i32
    %c0_i32_2 = arith.constant 0 : i32
    return %c0_i32, %c0_i32_0, %c0_i32_1 : i32, i32, i32
  }
  func.func @transform_16(%arg0: i32) -> (i32, i32) {
    %c0_i32 = arith.constant 0 : i32
    %c0_i32_0 = arith.constant 0 : i32
    %c0_i32_1 = arith.constant 0 : i32
    return %c0_i32, %c0_i32_0 : i32, i32
  }
  func.func @transform_17(%arg0: i32) -> (i32, i32) {
    %c0_i32 = arith.constant 0 : i32
    %c0_i32_0 = arith.constant 0 : i32
    %c0_i32_1 = arith.constant 0 : i32
    return %c0_i32, %c0_i32_0 : i32, i32
  }
  func.func @transform_18(%arg0: i32) -> (i32, i32) {
    %c0_i32 = arith.constant 0 : i32
    %c0_i32_0 = arith.constant 0 : i32
    %c0_i32_1 = arith.constant 0 : i32
    return %c0_i32, %c0_i32_0 : i32, i32
  }
  func.func @transform_19(%arg0: i32) -> (i32, i32) {
    %c0_i32 = arith.constant 0 : i32
    %c0_i32_0 = arith.constant 0 : i32
    %c0_i32_1 = arith.constant 0 : i32
    return %c0_i32, %c0_i32_0 : i32, i32
  }
  func.func @transform_20(%arg0: i32) -> (i32, i32) {
    %c0_i32 = arith.constant 0 : i32
    %c0_i32_0 = arith.constant 0 : i32
    %c0_i32_1 = arith.constant 0 : i32
    return %c0_i32, %c0_i32_0 : i32, i32
  }
  func.func @transform_21(%arg0: i32) -> (i32, i32) {
    %c0_i32 = arith.constant 0 : i32
    %c0_i32_0 = arith.constant 0 : i32
    %c0_i32_1 = arith.constant 0 : i32
    return %c0_i32, %c0_i32_0 : i32, i32
  }
  func.func @transform_22(%arg0: i32) -> (i32, i32) {
    %c0_i32 = arith.constant 0 : i32
    %c0_i32_0 = arith.constant 0 : i32
    %c0_i32_1 = arith.constant 0 : i32
    return %c0_i32, %c0_i32_0 : i32, i32
  }
}

</mosaic_0001>

<llo_original>
// kernel: bert_2fc_forward.1
$region0: #{bert_2fc_forward.1}
  #allocation0 [shape = 'u32[]', space=smem, size = 0x4, offset = 0x4, fixed_abs, tag = 'smem constant byte address 0x4 - core index']
  #allocation1 [shape = 'u32[144,128]{1,0:T(1,128)}', space=vmem, size = 0x12000, scoped, tag = 'internal scratch']
  %s0 = inlined_call_operand.vmem [shape: f32[2,8,32], index: 0, kind: input, shape index: {}]
  %s1 = inlined_call_operand.vmem [shape: f32[4,1,8], index: 1, kind: input, shape index: {}]
  %s2 = inlined_call_operand.vmem [shape: f32[1,32], index: 2, kind: input, shape index: {}]
  %s3 = inlined_call_operand.vmem [shape: f32[1,32], index: 3, kind: input, shape index: {}]
  %s4 = inlined_call_operand.vmem [shape: bf16[2,32,96], index: 4, kind: input, shape index: {}]
  %s5 = inlined_call_operand.vmem [shape: f32[2,1,96], index: 5, kind: input, shape index: {}]
  %s6 = inlined_call_operand.vmem [shape: bf16[2,32,32], index: 6, kind: input, shape index: {}]
  %s7 = inlined_call_operand.vmem [shape: f32[2,1,32], index: 7, kind: input, shape index: {}]
  %s8 = inlined_call_operand.vmem [shape: f32[2,1,32], index: 8, kind: input, shape index: {}]
  %s9 = inlined_call_operand.vmem [shape: f32[2,1,32], index: 9, kind: input, shape index: {}]
  %s10 = inlined_call_operand.vmem [shape: bf16[2,32,64], index: 10, kind: input, shape index: {}]
  %s11 = inlined_call_operand.vmem [shape: f32[2,1,64], index: 11, kind: input, shape index: {}]
  %s12 = inlined_call_operand.vmem [shape: bf16[2,64,32], index: 12, kind: input, shape index: {}]
  %s13 = inlined_call_operand.vmem [shape: f32[2,1,32], index: 13, kind: input, shape index: {}]
  %s14 = inlined_call_operand.vmem [shape: f32[2,1,32], index: 14, kind: input, shape index: {}]
  %s15 = inlined_call_operand.vmem [shape: f32[2,1,32], index: 15, kind: input, shape index: {}]
  %s16 = inlined_call_operand.vmem [shape: bf16[32,32], index: 16, kind: input, shape index: {}]
  %s17 = inlined_call_operand.vmem [shape: f32[1,32], index: 17, kind: input, shape index: {}]
  %s18 = inlined_call_operand.vmem [shape: bf16[32,16], index: 18, kind: input, shape index: {}]
  %s19 = inlined_call_operand.vmem [shape: f32[1,16], index: 19, kind: input, shape index: {}]
  %s20 = inlined_call_operand.vmem [shape: bf16[16,2], index: 20, kind: input, shape index: {}]
  %s21 = inlined_call_operand.vmem [shape: f32[1,2], index: 21, kind: input, shape index: {}]
  %s22 = inlined_call_operand.hbm [shape: f32[2,2], index: 22, kind: output, shape index: {}]
  %s23 = sld [smem:[#allocation0]]
  $region98: #{bert_2fc_forward.1} parent=0
    _
  %s25 = ssub.s32 1, %s23
  %s26 = scalar_select 0, %s25, %s23
  $region1: #{bert_2fc_forward.1} parent=0
    #allocation2 [shape = 'u8[1024]{0}', space=vmem, size = 0x400, scoped, tag = 'output window, operand 0, single buffered']
    #allocation3 [shape = 's32[1]{0}', space=sflag, size = 0x4, scoped, tag = 'scoped memory for bert_2fc_forward.1']
    %27 = vsyncpa [#allocation3], 0
    // Predicated region
    $region2: #{bert_2fc_forward.1} parent=1 // pred_check
      _
    $region3: #{bert_2fc_forward.1} parent=1 // pred_check_branch
      %29 = sbr.rel (0) target = $region5
    $region4: #{bert_2fc_forward.1} parent=1 // pred_region
      _
    $region5: #{bert_2fc_forward.1} parent=1 // pred_fallthru
      _
    // Predicated region
    $region6: #{bert_2fc_forward.1} parent=1 // pred_check
      _
    $region7: #{bert_2fc_forward.1} parent=1 // pred_check_branch
      %31 = sbr.rel (0) target = $region9
    $region8: #{bert_2fc_forward.1} parent=1 // pred_region
      _
    $region9: #{bert_2fc_forward.1} parent=1 // pred_fallthru
      _
    // Predicated region
    $region10: #{bert_2fc_forward.1} parent=1 // pred_check
      _
    $region11: #{bert_2fc_forward.1} parent=1 // pred_check_branch
      %33 = sbr.rel (0) target = $region13
    $region12: #{bert_2fc_forward.1} parent=1 // pred_region
      _
    $region13: #{bert_2fc_forward.1} parent=1 // pred_fallthru
      _
    // Predicated region
    $region14: #{bert_2fc_forward.1} parent=1 // pred_check
      _
    $region15: #{bert_2fc_forward.1} parent=1 // pred_check_branch
      %35 = sbr.rel (0) target = $region17
    $region16: #{bert_2fc_forward.1} parent=1 // pred_region
      _
    $region17: #{bert_2fc_forward.1} parent=1 // pred_fallthru
      _
    // Predicated region
    $region18: #{bert_2fc_forward.1} parent=1 // pred_check
      _
    $region19: #{bert_2fc_forward.1} parent=1 // pred_check_branch
      %37 = sbr.rel (0) target = $region21
    $region20: #{bert_2fc_forward.1} parent=1 // pred_region
      _
    $region21: #{bert_2fc_forward.1} parent=1 // pred_fallthru
      _
    // Predicated region
    $region22: #{bert_2fc_forward.1} parent=1 // pred_check
      _
    $region23: #{bert_2fc_forward.1} parent=1 // pred_check_branch
      %39 = sbr.rel (0) target = $region25
    $region24: #{bert_2fc_forward.1} parent=1 // pred_region
      _
    $region25: #{bert_2fc_forward.1} parent=1 // pred_fallthru
      _
    // Predicated region
    $region26: #{bert_2fc_forward.1} parent=1 // pred_check
      _
    $region27: #{bert_2fc_forward.1} parent=1 // pred_check_branch
      %41 = sbr.rel (0) target = $region29
    $region28: #{bert_2fc_forward.1} parent=1 // pred_region
      _
    $region29: #{bert_2fc_forward.1} parent=1 // pred_fallthru
      _
    // Predicated region
    $region30: #{bert_2fc_forward.1} parent=1 // pred_check
      _
    $region31: #{bert_2fc_forward.1} parent=1 // pred_check_branch
      %43 = sbr.rel (0) target = $region33
    $region32: #{bert_2fc_forward.1} parent=1 // pred_region
      _
    $region33: #{bert_2fc_forward.1} parent=1 // pred_fallthru
      _
    // Predicated region
    $region34: #{bert_2fc_forward.1} parent=1 // pred_check
      _
    $region35: #{bert_2fc_forward.1} parent=1 // pred_check_branch
      %45 = sbr.rel (0) target = $region37
    $region36: #{bert_2fc_forward.1} parent=1 // pred_region
      _
    $region37: #{bert_2fc_forward.1} parent=1 // pred_fallthru
      _
    // Predicated region
    $region38: #{bert_2fc_forward.1} parent=1 // pred_check
      _
    $region39: #{bert_2fc_forward.1} parent=1 // pred_check_branch
      %47 = sbr.rel (0) target = $region41
    $region40: #{bert_2fc_forward.1} parent=1 // pred_region
      _
    $region41: #{bert_2fc_forward.1} parent=1 // pred_fallthru
      _
    // Predicated region
    $region42: #{bert_2fc_forward.1} parent=1 // pred_check
      _
    $region43: #{bert_2fc_forward.1} parent=1 // pred_check_branch
      %49 = sbr.rel (0) target = $region45
    $region44: #{bert_2fc_forward.1} parent=1 // pred_region
      _
    $region45: #{bert_2fc_forward.1} parent=1 // pred_fallthru
      _
    // Predicated region
    $region46: #{bert_2fc_forward.1} parent=1 // pred_check
      _
    $region47: #{bert_2fc_forward.1} parent=1 // pred_check_branch
      %51 = sbr.rel (0) target = $region49
    $region48: #{bert_2fc_forward.1} parent=1 // pred_region
      _
    $region49: #{bert_2fc_forward.1} parent=1 // pred_fallthru
      _
    // Predicated region
    $region50: #{bert_2fc_forward.1} parent=1 // pred_check
      _
    $region51: #{bert_2fc_forward.1} parent=1 // pred_check_branch
      %53 = sbr.rel (0) target = $region53
    $region52: #{bert_2fc_forward.1} parent=1 // pred_region
      _
    $region53: #{bert_2fc_forward.1} parent=1 // pred_fallthru
      _
    // Predicated region
    $region54: #{bert_2fc_forward.1} parent=1 // pred_check
      _
    $region55: #{bert_2fc_forward.1} parent=1 // pred_check_branch
      %55 = sbr.rel (0) target = $region57
    $region56: #{bert_2fc_forward.1} parent=1 // pred_region
      _
    $region57: #{bert_2fc_forward.1} parent=1 // pred_fallthru
      _
    // Predicated region
    $region58: #{bert_2fc_forward.1} parent=1 // pred_check
      _
    $region59: #{bert_2fc_forward.1} parent=1 // pred_check_branch
      %57 = sbr.rel (0) target = $region61
    $region60: #{bert_2fc_forward.1} parent=1 // pred_region
      _
    $region61: #{bert_2fc_forward.1} parent=1 // pred_fallthru
      _
    // Predicated region
    $region62: #{bert_2fc_forward.1} parent=1 // pred_check
      _
    $region63: #{bert_2fc_forward.1} parent=1 // pred_check_branch
      %59 = sbr.rel (0) target = $region65
    $region64: #{bert_2fc_forward.1} parent=1 // pred_region
      _
    $region65: #{bert_2fc_forward.1} parent=1 // pred_fallthru
      _
    // Predicated region
    $region66: #{bert_2fc_forward.1} parent=1 // pred_check
      _
    $region67: #{bert_2fc_forward.1} parent=1 // pred_check_branch
      %61 = sbr.rel (0) target = $region69
    $region68: #{bert_2fc_forward.1} parent=1 // pred_region
      _
    $region69: #{bert_2fc_forward.1} parent=1 // pred_fallthru
      _
    // Predicated region
    $region70: #{bert_2fc_forward.1} parent=1 // pred_check
      _
    $region71: #{bert_2fc_forward.1} parent=1 // pred_check_branch
      %63 = sbr.rel (0) target = $region73
    $region72: #{bert_2fc_forward.1} parent=1 // pred_region
      _
    $region73: #{bert_2fc_forward.1} parent=1 // pred_fallthru
      _
    // Predicated region
    $region74: #{bert_2fc_forward.1} parent=1 // pred_check
      _
    $region75: #{bert_2fc_forward.1} parent=1 // pred_check_branch
      %65 = sbr.rel (0) target = $region77
    $region76: #{bert_2fc_forward.1} parent=1 // pred_region
      _
    $region77: #{bert_2fc_forward.1} parent=1 // pred_fallthru
      _
    // Predicated region
    $region78: #{bert_2fc_forward.1} parent=1 // pred_check
      _
    $region79: #{bert_2fc_forward.1} parent=1 // pred_check_branch
      %67 = sbr.rel (0) target = $region81
    $region80: #{bert_2fc_forward.1} parent=1 // pred_region
      _
    $region81: #{bert_2fc_forward.1} parent=1 // pred_fallthru
      _
    // Predicated region
    $region82: #{bert_2fc_forward.1} parent=1 // pred_check
      _
    $region83: #{bert_2fc_forward.1} parent=1 // pred_check_branch
      %69 = sbr.rel (0) target = $region85
    $region84: #{bert_2fc_forward.1} parent=1 // pred_region
      _
    $region85: #{bert_2fc_forward.1} parent=1 // pred_fallthru
      _
    // Predicated region
    $region86: #{bert_2fc_forward.1} parent=1 // pred_check
      _
    $region87: #{bert_2fc_forward.1} parent=1 // pred_check_branch
      %71 = sbr.rel (0) target = $region89
    $region88: #{bert_2fc_forward.1} parent=1 // pred_region
      _
    $region89: #{bert_2fc_forward.1} parent=1 // pred_fallthru
      _
    %v73 = vld [vmem:[%s0] sm:$0xff]
    %v74 = vld [vmem:[%s0 + $0x8] sm:$0xff]
    %v75 = vld [vmem:[%s2] sm:$0x1]
    %v76 = vld [vmem:[%s3] sm:$0x1]
    %vm77 = vcmask 261120
    %v78 = vsel %vm77, %v73, 0.0
    %79 = vadd.xlane.f32.xlu0 %v78
    %v80 = vpop.xlane.xlu0 %79
    %v81 = vsel %vm77, %v74, 0.0
    %82 = vadd.xlane.f32.xlu0 %v81
    %v83 = vpop.xlane.xlu0 %82
    %v84 = vrcp.pop 32.0
    %v85 = vmul.f32 %v80, %v84
    %v86 = vmul.f32 %v83, %v84
    %v87 = vsub.f32 %v73, %v85
    %v88 = vsub.f32 %v74, %v86
    %v89 = vmul.f32 %v87, %v87
    %v90 = vmul.f32 %v88, %v88
    %v91 = vsel %vm77, %v89, 0.0
    %92 = vadd.xlane.f32.xlu0 %v91
    %v93 = vpop.xlane.xlu0 %92
    %v94 = vsel %vm77, %v90, 0.0
    %95 = vadd.xlane.f32.xlu0 %v94
    %v96 = vpop.xlane.xlu0 %95
    %v97 = vmul.f32 %v93, %v84
    %v98 = vmul.f32 %v96, %v84
    %v99 = vadd.f32 %v97, 1e-12
    %v100 = vadd.f32 %v98, 1e-12
    %v101 = vrsqrt.pop %v99
    %v102 = vrsqrt.pop %v100
    %v103 = vmul.f32 %v87, %v101
    %v104 = vmul.f32 %v88, %v102
    %v106 = vlaneseq
    %v107 = vshrl.u32 %v106, 7
    %v108 = vsub.s32 0, %v107
    %v109 = vrot.slane %v75, %v108
    %v111 = vmul.f32 %v103, %v109
    %v112 = vmul.f32 %v104, %v109
    %v114 = vlaneseq
    %v115 = vshrl.u32 %v114, 7
    %v116 = vsub.s32 0, %v115
    %v117 = vrot.slane %v76, %v116
    %v119 = vadd.f32 %v111, %v117
    %v120 = vadd.f32 %v112, %v117
    %v121 = vld [vmem:[%s1] sm:$0x1]
    %v122 = vld [vmem:[%s1 + $0x1] sm:$0x1]
    %v123 = vld [vmem:[%s1 + $0x2] sm:$0x1]
    %v124 = vld [vmem:[%s1 + $0x3] sm:$0x1]
    %v125 = vpack.c.bf16 %v120, %v119
    %v126 = vld [vmem:[%s4] sm:$0xf]
    %v127 = vld [vmem:[%s4 + $0x4] sm:$0xf]
    %v128 = vld [vmem:[%s4 + $0x8] sm:$0xf]
    %v129 = vld [vmem:[%s4 + $0xc] sm:$0xf]
    %v130 = vld [vmem:[%s5] sm:$0x1]
    %v132 = vlaneseq
    %v133 = vshrl.u32 %v132, 7
    %v134 = vsub.s32 0, %v133
    %v135 = vrot.slane %v130, %v134
    %v141 = vunpack.c.l.b16 %v126
    %v142 = vunpack.c.l.b16 %v127
    %v143 = vunpack.c.l.b16 %v128
    %v144 = vunpack.c.l.b16 %v129
    %v145 = vpack.c.b16 %v142, %v141
    %v146 = vpack.c.b16 %v144, %v143
    %v150 = vsel %vm77, %v125, 0
    %152 = vmatprep.subr.bf16.mxu0 0
    %153 = vmatpush1.bf16.msra.mxu0 0
    %154 = vmatprep.subr.bf16.mxu0 0
    %155 = vmatpush1.bf16.msra.mxu0 0
    %156 = vmatprep.subr.bf16.mxu0 0
    %157 = vmatpush1.bf16.msra.mxu0 0
    %158 = vmatprep.subr.bf16.mxu0 0
    %159 = vmatpush1.bf16.msra.mxu0 0
    %160 = vmatprep.subr.bf16.mxu0 0
    %161 = vmatpush1.bf16.msra.mxu0 0
    %162 = vmatprep.subr.bf16.mxu0 0
    %163 = vmatpush1.bf16.msra.mxu0 0
    %164 = vmatprep.subr.bf16.mxu0 0
    %165 = vmatpush1.bf16.msra.mxu0 %v146
    %166 = vmatprep.subr.bf16.mxu0 0
    %167 = vmatpush1.bf16.msra.mxu0 %v145
    %168 = vmatprep.subr.bf16.mxu0 0
    %169 = vmatpush2.bf16.msra.mxu0 0
    %170 = vmatprep.subr.bf16.mxu0 0
    %171 = vmatpush2.bf16.msra.mxu0 0
    %172 = vmatprep.subr.bf16.mxu0 0
    %173 = vmatpush2.bf16.msra.mxu0 0
    %174 = vmatprep.subr.bf16.mxu0 0
    %175 = vmatpush2.bf16.msra.mxu0 0
    %176 = vmatprep.subr.bf16.mxu0 0
    %177 = vmatpush2.bf16.msra.mxu0 0
    %178 = vmatprep.subr.bf16.mxu0 0
    %179 = vmatpush2.bf16.msra.mxu0 0
    %180 = vmatprep.subr.bf16.mxu0 0
    %181 = vmatpush2.bf16.msra.mxu0 0
    %182 = vmatprep.subr.bf16.mxu0 0
    %183 = vmatpush2.bf16.msra.mxu0 0
    %184 = vmatprep.mubr.bf16.mxu0 0
    %185 = vmatmul.mubr.bf16.gmra.mxu0 %v150
    %v186 = vpop.f32.mrf.mxu0
    %v187 = vadd.f32 %v135, %v186
    %v188 = vpop.f32.mrf.mxu0
    %v189 = vpop.f32.mrf.mxu0
    %v190 = vadd.f32 %v135, %v189
    %v191 = vpop.f32.mrf.mxu0
    %192 = vdwg.mxu0
    %195 = vrot.lane.b32.xlu0 %v187, 112
    %v196 = vpop.permute.xlu0 %195
    %197 = vrot.lane.b32.xlu0 %v190, 112
    %v198 = vpop.permute.xlu0 %197
    %v201 = vcombine.high %v187, 0.0
    %v203 = vunpack.c.l.s4 1983009808
    %v204 = vunpack.c.0.s8 %v203
    %v205 = vlaneseq
    %v206 = vshrl.u32 %v205, 7
    %v207 = vsub.s32 %v204, %v206
    %v208 = vrot.slane %v187, %v207
    %v210 = vunpack.c.l.s4 1983009808
    %v211 = vunpack.c.0.s8 %v210
    %v212 = vlaneseq
    %v213 = vshrl.u32 %v212, 7
    %v214 = vsub.s32 %v211, %v213
    %v215 = vrot.slane %v201, %v214
    %v216 = vcombine.high %v196, 0.0
    %v218 = vunpack.c.l.s4 1983009808
    %v219 = vunpack.c.0.s8 %v218
    %v220 = vlaneseq
    %v221 = vshrl.u32 %v220, 7
    %v222 = vsub.s32 %v219, %v221
    %v223 = vrot.slane %v196, %v222
    %v225 = vunpack.c.l.s4 1983009808
    %v226 = vunpack.c.0.s8 %v225
    %v227 = vlaneseq
    %v228 = vshrl.u32 %v227, 7
    %v229 = vsub.s32 %v226, %v228
    %v230 = vrot.slane %v216, %v229
    %v231 = vcombine.low %v208, %v223
    %v232 = vcombine.high %v208, %v223
    %v234 = vunpack.c.l.s4 1934713408
    %v235 = vunpack.c.0.s8 %v234
    %v236 = vlaneseq
    %v237 = vshrl.u32 %v236, 7
    %v238 = vsub.s32 %v235, %v237
    %v239 = vrot.slane %v231, %v238
    %v241 = vunpack.c.l.s4 1934713408
    %v242 = vunpack.c.0.s8 %v241
    %v243 = vlaneseq
    %v244 = vshrl.u32 %v243, 7
    %v245 = vsub.s32 %v242, %v244
    %v246 = vrot.slane %v232, %v245
    %v247 = vcombine.low %v215, %v230
    %v248 = vcombine.high %v215, %v230
    %v250 = vunpack.c.l.s4 1934713408
    %v251 = vunpack.c.0.s8 %v250
    %v252 = vlaneseq
    %v253 = vshrl.u32 %v252, 7
    %v254 = vsub.s32 %v251, %v253
    %v255 = vrot.slane %v247, %v254
    %v257 = vunpack.c.l.s4 1934713408
    %v258 = vunpack.c.0.s8 %v257
    %v259 = vlaneseq
    %v260 = vshrl.u32 %v259, 7
    %v261 = vsub.s32 %v258, %v260
    %v262 = vrot.slane %v248, %v261
    %v263 = vcombine.high %v239, 0.0
    %v264 = vcombine.high %v246, 0.0
    %v265 = vcombine.high %v255, 0.0
    %v266 = vcombine.high %v262, 0.0
    %v267 = vcombine.high %v190, 0.0
    %v269 = vunpack.c.l.s4 1983009808
    %v270 = vunpack.c.0.s8 %v269
    %v271 = vlaneseq
    %v272 = vshrl.u32 %v271, 7
    %v273 = vsub.s32 %v270, %v272
    %v274 = vrot.slane %v190, %v273
    %v276 = vunpack.c.l.s4 1983009808
    %v277 = vunpack.c.0.s8 %v276
    %v278 = vlaneseq
    %v279 = vshrl.u32 %v278, 7
    %v280 = vsub.s32 %v277, %v279
    %v281 = vrot.slane %v267, %v280
    %v282 = vcombine.high %v198, 0.0
    %v284 = vunpack.c.l.s4 1983009808
    %v285 = vunpack.c.0.s8 %v284
    %v286 = vlaneseq
    %v287 = vshrl.u32 %v286, 7
    %v288 = vsub.s32 %v285, %v287
    %v289 = vrot.slane %v198, %v288
    %v291 = vunpack.c.l.s4 1983009808
    %v292 = vunpack.c.0.s8 %v291
    %v293 = vlaneseq
    %v294 = vshrl.u32 %v293, 7
    %v295 = vsub.s32 %v292, %v294
    %v296 = vrot.slane %v282, %v295
    %v297 = vcombine.low %v274, %v289
    %v298 = vcombine.high %v274, %v289
    %v300 = vunpack.c.l.s4 1934713408
    %v301 = vunpack.c.0.s8 %v300
    %v302 = vlaneseq
    %v303 = vshrl.u32 %v302, 7
    %v304 = vsub.s32 %v301, %v303
    %v305 = vrot.slane %v297, %v304
    %v307 = vunpack.c.l.s4 1934713408
    %v308 = vunpack.c.0.s8 %v307
    %v309 = vlaneseq
    %v310 = vshrl.u32 %v309, 7
    %v311 = vsub.s32 %v308, %v310
    %v312 = vrot.slane %v298, %v311
    %v313 = vcombine.low %v281, %v296
    %v314 = vcombine.high %v281, %v296
    %v316 = vunpack.c.l.s4 1934713408
    %v317 = vunpack.c.0.s8 %v316
    %v318 = vlaneseq
    %v319 = vshrl.u32 %v318, 7
    %v320 = vsub.s32 %v317, %v319
    %v321 = vrot.slane %v313, %v320
    %v323 = vunpack.c.l.s4 1934713408
    %v324 = vunpack.c.0.s8 %v323
    %v325 = vlaneseq
    %v326 = vshrl.u32 %v325, 7
    %v327 = vsub.s32 %v324, %v326
    %v328 = vrot.slane %v314, %v327
    %v329 = vcombine.high %v305, 0.0
    %v330 = vcombine.high %v312, 0.0
    %v331 = vcombine.high %v321, 0.0
    %v332 = vcombine.high %v328, 0.0
    %v333 = vcombine.low %v239, %v246
    %v335 = vunpack.c.l.s4 1983009808
    %v336 = vunpack.c.0.s8 %v335
    %v337 = vlaneseq
    %v338 = vshrl.u32 %v337, 7
    %v339 = vsub.s32 %v336, %v338
    %v340 = vrot.slane %v333, %v339
    %v341 = vcombine.low %v263, %v264
    %v343 = vunpack.c.l.s4 1983009808
    %v344 = vunpack.c.0.s8 %v343
    %v345 = vlaneseq
    %v346 = vshrl.u32 %v345, 7
    %v347 = vsub.s32 %v344, %v346
    %v348 = vrot.slane %v341, %v347
    %v349 = vcombine.low %v255, %v262
    %v351 = vunpack.c.l.s4 1983009808
    %v352 = vunpack.c.0.s8 %v351
    %v353 = vlaneseq
    %v354 = vshrl.u32 %v353, 7
    %v355 = vsub.s32 %v352, %v354
    %v356 = vrot.slane %v349, %v355
    %v357 = vcombine.low %v265, %v266
    %v359 = vunpack.c.l.s4 1983009808
    %v360 = vunpack.c.0.s8 %v359
    %v361 = vlaneseq
    %v362 = vshrl.u32 %v361, 7
    %v363 = vsub.s32 %v360, %v362
    %v364 = vrot.slane %v357, %v363
    %v365 = vcombine.low %v340, %v348
    %v367 = vunpack.c.l.s4 1934713408
    %v368 = vunpack.c.0.s8 %v367
    %v369 = vlaneseq
    %v370 = vshrl.u32 %v369, 7
    %v371 = vsub.s32 %v368, %v370
    %v372 = vrot.slane %v365, %v371
    %v373 = vcombine.low %v356, %v364
    %v375 = vunpack.c.l.s4 1934713408
    %v376 = vunpack.c.0.s8 %v375
    %v377 = vlaneseq
    %v378 = vshrl.u32 %v377, 7
    %v379 = vsub.s32 %v376, %v378
    %v380 = vrot.slane %v373, %v379
    %v381 = vcombine.low %v372, %v380
    %v382 = vcombine.high %v372, %v380
    %v383 = vcombine.low %v305, %v312
    %v385 = vunpack.c.l.s4 1983009808
    %v386 = vunpack.c.0.s8 %v385
    %v387 = vlaneseq
    %v388 = vshrl.u32 %v387, 7
    %v389 = vsub.s32 %v386, %v388
    %v390 = vrot.slane %v383, %v389
    %v391 = vcombine.low %v329, %v330
    %v393 = vunpack.c.l.s4 1983009808
    %v394 = vunpack.c.0.s8 %v393
    %v395 = vlaneseq
    %v396 = vshrl.u32 %v395, 7
    %v397 = vsub.s32 %v394, %v396
    %v398 = vrot.slane %v391, %v397
    %v399 = vcombine.low %v321, %v328
    %v401 = vunpack.c.l.s4 1983009808
    %v402 = vunpack.c.0.s8 %v401
    %v403 = vlaneseq
    %v404 = vshrl.u32 %v403, 7
    %v405 = vsub.s32 %v402, %v404
    %v406 = vrot.slane %v399, %v405
    %v407 = vcombine.low %v331, %v332
    %v409 = vunpack.c.l.s4 1983009808
    %v410 = vunpack.c.0.s8 %v409
    %v411 = vlaneseq
    %v412 = vshrl.u32 %v411, 7
    %v413 = vsub.s32 %v410, %v412
    %v414 = vrot.slane %v407, %v413
    %v415 = vcombine.low %v390, %v398
    %v417 = vunpack.c.l.s4 1934713408
    %v418 = vunpack.c.0.s8 %v417
    %v419 = vlaneseq
    %v420 = vshrl.u32 %v419, 7
    %v421 = vsub.s32 %v418, %v420
    %v422 = vrot.slane %v415, %v421
    %v423 = vcombine.low %v406, %v414
    %v425 = vunpack.c.l.s4 1934713408
    %v426 = vunpack.c.0.s8 %v425
    %v427 = vlaneseq
    %v428 = vshrl.u32 %v427, 7
    %v429 = vsub.s32 %v426, %v428
    %v430 = vrot.slane %v423, %v429
    %v431 = vcombine.low %v422, %v430
    %v432 = vcombine.high %v422, %v430
    %v433 = vpack.c.bf16 %v381, %v381
    %v434 = vpack.c.bf16 %v382, %v382
    %v435 = vpack.c.bf16 %v431, %v431
    %v436 = vpack.c.bf16 %v432, %v432
    %437 = vrot.lane.b32.xlu0 %v187, 96
    %v438 = vpop.permute.xlu0 %437
    %439 = vrot.lane.b32.xlu0 %v190, 96
    %v440 = vpop.permute.xlu0 %439
    %441 = vrot.lane.b32.xlu0 %v196, 96
    %v442 = vpop.permute.xlu0 %441
    %443 = vrot.lane.b32.xlu0 %v198, 96
    %v444 = vpop.permute.xlu0 %443
    %v449 = vcombine.high %v438, 0.0
    %v451 = vunpack.c.l.s4 1983009808
    %v452 = vunpack.c.0.s8 %v451
    %v453 = vlaneseq
    %v454 = vshrl.u32 %v453, 7
    %v455 = vsub.s32 %v452, %v454
    %v456 = vrot.slane %v438, %v455
    %v458 = vunpack.c.l.s4 1983009808
    %v459 = vunpack.c.0.s8 %v458
    %v460 = vlaneseq
    %v461 = vshrl.u32 %v460, 7
    %v462 = vsub.s32 %v459, %v461
    %v463 = vrot.slane %v449, %v462
    %v464 = vcombine.high %v442, 0.0
    %v466 = vunpack.c.l.s4 1983009808
    %v467 = vunpack.c.0.s8 %v466
    %v468 = vlaneseq
    %v469 = vshrl.u32 %v468, 7
    %v470 = vsub.s32 %v467, %v469
    %v471 = vrot.slane %v442, %v470
    %v473 = vunpack.c.l.s4 1983009808
    %v474 = vunpack.c.0.s8 %v473
    %v475 = vlaneseq
    %v476 = vshrl.u32 %v475, 7
    %v477 = vsub.s32 %v474, %v476
    %v478 = vrot.slane %v464, %v477
    %v479 = vcombine.low %v456, %v471
    %v480 = vcombine.high %v456, %v471
    %v482 = vunpack.c.l.s4 1934713408
    %v483 = vunpack.c.0.s8 %v482
    %v484 = vlaneseq
    %v485 = vshrl.u32 %v484, 7
    %v486 = vsub.s32 %v483, %v485
    %v487 = vrot.slane %v479, %v486
    %v489 = vunpack.c.l.s4 1934713408
    %v490 = vunpack.c.0.s8 %v489
    %v491 = vlaneseq
    %v492 = vshrl.u32 %v491, 7
    %v493 = vsub.s32 %v490, %v492
    %v494 = vrot.slane %v480, %v493
    %v495 = vcombine.low %v463, %v478
    %v496 = vcombine.high %v463, %v478
    %v498 = vunpack.c.l.s4 1934713408
    %v499 = vunpack.c.0.s8 %v498
    %v500 = vlaneseq
    %v501 = vshrl.u32 %v500, 7
    %v502 = vsub.s32 %v499, %v501
    %v503 = vrot.slane %v495, %v502
    %v505 = vunpack.c.l.s4 1934713408
    %v506 = vunpack.c.0.s8 %v505
    %v507 = vlaneseq
    %v508 = vshrl.u32 %v507, 7
    %v509 = vsub.s32 %v506, %v508
    %v510 = vrot.slane %v496, %v509
    %v511 = vcombine.high %v487, 0.0
    %v512 = vcombine.high %v494, 0.0
    %v513 = vcombine.high %v503, 0.0
    %v514 = vcombine.high %v510, 0.0
    %v515 = vcombine.high %v440, 0.0
    %v517 = vunpack.c.l.s4 1983009808
    %v518 = vunpack.c.0.s8 %v517
    %v519 = vlaneseq
    %v520 = vshrl.u32 %v519, 7
    %v521 = vsub.s32 %v518, %v520
    %v522 = vrot.slane %v440, %v521
    %v524 = vunpack.c.l.s4 1983009808
    %v525 = vunpack.c.0.s8 %v524
    %v526 = vlaneseq
    %v527 = vshrl.u32 %v526, 7
    %v528 = vsub.s32 %v525, %v527
    %v529 = vrot.slane %v515, %v528
    %v530 = vcombine.high %v444, 0.0
    %v532 = vunpack.c.l.s4 1983009808
    %v533 = vunpack.c.0.s8 %v532
    %v534 = vlaneseq
    %v535 = vshrl.u32 %v534, 7
    %v536 = vsub.s32 %v533, %v535
    %v537 = vrot.slane %v444, %v536
    %v539 = vunpack.c.l.s4 1983009808
    %v540 = vunpack.c.0.s8 %v539
    %v541 = vlaneseq
    %v542 = vshrl.u32 %v541, 7
    %v543 = vsub.s32 %v540, %v542
    %v544 = vrot.slane %v530, %v543
    %v545 = vcombine.low %v522, %v537
    %v546 = vcombine.high %v522, %v537
    %v548 = vunpack.c.l.s4 1934713408
    %v549 = vunpack.c.0.s8 %v548
    %v550 = vlaneseq
    %v551 = vshrl.u32 %v550, 7
    %v552 = vsub.s32 %v549, %v551
    %v553 = vrot.slane %v545, %v552
    %v555 = vunpack.c.l.s4 1934713408
    %v556 = vunpack.c.0.s8 %v555
    %v557 = vlaneseq
    %v558 = vshrl.u32 %v557, 7
    %v559 = vsub.s32 %v556, %v558
    %v560 = vrot.slane %v546, %v559
    %v561 = vcombine.low %v529, %v544
    %v562 = vcombine.high %v529, %v544
    %v564 = vunpack.c.l.s4 1934713408
    %v565 = vunpack.c.0.s8 %v564
    %v566 = vlaneseq
    %v567 = vshrl.u32 %v566, 7
    %v568 = vsub.s32 %v565, %v567
    %v569 = vrot.slane %v561, %v568
    %v571 = vunpack.c.l.s4 1934713408
    %v572 = vunpack.c.0.s8 %v571
    %v573 = vlaneseq
    %v574 = vshrl.u32 %v573, 7
    %v575 = vsub.s32 %v572, %v574
    %v576 = vrot.slane %v562, %v575
    %v577 = vcombine.high %v553, 0.0
    %v578 = vcombine.high %v560, 0.0
    %v579 = vcombine.high %v569, 0.0
    %v580 = vcombine.high %v576, 0.0
    %v581 = vcombine.low %v487, %v494
    %v583 = vunpack.c.l.s4 1983009808
    %v584 = vunpack.c.0.s8 %v583
    %v585 = vlaneseq
    %v586 = vshrl.u32 %v585, 7
    %v587 = vsub.s32 %v584, %v586
    %v588 = vrot.slane %v581, %v587
    %v589 = vcombine.low %v511, %v512
    %v591 = vunpack.c.l.s4 1983009808
    %v592 = vunpack.c.0.s8 %v591
    %v593 = vlaneseq
    %v594 = vshrl.u32 %v593, 7
    %v595 = vsub.s32 %v592, %v594
    %v596 = vrot.slane %v589, %v595
    %v597 = vcombine.low %v503, %v510
    %v599 = vunpack.c.l.s4 1983009808
    %v600 = vunpack.c.0.s8 %v599
    %v601 = vlaneseq
    %v602 = vshrl.u32 %v601, 7
    %v603 = vsub.s32 %v600, %v602
    %v604 = vrot.slane %v597, %v603
    %v605 = vcombine.low %v513, %v514
    %v607 = vunpack.c.l.s4 1983009808
    %v608 = vunpack.c.0.s8 %v607
    %v609 = vlaneseq
    %v610 = vshrl.u32 %v609, 7
    %v611 = vsub.s32 %v608, %v610
    %v612 = vrot.slane %v605, %v611
    %v613 = vcombine.low %v588, %v596
    %v615 = vunpack.c.l.s4 1934713408
    %v616 = vunpack.c.0.s8 %v615
    %v617 = vlaneseq
    %v618 = vshrl.u32 %v617, 7
    %v619 = vsub.s32 %v616, %v618
    %v620 = vrot.slane %v613, %v619
    %v621 = vcombine.low %v604, %v612
    %v623 = vunpack.c.l.s4 1934713408
    %v624 = vunpack.c.0.s8 %v623
    %v625 = vlaneseq
    %v626 = vshrl.u32 %v625, 7
    %v627 = vsub.s32 %v624, %v626
    %v628 = vrot.slane %v621, %v627
    %v629 = vcombine.low %v620, %v628
    %v630 = vcombine.high %v620, %v628
    %v631 = vcombine.low %v553, %v560
    %v633 = vunpack.c.l.s4 1983009808
    %v634 = vunpack.c.0.s8 %v633
    %v635 = vlaneseq
    %v636 = vshrl.u32 %v635, 7
    %v637 = vsub.s32 %v634, %v636
    %v638 = vrot.slane %v631, %v637
    %v639 = vcombine.low %v577, %v578
    %v641 = vunpack.c.l.s4 1983009808
    %v642 = vunpack.c.0.s8 %v641
    %v643 = vlaneseq
    %v644 = vshrl.u32 %v643, 7
    %v645 = vsub.s32 %v642, %v644
    %v646 = vrot.slane %v639, %v645
    %v647 = vcombine.low %v569, %v576
    %v649 = vunpack.c.l.s4 1983009808
    %v650 = vunpack.c.0.s8 %v649
    %v651 = vlaneseq
    %v652 = vshrl.u32 %v651, 7
    %v653 = vsub.s32 %v650, %v652
    %v654 = vrot.slane %v647, %v653
    %v655 = vcombine.low %v579, %v580
    %v657 = vunpack.c.l.s4 1983009808
    %v658 = vunpack.c.0.s8 %v657
    %v659 = vlaneseq
    %v660 = vshrl.u32 %v659, 7
    %v661 = vsub.s32 %v658, %v660
    %v662 = vrot.slane %v655, %v661
    %v663 = vcombine.low %v638, %v646
    %v665 = vunpack.c.l.s4 1934713408
    %v666 = vunpack.c.0.s8 %v665
    %v667 = vlaneseq
    %v668 = vshrl.u32 %v667, 7
    %v669 = vsub.s32 %v666, %v668
    %v670 = vrot.slane %v663, %v669
    %v671 = vcombine.low %v654, %v662
    %v673 = vunpack.c.l.s4 1934713408
    %v674 = vunpack.c.0.s8 %v673
    %v675 = vlaneseq
    %v676 = vshrl.u32 %v675, 7
    %v677 = vsub.s32 %v674, %v676
    %v678 = vrot.slane %v671, %v677
    %v679 = vcombine.low %v670, %v678
    %v680 = vcombine.high %v670, %v678
    %v681 = vpack.c.bf16 %v629, %v629
    %v682 = vpack.c.bf16 %v630, %v630
    %v683 = vpack.c.bf16 %v679, %v679
    %v684 = vpack.c.bf16 %v680, %v680
    %685 = vrot.lane.b32.xlu0 %v187, 64
    %v686 = vpop.permute.xlu0 %685
    %687 = vrot.lane.b32.xlu0 %v190, 64
    %v688 = vpop.permute.xlu0 %687
    %689 = vrot.lane.b32.xlu0 %v196, 64
    %v690 = vpop.permute.xlu0 %689
    %691 = vrot.lane.b32.xlu0 %v198, 64
    %v692 = vpop.permute.xlu0 %691
    %v697 = vcombine.high %v686, 0.0
    %v699 = vunpack.c.l.s4 1983009808
    %v700 = vunpack.c.0.s8 %v699
    %v701 = vlaneseq
    %v702 = vshrl.u32 %v701, 7
    %v703 = vsub.s32 %v700, %v702
    %v704 = vrot.slane %v686, %v703
    %v706 = vunpack.c.l.s4 1983009808
    %v707 = vunpack.c.0.s8 %v706
    %v708 = vlaneseq
    %v709 = vshrl.u32 %v708, 7
    %v710 = vsub.s32 %v707, %v709
    %v711 = vrot.slane %v697, %v710
    %v712 = vcombine.high %v690, 0.0
    %v714 = vunpack.c.l.s4 1983009808
    %v715 = vunpack.c.0.s8 %v714
    %v716 = vlaneseq
    %v717 = vshrl.u32 %v716, 7
    %v718 = vsub.s32 %v715, %v717
    %v719 = vrot.slane %v690, %v718
    %v721 = vunpack.c.l.s4 1983009808
    %v722 = vunpack.c.0.s8 %v721
    %v723 = vlaneseq
    %v724 = vshrl.u32 %v723, 7
    %v725 = vsub.s32 %v722, %v724
    %v726 = vrot.slane %v712, %v725
    %v727 = vcombine.low %v704, %v719
    %v728 = vcombine.high %v704, %v719
    %v730 = vunpack.c.l.s4 1934713408
    %v731 = vunpack.c.0.s8 %v730
    %v732 = vlaneseq
    %v733 = vshrl.u32 %v732, 7
    %v734 = vsub.s32 %v731, %v733
    %v735 = vrot.slane %v727, %v734
    %v737 = vunpack.c.l.s4 1934713408
    %v738 = vunpack.c.0.s8 %v737
    %v739 = vlaneseq
    %v740 = vshrl.u32 %v739, 7
    %v741 = vsub.s32 %v738, %v740
    %v742 = vrot.slane %v728, %v741
    %v743 = vcombine.low %v711, %v726
    %v744 = vcombine.high %v711, %v726
    %v746 = vunpack.c.l.s4 1934713408
    %v747 = vunpack.c.0.s8 %v746
    %v748 = vlaneseq
    %v749 = vshrl.u32 %v748, 7
    %v750 = vsub.s32 %v747, %v749
    %v751 = vrot.slane %v743, %v750
    %v753 = vunpack.c.l.s4 1934713408
    %v754 = vunpack.c.0.s8 %v753
    %v755 = vlaneseq
    %v756 = vshrl.u32 %v755, 7
    %v757 = vsub.s32 %v754, %v756
    %v758 = vrot.slane %v744, %v757
    %v759 = vcombine.high %v735, 0.0
    %v760 = vcombine.high %v742, 0.0
    %v761 = vcombine.high %v751, 0.0
    %v762 = vcombine.high %v758, 0.0
    %v763 = vcombine.high %v688, 0.0
    %v765 = vunpack.c.l.s4 1983009808
    %v766 = vunpack.c.0.s8 %v765
    %v767 = vlaneseq
    %v768 = vshrl.u32 %v767, 7
    %v769 = vsub.s32 %v766, %v768
    %v770 = vrot.slane %v688, %v769
    %v772 = vunpack.c.l.s4 1983009808
    %v773 = vunpack.c.0.s8 %v772
    %v774 = vlaneseq
    %v775 = vshrl.u32 %v774, 7
    %v776 = vsub.s32 %v773, %v775
    %v777 = vrot.slane %v763, %v776
    %v778 = vcombine.high %v692, 0.0
    %v780 = vunpack.c.l.s4 1983009808
    %v781 = vunpack.c.0.s8 %v780
    %v782 = vlaneseq
    %v783 = vshrl.u32 %v782, 7
    %v784 = vsub.s32 %v781, %v783
    %v785 = vrot.slane %v692, %v784
    %v787 = vunpack.c.l.s4 1983009808
    %v788 = vunpack.c.0.s8 %v787
    %v789 = vlaneseq
    %v790 = vshrl.u32 %v789, 7
    %v791 = vsub.s32 %v788, %v790
    %v792 = vrot.slane %v778, %v791
    %v793 = vcombine.low %v770, %v785
    %v794 = vcombine.high %v770, %v785
    %v796 = vunpack.c.l.s4 1934713408
    %v797 = vunpack.c.0.s8 %v796
    %v798 = vlaneseq
    %v799 = vshrl.u32 %v798, 7
    %v800 = vsub.s32 %v797, %v799
    %v801 = vrot.slane %v793, %v800
    %v803 = vunpack.c.l.s4 1934713408
    %v804 = vunpack.c.0.s8 %v803
    %v805 = vlaneseq
    %v806 = vshrl.u32 %v805, 7
    %v807 = vsub.s32 %v804, %v806
    %v808 = vrot.slane %v794, %v807
    %v809 = vcombine.low %v777, %v792
    %v810 = vcombine.high %v777, %v792
    %v812 = vunpack.c.l.s4 1934713408
    %v813 = vunpack.c.0.s8 %v812
    %v814 = vlaneseq
    %v815 = vshrl.u32 %v814, 7
    %v816 = vsub.s32 %v813, %v815
    %v817 = vrot.slane %v809, %v816
    %v819 = vunpack.c.l.s4 1934713408
    %v820 = vunpack.c.0.s8 %v819
    %v821 = vlaneseq
    %v822 = vshrl.u32 %v821, 7
    %v823 = vsub.s32 %v820, %v822
    %v824 = vrot.slane %v810, %v823
    %v825 = vcombine.high %v801, 0.0
    %v826 = vcombine.high %v808, 0.0
    %v827 = vcombine.high %v817, 0.0
    %v828 = vcombine.high %v824, 0.0
    %v829 = vcombine.low %v735, %v742
    %v831 = vunpack.c.l.s4 1983009808
    %v832 = vunpack.c.0.s8 %v831
    %v833 = vlaneseq
    %v834 = vshrl.u32 %v833, 7
    %v835 = vsub.s32 %v832, %v834
    %v836 = vrot.slane %v829, %v835
    %v837 = vcombine.low %v759, %v760
    %v839 = vunpack.c.l.s4 1983009808
    %v840 = vunpack.c.0.s8 %v839
    %v841 = vlaneseq
    %v842 = vshrl.u32 %v841, 7
    %v843 = vsub.s32 %v840, %v842
    %v844 = vrot.slane %v837, %v843
    %v845 = vcombine.low %v751, %v758
    %v847 = vunpack.c.l.s4 1983009808
    %v848 = vunpack.c.0.s8 %v847
    %v849 = vlaneseq
    %v850 = vshrl.u32 %v849, 7
    %v851 = vsub.s32 %v848, %v850
    %v852 = vrot.slane %v845, %v851
    %v853 = vcombine.low %v761, %v762
    %v855 = vunpack.c.l.s4 1983009808
    %v856 = vunpack.c.0.s8 %v855
    %v857 = vlaneseq
    %v858 = vshrl.u32 %v857, 7
    %v859 = vsub.s32 %v856, %v858
    %v860 = vrot.slane %v853, %v859
    %v861 = vcombine.low %v836, %v844
    %v863 = vunpack.c.l.s4 1934713408
    %v864 = vunpack.c.0.s8 %v863
    %v865 = vlaneseq
    %v866 = vshrl.u32 %v865, 7
    %v867 = vsub.s32 %v864, %v866
    %v868 = vrot.slane %v861, %v867
    %v869 = vcombine.low %v852, %v860
    %v871 = vunpack.c.l.s4 1934713408
    %v872 = vunpack.c.0.s8 %v871
    %v873 = vlaneseq
    %v874 = vshrl.u32 %v873, 7
    %v875 = vsub.s32 %v872, %v874
    %v876 = vrot.slane %v869, %v875
    %v877 = vcombine.low %v868, %v876
    %v878 = vcombine.high %v868, %v876
    %v879 = vcombine.low %v801, %v808
    %v881 = vunpack.c.l.s4 1983009808
    %v882 = vunpack.c.0.s8 %v881
    %v883 = vlaneseq
    %v884 = vshrl.u32 %v883, 7
    %v885 = vsub.s32 %v882, %v884
    %v886 = vrot.slane %v879, %v885
    %v887 = vcombine.low %v825, %v826
    %v889 = vunpack.c.l.s4 1983009808
    %v890 = vunpack.c.0.s8 %v889
    %v891 = vlaneseq
    %v892 = vshrl.u32 %v891, 7
    %v893 = vsub.s32 %v890, %v892
    %v894 = vrot.slane %v887, %v893
    %v895 = vcombine.low %v817, %v824
    %v897 = vunpack.c.l.s4 1983009808
    %v898 = vunpack.c.0.s8 %v897
    %v899 = vlaneseq
    %v900 = vshrl.u32 %v899, 7
    %v901 = vsub.s32 %v898, %v900
    %v902 = vrot.slane %v895, %v901
    %v903 = vcombine.low %v827, %v828
    %v905 = vunpack.c.l.s4 1983009808
    %v906 = vunpack.c.0.s8 %v905
    %v907 = vlaneseq
    %v908 = vshrl.u32 %v907, 7
    %v909 = vsub.s32 %v906, %v908
    %v910 = vrot.slane %v903, %v909
    %v911 = vcombine.low %v886, %v894
    %v913 = vunpack.c.l.s4 1934713408
    %v914 = vunpack.c.0.s8 %v913
    %v915 = vlaneseq
    %v916 = vshrl.u32 %v915, 7
    %v917 = vsub.s32 %v914, %v916
    %v918 = vrot.slane %v911, %v917
    %v919 = vcombine.low %v902, %v910
    %v921 = vunpack.c.l.s4 1934713408
    %v922 = vunpack.c.0.s8 %v921
    %v923 = vlaneseq
    %v924 = vshrl.u32 %v923, 7
    %v925 = vsub.s32 %v922, %v924
    %v926 = vrot.slane %v919, %v925
    %v927 = vcombine.low %v918, %v926
    %v928 = vcombine.high %v918, %v926
    %v929 = vpack.c.bf16 %v877, %v877
    %v930 = vpack.c.bf16 %v878, %v878
    %v931 = vpack.c.bf16 %v927, %v927
    %v932 = vpack.c.bf16 %v928, %v928
    %v937 = vlaneseq
    %v938 = vshrl.u32 %v937, 7
    %v939 = vsub.s32 0, %v938
    %v940 = vrot.slane %v121, %v939
    %v941 = vlaneseq
    %v942 = vshrl.u32 %v941, 7
    %v943 = vsub.s32 0, %v942
    %v944 = vrot.slane %v122, %v943
    %v945 = vlaneseq
    %v946 = vshrl.u32 %v945, 7
    %v947 = vsub.s32 0, %v946
    %v948 = vrot.slane %v123, %v947
    %v949 = vlaneseq
    %v950 = vshrl.u32 %v949, 7
    %v951 = vsub.s32 0, %v950
    %v952 = vrot.slane %v124, %v951
    %vm957 = vcmask 130048
    %v959 = vsel %vm957, %v433, 0
    %v962 = vsel %vm957, %v681, 0
    %964 = vmatprep.subr.bf16.mxu0 0
    %965 = vmatpush1.bf16.xpose.msra.mxu0 0
    %966 = vmatprep.subr.bf16.mxu0 0
    %967 = vmatpush1.bf16.xpose.msra.mxu0 0
    %968 = vmatprep.subr.bf16.mxu0 0
    %969 = vmatpush1.bf16.xpose.msra.mxu0 0
    %970 = vmatprep.subr.bf16.mxu0 0
    %971 = vmatpush1.bf16.xpose.msra.mxu0 0
    %972 = vmatprep.subr.bf16.mxu0 0
    %973 = vmatpush1.bf16.xpose.msra.mxu0 0
    %974 = vmatprep.subr.bf16.mxu0 0
    %975 = vmatpush1.bf16.xpose.msra.mxu0 0
    %976 = vmatprep.subr.bf16.mxu0 0
    %977 = vmatpush1.bf16.xpose.msra.mxu0 0
    %978 = vmatprep.subr.bf16.mxu0 0
    %979 = vmatpush1.bf16.xpose.msra.mxu0 %v962
    %980 = vmatprep.subr.bf16.mxu0 0
    %981 = vmatpush2.bf16.xpose.msra.mxu0 0
    %982 = vmatprep.subr.bf16.mxu0 0
    %983 = vmatpush2.bf16.xpose.msra.mxu0 0
    %984 = vmatprep.subr.bf16.mxu0 0
    %985 = vmatpush2.bf16.xpose.msra.mxu0 0
    %986 = vmatprep.subr.bf16.mxu0 0
    %987 = vmatpush2.bf16.xpose.msra.mxu0 0
    %988 = vmatprep.subr.bf16.mxu0 0
    %989 = vmatpush2.bf16.xpose.msra.mxu0 0
    %990 = vmatprep.subr.bf16.mxu0 0
    %991 = vmatpush2.bf16.xpose.msra.mxu0 0
    %992 = vmatprep.subr.bf16.mxu0 0
    %993 = vmatpush2.bf16.xpose.msra.mxu0 0
    %994 = vmatprep.subr.bf16.mxu0 0
    %995 = vmatpush2.bf16.xpose.msra.mxu0 0
    %996 = vmatprep.mubr.bf16.mxu0 0
    %997 = vmatmul.mubr.bf16.gmra.mxu0 %v959
    %v998 = vpop.f32.mrf.mxu0
    %v999 = vadd.f32 %v940, %v998
    %v1000 = vpop.f32.mrf.mxu0
    %v1001 = vpop.f32.mrf.mxu0
    %v1002 = vpop.f32.mrf.mxu0
    %1003 = vdwg.mxu0
    %v1005 = vsel %vm957, %v434, 0
    %v1008 = vsel %vm957, %v682, 0
    %1010 = vmatprep.subr.bf16.mxu0 0
    %1011 = vmatpush1.bf16.xpose.msra.mxu0 0
    %1012 = vmatprep.subr.bf16.mxu0 0
    %1013 = vmatpush1.bf16.xpose.msra.mxu0 0
    %1014 = vmatprep.subr.bf16.mxu0 0
    %1015 = vmatpush1.bf16.xpose.msra.mxu0 0
    %1016 = vmatprep.subr.bf16.mxu0 0
    %1017 = vmatpush1.bf16.xpose.msra.mxu0 0
    %1018 = vmatprep.subr.bf16.mxu0 0
    %1019 = vmatpush1.bf16.xpose.msra.mxu0 0
    %1020 = vmatprep.subr.bf16.mxu0 0
    %1021 = vmatpush1.bf16.xpose.msra.mxu0 0
    %1022 = vmatprep.subr.bf16.mxu0 0
    %1023 = vmatpush1.bf16.xpose.msra.mxu0 0
    %1024 = vmatprep.subr.bf16.mxu0 0
    %1025 = vmatpush1.bf16.xpose.msra.mxu0 %v1008
    %1026 = vmatprep.subr.bf16.mxu0 0
    %1027 = vmatpush2.bf16.xpose.msra.mxu0 0
    %1028 = vmatprep.subr.bf16.mxu0 0
    %1029 = vmatpush2.bf16.xpose.msra.mxu0 0
    %1030 = vmatprep.subr.bf16.mxu0 0
    %1031 = vmatpush2.bf16.xpose.msra.mxu0 0
    %1032 = vmatprep.subr.bf16.mxu0 0
    %1033 = vmatpush2.bf16.xpose.msra.mxu0 0
    %1034 = vmatprep.subr.bf16.mxu0 0
    %1035 = vmatpush2.bf16.xpose.msra.mxu0 0
    %1036 = vmatprep.subr.bf16.mxu0 0
    %1037 = vmatpush2.bf16.xpose.msra.mxu0 0
    %1038 = vmatprep.subr.bf16.mxu0 0
    %1039 = vmatpush2.bf16.xpose.msra.mxu0 0
    %1040 = vmatprep.subr.bf16.mxu0 0
    %1041 = vmatpush2.bf16.xpose.msra.mxu0 0
    %1042 = vmatprep.mubr.bf16.mxu0 0
    %1043 = vmatmul.mubr.bf16.gmra.mxu0 %v1005
    %v1044 = vpop.f32.mrf.mxu0
    %v1045 = vadd.f32 %v944, %v1044
    %v1046 = vpop.f32.mrf.mxu0
    %v1047 = vpop.f32.mrf.mxu0
    %v1048 = vpop.f32.mrf.mxu0
    %1049 = vdwg.mxu0
    %v1051 = vsel %vm957, %v435, 0
    %v1054 = vsel %vm957, %v683, 0
    %1056 = vmatprep.subr.bf16.mxu0 0
    %1057 = vmatpush1.bf16.xpose.msra.mxu0 0
    %1058 = vmatprep.subr.bf16.mxu0 0
    %1059 = vmatpush1.bf16.xpose.msra.mxu0 0
    %1060 = vmatprep.subr.bf16.mxu0 0
    %1061 = vmatpush1.bf16.xpose.msra.mxu0 0
    %1062 = vmatprep.subr.bf16.mxu0 0
    %1063 = vmatpush1.bf16.xpose.msra.mxu0 0
    %1064 = vmatprep.subr.bf16.mxu0 0
    %1065 = vmatpush1.bf16.xpose.msra.mxu0 0
    %1066 = vmatprep.subr.bf16.mxu0 0
    %1067 = vmatpush1.bf16.xpose.msra.mxu0 0
    %1068 = vmatprep.subr.bf16.mxu0 0
    %1069 = vmatpush1.bf16.xpose.msra.mxu0 0
    %1070 = vmatprep.subr.bf16.mxu0 0
    %1071 = vmatpush1.bf16.xpose.msra.mxu0 %v1054
    %1072 = vmatprep.subr.bf16.mxu0 0
    %1073 = vmatpush2.bf16.xpose.msra.mxu0 0
    %1074 = vmatprep.subr.bf16.mxu0 0
    %1075 = vmatpush2.bf16.xpose.msra.mxu0 0
    %1076 = vmatprep.subr.bf16.mxu0 0
    %1077 = vmatpush2.bf16.xpose.msra.mxu0 0
    %1078 = vmatprep.subr.bf16.mxu0 0
    %1079 = vmatpush2.bf16.xpose.msra.mxu0 0
    %1080 = vmatprep.subr.bf16.mxu0 0
    %1081 = vmatpush2.bf16.xpose.msra.mxu0 0
    %1082 = vmatprep.subr.bf16.mxu0 0
    %1083 = vmatpush2.bf16.xpose.msra.mxu0 0
    %1084 = vmatprep.subr.bf16.mxu0 0
    %1085 = vmatpush2.bf16.xpose.msra.mxu0 0
    %1086 = vmatprep.subr.bf16.mxu0 0
    %1087 = vmatpush2.bf16.xpose.msra.mxu0 0
    %1088 = vmatprep.mubr.bf16.mxu0 0
    %1089 = vmatmul.mubr.bf16.gmra.mxu0 %v1051
    %v1090 = vpop.f32.mrf.mxu0
    %v1091 = vadd.f32 %v948, %v1090
    %v1092 = vpop.f32.mrf.mxu0
    %v1093 = vpop.f32.mrf.mxu0
    %v1094 = vpop.f32.mrf.mxu0
    %1095 = vdwg.mxu0
    %v1097 = vsel %vm957, %v436, 0
    %v1100 = vsel %vm957, %v684, 0
    %1102 = vmatprep.subr.bf16.mxu0 0
    %1103 = vmatpush1.bf16.xpose.msra.mxu0 0
    %1104 = vmatprep.subr.bf16.mxu0 0
    %1105 = vmatpush1.bf16.xpose.msra.mxu0 0
    %1106 = vmatprep.subr.bf16.mxu0 0
    %1107 = vmatpush1.bf16.xpose.msra.mxu0 0
    %1108 = vmatprep.subr.bf16.mxu0 0
    %1109 = vmatpush1.bf16.xpose.msra.mxu0 0
    %1110 = vmatprep.subr.bf16.mxu0 0
    %1111 = vmatpush1.bf16.xpose.msra.mxu0 0
    %1112 = vmatprep.subr.bf16.mxu0 0
    %1113 = vmatpush1.bf16.xpose.msra.mxu0 0
    %1114 = vmatprep.subr.bf16.mxu0 0
    %1115 = vmatpush1.bf16.xpose.msra.mxu0 0
    %1116 = vmatprep.subr.bf16.mxu0 0
    %1117 = vmatpush1.bf16.xpose.msra.mxu0 %v1100
    %1118 = vmatprep.subr.bf16.mxu0 0
    %1119 = vmatpush2.bf16.xpose.msra.mxu0 0
    %1120 = vmatprep.subr.bf16.mxu0 0
    %1121 = vmatpush2.bf16.xpose.msra.mxu0 0
    %1122 = vmatprep.subr.bf16.mxu0 0
    %1123 = vmatpush2.bf16.xpose.msra.mxu0 0
    %1124 = vmatprep.subr.bf16.mxu0 0
    %1125 = vmatpush2.bf16.xpose.msra.mxu0 0
    %1126 = vmatprep.subr.bf16.mxu0 0
    %1127 = vmatpush2.bf16.xpose.msra.mxu0 0
    %1128 = vmatprep.subr.bf16.mxu0 0
    %1129 = vmatpush2.bf16.xpose.msra.mxu0 0
    %1130 = vmatprep.subr.bf16.mxu0 0
    %1131 = vmatpush2.bf16.xpose.msra.mxu0 0
    %1132 = vmatprep.subr.bf16.mxu0 0
    %1133 = vmatpush2.bf16.xpose.msra.mxu0 0
    %1134 = vmatprep.mubr.bf16.mxu0 0
    %1135 = vmatmul.mubr.bf16.gmra.mxu0 %v1097
    %v1136 = vpop.f32.mrf.mxu0
    %v1137 = vadd.f32 %v952, %v1136
    %v1138 = vpop.f32.mrf.mxu0
    %v1139 = vpop.f32.mrf.mxu0
    %v1140 = vpop.f32.mrf.mxu0
    %1141 = vdwg.mxu0
    %vm1142 = vcmask 64512
    %v1143 = vsel %vm1142, %v999, -inf
    %1144 = vmax.xlane.f32.xlu0 %v1143
    %v1145 = vpop.xlane.xlu0 %1144
    %v1146 = vsel %vm1142, %v1045, -inf
    %1147 = vmax.xlane.f32.xlu0 %v1146
    %v1148 = vpop.xlane.xlu0 %1147
    %v1149 = vsel %vm1142, %v1091, -inf
    %1150 = vmax.xlane.f32.xlu0 %v1149
    %v1151 = vpop.xlane.xlu0 %1150
    %v1152 = vsel %vm1142, %v1137, -inf
    %1153 = vmax.xlane.f32.xlu0 %v1152
    %v1154 = vpop.xlane.xlu0 %1153
    %v1155 = vsub.f32 %v999, %v1145
    %v1156 = vsub.f32 %v1045, %v1148
    %v1157 = vsub.f32 %v1091, %v1151
    %v1158 = vsub.f32 %v1137, %v1154
    %v1159 = vmul.f32 %v1155, 1.442695
    %v1160 = vpow.pop %v1159
    %v1161 = vmul.f32 %v1156, 1.442695
    %v1162 = vpow.pop %v1161
    %v1163 = vmul.f32 %v1157, 1.442695
    %v1164 = vpow.pop %v1163
    %v1165 = vmul.f32 %v1158, 1.442695
    %v1166 = vpow.pop %v1165
    %v1167 = vsel %vm1142, %v1160, 0.0
    %1168 = vadd.xlane.f32.xlu0 %v1167
    %v1169 = vpop.xlane.xlu0 %1168
    %v1170 = vsel %vm1142, %v1162, 0.0
    %1171 = vadd.xlane.f32.xlu0 %v1170
    %v1172 = vpop.xlane.xlu0 %1171
    %v1173 = vsel %vm1142, %v1164, 0.0
    %1174 = vadd.xlane.f32.xlu0 %v1173
    %v1175 = vpop.xlane.xlu0 %1174
    %v1176 = vsel %vm1142, %v1166, 0.0
    %1177 = vadd.xlane.f32.xlu0 %v1176
    %v1178 = vpop.xlane.xlu0 %1177
    %v1179 = vrcp.pop %v1169
    %v1180 = vrcp.pop %v1172
    %v1181 = vrcp.pop %v1175
    %v1182 = vrcp.pop %v1178
    %v1183 = vmul.f32 %v1160, %v1179
    %v1184 = vmul.f32 %v1162, %v1180
    %v1185 = vmul.f32 %v1164, %v1181
    %v1186 = vmul.f32 %v1166, %v1182
    %v1187 = vpack.c.bf16 %v1183, %v1183
    %v1188 = vpack.c.bf16 %v1184, %v1184
    %v1189 = vpack.c.bf16 %v1185, %v1185
    %v1190 = vpack.c.bf16 %v1186, %v1186
    %v1192 = vsel %vm1142, %v1187, 0
    %vm1194 = vcmask 1043456
    %v1196 = vsel %vm1194, %v929, 0
    %1198 = vmatprep.subr.bf16.mxu0 0
    %1199 = vmatpush1.bf16.msra.mxu0 0
    %1200 = vmatprep.subr.bf16.mxu0 0
    %1201 = vmatpush1.bf16.msra.mxu0 0
    %1202 = vmatprep.subr.bf16.mxu0 0
    %1203 = vmatpush1.bf16.msra.mxu0 0
    %1204 = vmatprep.subr.bf16.mxu0 0
    %1205 = vmatpush1.bf16.msra.mxu0 0
    %1206 = vmatprep.subr.bf16.mxu0 0
    %1207 = vmatpush1.bf16.msra.mxu0 0
    %1208 = vmatprep.subr.bf16.mxu0 0
    %1209 = vmatpush1.bf16.msra.mxu0 0
    %1210 = vmatprep.subr.bf16.mxu0 0
    %1211 = vmatpush1.bf16.msra.mxu0 0
    %1212 = vmatprep.subr.bf16.mxu0 0
    %1213 = vmatpush1.bf16.msra.mxu0 %v1196
    %1214 = vmatprep.subr.bf16.mxu0 0
    %1215 = vmatpush2.bf16.msra.mxu0 0
    %1216 = vmatprep.subr.bf16.mxu0 0
    %1217 = vmatpush2.bf16.msra.mxu0 0
    %1218 = vmatprep.subr.bf16.mxu0 0
    %1219 = vmatpush2.bf16.msra.mxu0 0
    %1220 = vmatprep.subr.bf16.mxu0 0
    %1221 = vmatpush2.bf16.msra.mxu0 0
    %1222 = vmatprep.subr.bf16.mxu0 0
    %1223 = vmatpush2.bf16.msra.mxu0 0
    %1224 = vmatprep.subr.bf16.mxu0 0
    %1225 = vmatpush2.bf16.msra.mxu0 0
    %1226 = vmatprep.subr.bf16.mxu0 0
    %1227 = vmatpush2.bf16.msra.mxu0 0
    %1228 = vmatprep.subr.bf16.mxu0 0
    %1229 = vmatpush2.bf16.msra.mxu0 0
    %1230 = vmatprep.mubr.bf16.mxu0 0
    %1231 = vmatmul.mubr.bf16.gmra.mxu0 %v1192
    %v1232 = vpop.f32.mrf.mxu0
    %v1233 = vadd.f32 0.0, %v1232
    %v1234 = vpop.f32.mrf.mxu0
    %v1235 = vpop.f32.mrf.mxu0
    %v1236 = vpop.f32.mrf.mxu0
    %1237 = vdwg.mxu0
    %v1239 = vsel %vm1142, %v1188, 0
    %v1242 = vsel %vm1194, %v930, 0
    %1244 = vmatprep.subr.bf16.mxu0 0
    %1245 = vmatpush1.bf16.msra.mxu0 0
    %1246 = vmatprep.subr.bf16.mxu0 0
    %1247 = vmatpush1.bf16.msra.mxu0 0
    %1248 = vmatprep.subr.bf16.mxu0 0
    %1249 = vmatpush1.bf16.msra.mxu0 0
    %1250 = vmatprep.subr.bf16.mxu0 0
    %1251 = vmatpush1.bf16.msra.mxu0 0
    %1252 = vmatprep.subr.bf16.mxu0 0
    %1253 = vmatpush1.bf16.msra.mxu0 0
    %1254 = vmatprep.subr.bf16.mxu0 0
    %1255 = vmatpush1.bf16.msra.mxu0 0
    %1256 = vmatprep.subr.bf16.mxu0 0
    %1257 = vmatpush1.bf16.msra.mxu0 0
    %1258 = vmatprep.subr.bf16.mxu0 0
    %1259 = vmatpush1.bf16.msra.mxu0 %v1242
    %1260 = vmatprep.subr.bf16.mxu0 0
    %1261 = vmatpush2.bf16.msra.mxu0 0
    %1262 = vmatprep.subr.bf16.mxu0 0
    %1263 = vmatpush2.bf16.msra.mxu0 0
    %1264 = vmatprep.subr.bf16.mxu0 0
    %1265 = vmatpush2.bf16.msra.mxu0 0
    %1266 = vmatprep.subr.bf16.mxu0 0
    %1267 = vmatpush2.bf16.msra.mxu0 0
    %1268 = vmatprep.subr.bf16.mxu0 0
    %1269 = vmatpush2.bf16.msra.mxu0 0
    %1270 = vmatprep.subr.bf16.mxu0 0
    %1271 = vmatpush2.bf16.msra.mxu0 0
    %1272 = vmatprep.subr.bf16.mxu0 0
    %1273 = vmatpush2.bf16.msra.mxu0 0
    %1274 = vmatprep.subr.bf16.mxu0 0
    %1275 = vmatpush2.bf16.msra.mxu0 0
    %1276 = vmatprep.mubr.bf16.mxu0 0
    %1277 = vmatmul.mubr.bf16.gmra.mxu0 %v1239
    %v1278 = vpop.f32.mrf.mxu0
    %v1279 = vadd.f32 0.0, %v1278
    %v1280 = vpop.f32.mrf.mxu0
    %v1281 = vpop.f32.mrf.mxu0
    %v1282 = vpop.f32.mrf.mxu0
    %1283 = vdwg.mxu0
    %v1285 = vsel %vm1142, %v1189, 0
    %v1288 = vsel %vm1194, %v931, 0
    %1290 = vmatprep.subr.bf16.mxu0 0
    %1291 = vmatpush1.bf16.msra.mxu0 0
    %1292 = vmatprep.subr.bf16.mxu0 0
    %1293 = vmatpush1.bf16.msra.mxu0 0
    %1294 = vmatprep.subr.bf16.mxu0 0
    %1295 = vmatpush1.bf16.msra.mxu0 0
    %1296 = vmatprep.subr.bf16.mxu0 0
    %1297 = vmatpush1.bf16.msra.mxu0 0
    %1298 = vmatprep.subr.bf16.mxu0 0
    %1299 = vmatpush1.bf16.msra.mxu0 0
    %1300 = vmatprep.subr.bf16.mxu0 0
    %1301 = vmatpush1.bf16.msra.mxu0 0
    %1302 = vmatprep.subr.bf16.mxu0 0
    %1303 = vmatpush1.bf16.msra.mxu0 0
    %1304 = vmatprep.subr.bf16.mxu0 0
    %1305 = vmatpush1.bf16.msra.mxu0 %v1288
    %1306 = vmatprep.subr.bf16.mxu0 0
    %1307 = vmatpush2.bf16.msra.mxu0 0
    %1308 = vmatprep.subr.bf16.mxu0 0
    %1309 = vmatpush2.bf16.msra.mxu0 0
    %1310 = vmatprep.subr.bf16.mxu0 0
    %1311 = vmatpush2.bf16.msra.mxu0 0
    %1312 = vmatprep.subr.bf16.mxu0 0
    %1313 = vmatpush2.bf16.msra.mxu0 0
    %1314 = vmatprep.subr.bf16.mxu0 0
    %1315 = vmatpush2.bf16.msra.mxu0 0
    %1316 = vmatprep.subr.bf16.mxu0 0
    %1317 = vmatpush2.bf16.msra.mxu0 0
    %1318 = vmatprep.subr.bf16.mxu0 0
    %1319 = vmatpush2.bf16.msra.mxu0 0
    %1320 = vmatprep.subr.bf16.mxu0 0
    %1321 = vmatpush2.bf16.msra.mxu0 0
    %1322 = vmatprep.mubr.bf16.mxu0 0
    %1323 = vmatmul.mubr.bf16.gmra.mxu0 %v1285
    %v1324 = vpop.f32.mrf.mxu0
    %v1325 = vadd.f32 0.0, %v1324
    %v1326 = vpop.f32.mrf.mxu0
    %v1327 = vpop.f32.mrf.mxu0
    %v1328 = vpop.f32.mrf.mxu0
    %1329 = vdwg.mxu0
    %v1331 = vsel %vm1142, %v1190, 0
    %v1334 = vsel %vm1194, %v932, 0
    %1336 = vmatprep.subr.bf16.mxu0 0
    %1337 = vmatpush1.bf16.msra.mxu0 0
    %1338 = vmatprep.subr.bf16.mxu0 0
    %1339 = vmatpush1.bf16.msra.mxu0 0
    %1340 = vmatprep.subr.bf16.mxu0 0
    %1341 = vmatpush1.bf16.msra.mxu0 0
    %1342 = vmatprep.subr.bf16.mxu0 0
    %1343 = vmatpush1.bf16.msra.mxu0 0
    %1344 = vmatprep.subr.bf16.mxu0 0
    %1345 = vmatpush1.bf16.msra.mxu0 0
    %1346 = vmatprep.subr.bf16.mxu0 0
    %1347 = vmatpush1.bf16.msra.mxu0 0
    %1348 = vmatprep.subr.bf16.mxu0 0
    %1349 = vmatpush1.bf16.msra.mxu0 0
    %1350 = vmatprep.subr.bf16.mxu0 0
    %1351 = vmatpush1.bf16.msra.mxu0 %v1334
    %1352 = vmatprep.subr.bf16.mxu0 0
    %1353 = vmatpush2.bf16.msra.mxu0 0
    %1354 = vmatprep.subr.bf16.mxu0 0
    %1355 = vmatpush2.bf16.msra.mxu0 0
    %1356 = vmatprep.subr.bf16.mxu0 0
    %1357 = vmatpush2.bf16.msra.mxu0 0
    %1358 = vmatprep.subr.bf16.mxu0 0
    %1359 = vmatpush2.bf16.msra.mxu0 0
    %1360 = vmatprep.subr.bf16.mxu0 0
    %1361 = vmatpush2.bf16.msra.mxu0 0
    %1362 = vmatprep.subr.bf16.mxu0 0
    %1363 = vmatpush2.bf16.msra.mxu0 0
    %1364 = vmatprep.subr.bf16.mxu0 0
    %1365 = vmatpush2.bf16.msra.mxu0 0
    %1366 = vmatprep.subr.bf16.mxu0 0
    %1367 = vmatpush2.bf16.msra.mxu0 0
    %1368 = vmatprep.mubr.bf16.mxu0 0
    %1369 = vmatmul.mubr.bf16.gmra.mxu0 %v1331
    %v1370 = vpop.f32.mrf.mxu0
    %v1371 = vadd.f32 0.0, %v1370
    %v1372 = vpop.f32.mrf.mxu0
    %v1373 = vpop.f32.mrf.mxu0
    %v1374 = vpop.f32.mrf.mxu0
    %1375 = vdwg.mxu0
    %v1376 = vcombine.high %v1233, 0.0
    %v1378 = vunpack.c.l.s4 1983009808
    %v1379 = vunpack.c.0.s8 %v1378
    %v1380 = vlaneseq
    %v1381 = vshrl.u32 %v1380, 7
    %v1382 = vsub.s32 %v1379, %v1381
    %v1383 = vrot.slane %v1233, %v1382
    %v1385 = vunpack.c.l.s4 1983009808
    %v1386 = vunpack.c.0.s8 %v1385
    %v1387 = vlaneseq
    %v1388 = vshrl.u32 %v1387, 7
    %v1389 = vsub.s32 %v1386, %v1388
    %v1390 = vrot.slane %v1376, %v1389
    %v1391 = vcombine.high %v1279, 0.0
    %v1393 = vunpack.c.l.s4 1983009808
    %v1394 = vunpack.c.0.s8 %v1393
    %v1395 = vlaneseq
    %v1396 = vshrl.u32 %v1395, 7
    %v1397 = vsub.s32 %v1394, %v1396
    %v1398 = vrot.slane %v1279, %v1397
    %v1400 = vunpack.c.l.s4 1983009808
    %v1401 = vunpack.c.0.s8 %v1400
    %v1402 = vlaneseq
    %v1403 = vshrl.u32 %v1402, 7
    %v1404 = vsub.s32 %v1401, %v1403
    %v1405 = vrot.slane %v1391, %v1404
    %v1406 = vcombine.low %v1383, %v1398
    %v1407 = vcombine.high %v1383, %v1398
    %v1409 = vunpack.c.l.s4 1934713408
    %v1410 = vunpack.c.0.s8 %v1409
    %v1411 = vlaneseq
    %v1412 = vshrl.u32 %v1411, 7
    %v1413 = vsub.s32 %v1410, %v1412
    %v1414 = vrot.slane %v1406, %v1413
    %v1416 = vunpack.c.l.s4 1934713408
    %v1417 = vunpack.c.0.s8 %v1416
    %v1418 = vlaneseq
    %v1419 = vshrl.u32 %v1418, 7
    %v1420 = vsub.s32 %v1417, %v1419
    %v1421 = vrot.slane %v1407, %v1420
    %v1422 = vcombine.low %v1390, %v1405
    %v1423 = vcombine.high %v1390, %v1405
    %v1425 = vunpack.c.l.s4 1934713408
    %v1426 = vunpack.c.0.s8 %v1425
    %v1427 = vlaneseq
    %v1428 = vshrl.u32 %v1427, 7
    %v1429 = vsub.s32 %v1426, %v1428
    %v1430 = vrot.slane %v1422, %v1429
    %v1432 = vunpack.c.l.s4 1934713408
    %v1433 = vunpack.c.0.s8 %v1432
    %v1434 = vlaneseq
    %v1435 = vshrl.u32 %v1434, 7
    %v1436 = vsub.s32 %v1433, %v1435
    %v1437 = vrot.slane %v1423, %v1436
    %v1438 = vcombine.high %v1414, 0.0
    %v1439 = vcombine.high %v1421, 0.0
    %v1440 = vcombine.high %v1430, 0.0
    %v1441 = vcombine.high %v1437, 0.0
    %v1442 = vcombine.high %v1325, 0.0
    %v1444 = vunpack.c.l.s4 1983009808
    %v1445 = vunpack.c.0.s8 %v1444
    %v1446 = vlaneseq
    %v1447 = vshrl.u32 %v1446, 7
    %v1448 = vsub.s32 %v1445, %v1447
    %v1449 = vrot.slane %v1325, %v1448
    %v1451 = vunpack.c.l.s4 1983009808
    %v1452 = vunpack.c.0.s8 %v1451
    %v1453 = vlaneseq
    %v1454 = vshrl.u32 %v1453, 7
    %v1455 = vsub.s32 %v1452, %v1454
    %v1456 = vrot.slane %v1442, %v1455
    %v1457 = vcombine.high %v1371, 0.0
    %v1459 = vunpack.c.l.s4 1983009808
    %v1460 = vunpack.c.0.s8 %v1459
    %v1461 = vlaneseq
    %v1462 = vshrl.u32 %v1461, 7
    %v1463 = vsub.s32 %v1460, %v1462
    %v1464 = vrot.slane %v1371, %v1463
    %v1466 = vunpack.c.l.s4 1983009808
    %v1467 = vunpack.c.0.s8 %v1466
    %v1468 = vlaneseq
    %v1469 = vshrl.u32 %v1468, 7
    %v1470 = vsub.s32 %v1467, %v1469
    %v1471 = vrot.slane %v1457, %v1470
    %v1472 = vcombine.low %v1449, %v1464
    %v1473 = vcombine.high %v1449, %v1464
    %v1475 = vunpack.c.l.s4 1934713408
    %v1476 = vunpack.c.0.s8 %v1475
    %v1477 = vlaneseq
    %v1478 = vshrl.u32 %v1477, 7
    %v1479 = vsub.s32 %v1476, %v1478
    %v1480 = vrot.slane %v1472, %v1479
    %v1482 = vunpack.c.l.s4 1934713408
    %v1483 = vunpack.c.0.s8 %v1482
    %v1484 = vlaneseq
    %v1485 = vshrl.u32 %v1484, 7
    %v1486 = vsub.s32 %v1483, %v1485
    %v1487 = vrot.slane %v1473, %v1486
    %v1488 = vcombine.low %v1456, %v1471
    %v1489 = vcombine.high %v1456, %v1471
    %v1491 = vunpack.c.l.s4 1934713408
    %v1492 = vunpack.c.0.s8 %v1491
    %v1493 = vlaneseq
    %v1494 = vshrl.u32 %v1493, 7
    %v1495 = vsub.s32 %v1492, %v1494
    %v1496 = vrot.slane %v1488, %v1495
    %v1498 = vunpack.c.l.s4 1934713408
    %v1499 = vunpack.c.0.s8 %v1498
    %v1500 = vlaneseq
    %v1501 = vshrl.u32 %v1500, 7
    %v1502 = vsub.s32 %v1499, %v1501
    %v1503 = vrot.slane %v1489, %v1502
    %v1504 = vcombine.high %v1480, 0.0
    %v1505 = vcombine.high %v1487, 0.0
    %v1506 = vcombine.high %v1496, 0.0
    %v1507 = vcombine.high %v1503, 0.0
    %v1508 = vcombine.low %v1414, %v1421
    %v1510 = vunpack.c.l.s4 1983009808
    %v1511 = vunpack.c.0.s8 %v1510
    %v1512 = vlaneseq
    %v1513 = vshrl.u32 %v1512, 7
    %v1514 = vsub.s32 %v1511, %v1513
    %v1515 = vrot.slane %v1508, %v1514
    %v1516 = vcombine.low %v1438, %v1439
    %v1518 = vunpack.c.l.s4 1983009808
    %v1519 = vunpack.c.0.s8 %v1518
    %v1520 = vlaneseq
    %v1521 = vshrl.u32 %v1520, 7
    %v1522 = vsub.s32 %v1519, %v1521
    %v1523 = vrot.slane %v1516, %v1522
    %v1524 = vcombine.low %v1430, %v1437
    %v1526 = vunpack.c.l.s4 1983009808
    %v1527 = vunpack.c.0.s8 %v1526
    %v1528 = vlaneseq
    %v1529 = vshrl.u32 %v1528, 7
    %v1530 = vsub.s32 %v1527, %v1529
    %v1531 = vrot.slane %v1524, %v1530
    %v1532 = vcombine.low %v1440, %v1441
    %v1534 = vunpack.c.l.s4 1983009808
    %v1535 = vunpack.c.0.s8 %v1534
    %v1536 = vlaneseq
    %v1537 = vshrl.u32 %v1536, 7
    %v1538 = vsub.s32 %v1535, %v1537
    %v1539 = vrot.slane %v1532, %v1538
    %v1540 = vcombine.low %v1515, %v1523
    %v1542 = vunpack.c.l.s4 1934713408
    %v1543 = vunpack.c.0.s8 %v1542
    %v1544 = vlaneseq
    %v1545 = vshrl.u32 %v1544, 7
    %v1546 = vsub.s32 %v1543, %v1545
    %v1547 = vrot.slane %v1540, %v1546
    %v1548 = vcombine.low %v1531, %v1539
    %v1550 = vunpack.c.l.s4 1934713408
    %v1551 = vunpack.c.0.s8 %v1550
    %v1552 = vlaneseq
    %v1553 = vshrl.u32 %v1552, 7
    %v1554 = vsub.s32 %v1551, %v1553
    %v1555 = vrot.slane %v1548, %v1554
    %v1556 = vcombine.low %v1547, %v1555
    %v1557 = vcombine.high %v1547, %v1555
    %v1558 = vcombine.low %v1480, %v1487
    %v1560 = vunpack.c.l.s4 1983009808
    %v1561 = vunpack.c.0.s8 %v1560
    %v1562 = vlaneseq
    %v1563 = vshrl.u32 %v1562, 7
    %v1564 = vsub.s32 %v1561, %v1563
    %v1565 = vrot.slane %v1558, %v1564
    %v1566 = vcombine.low %v1504, %v1505
    %v1568 = vunpack.c.l.s4 1983009808
    %v1569 = vunpack.c.0.s8 %v1568
    %v1570 = vlaneseq
    %v1571 = vshrl.u32 %v1570, 7
    %v1572 = vsub.s32 %v1569, %v1571
    %v1573 = vrot.slane %v1566, %v1572
    %v1574 = vcombine.low %v1496, %v1503
    %v1576 = vunpack.c.l.s4 1983009808
    %v1577 = vunpack.c.0.s8 %v1576
    %v1578 = vlaneseq
    %v1579 = vshrl.u32 %v1578, 7
    %v1580 = vsub.s32 %v1577, %v1579
    %v1581 = vrot.slane %v1574, %v1580
    %v1582 = vcombine.low %v1506, %v1507
    %v1584 = vunpack.c.l.s4 1983009808
    %v1585 = vunpack.c.0.s8 %v1584
    %v1586 = vlaneseq
    %v1587 = vshrl.u32 %v1586, 7
    %v1588 = vsub.s32 %v1585, %v1587
    %v1589 = vrot.slane %v1582, %v1588
    %v1590 = vcombine.low %v1565, %v1573
    %v1592 = vunpack.c.l.s4 1934713408
    %v1593 = vunpack.c.0.s8 %v1592
    %v1594 = vlaneseq
    %v1595 = vshrl.u32 %v1594, 7
    %v1596 = vsub.s32 %v1593, %v1595
    %v1597 = vrot.slane %v1590, %v1596
    %v1598 = vcombine.low %v1581, %v1589
    %v1600 = vunpack.c.l.s4 1934713408
    %v1601 = vunpack.c.0.s8 %v1600
    %v1602 = vlaneseq
    %v1603 = vshrl.u32 %v1602, 7
    %v1604 = vsub.s32 %v1601, %v1603
    %v1605 = vrot.slane %v1598, %v1604
    %v1606 = vcombine.low %v1597, %v1605
    %v1607 = vcombine.high %v1597, %v1605
    %1610 = vrot.lane.b32.xlu0 %v1557, 16
    %v1611 = vpop.permute.xlu0 %1610
    %1612 = vrot.lane.b32.xlu0 %v1607, 16
    %v1613 = vpop.permute.xlu0 %1612
    %v1616 = vsel %vm957, %v1556, %v1611
    %v1617 = vsel %vm957, %v1606, %v1613
    %v1618 = vpack.c.bf16 %v1617, %v1616
    %v1619 = vld [vmem:[%s6] sm:$0xf]
    %v1620 = vld [vmem:[%s6 + $0x4] sm:$0xf]
    %v1621 = vld [vmem:[%s6 + $0x8] sm:$0xf]
    %v1622 = vld [vmem:[%s6 + $0xc] sm:$0xf]
    %v1623 = vld [vmem:[%s7] sm:$0x1]
    %v1625 = vlaneseq
    %v1626 = vshrl.u32 %v1625, 7
    %v1627 = vsub.s32 0, %v1626
    %v1628 = vrot.slane %v1623, %v1627
    %v1634 = vunpack.c.l.b16 %v1619
    %v1635 = vunpack.c.l.b16 %v1620
    %v1636 = vunpack.c.l.b16 %v1621
    %v1637 = vunpack.c.l.b16 %v1622
    %v1638 = vpack.c.b16 %v1635, %v1634
    %v1639 = vpack.c.b16 %v1637, %v1636
    %v1643 = vsel %vm77, %v1618, 0
    %1645 = vmatprep.subr.bf16.mxu0 0
    %1646 = vmatpush1.bf16.msra.mxu0 0
    %1647 = vmatprep.subr.bf16.mxu0 0
    %1648 = vmatpush1.bf16.msra.mxu0 0
    %1649 = vmatprep.subr.bf16.mxu0 0
    %1650 = vmatpush1.bf16.msra.mxu0 0
    %1651 = vmatprep.subr.bf16.mxu0 0
    %1652 = vmatpush1.bf16.msra.mxu0 0
    %1653 = vmatprep.subr.bf16.mxu0 0
    %1654 = vmatpush1.bf16.msra.mxu0 0
    %1655 = vmatprep.subr.bf16.mxu0 0
    %1656 = vmatpush1.bf16.msra.mxu0 0
    %1657 = vmatprep.subr.bf16.mxu0 0
    %1658 = vmatpush1.bf16.msra.mxu0 %v1639
    %1659 = vmatprep.subr.bf16.mxu0 0
    %1660 = vmatpush1.bf16.msra.mxu0 %v1638
    %1661 = vmatprep.subr.bf16.mxu0 0
    %1662 = vmatpush2.bf16.msra.mxu0 0
    %1663 = vmatprep.subr.bf16.mxu0 0
    %1664 = vmatpush2.bf16.msra.mxu0 0
    %1665 = vmatprep.subr.bf16.mxu0 0
    %1666 = vmatpush2.bf16.msra.mxu0 0
    %1667 = vmatprep.subr.bf16.mxu0 0
    %1668 = vmatpush2.bf16.msra.mxu0 0
    %1669 = vmatprep.subr.bf16.mxu0 0
    %1670 = vmatpush2.bf16.msra.mxu0 0
    %1671 = vmatprep.subr.bf16.mxu0 0
    %1672 = vmatpush2.bf16.msra.mxu0 0
    %1673 = vmatprep.subr.bf16.mxu0 0
    %1674 = vmatpush2.bf16.msra.mxu0 0
    %1675 = vmatprep.subr.bf16.mxu0 0
    %1676 = vmatpush2.bf16.msra.mxu0 0
    %1677 = vmatprep.mubr.bf16.mxu0 0
    %1678 = vmatmul.mubr.bf16.gmra.mxu0 %v1643
    %v1679 = vpop.f32.mrf.mxu0
    %v1680 = vadd.f32 %v1628, %v1679
    %v1681 = vpop.f32.mrf.mxu0
    %v1682 = vpop.f32.mrf.mxu0
    %v1683 = vadd.f32 %v1628, %v1682
    %v1684 = vpop.f32.mrf.mxu0
    %1685 = vdwg.mxu0
    %v1686 = vadd.f32 %v1680, %v119
    %v1687 = vadd.f32 %v1683, %v120
    %v1688 = vld [vmem:[%s8] sm:$0x1]
    %v1689 = vld [vmem:[%s9] sm:$0x1]
    %v1690 = vsel %vm77, %v1686, 0.0
    %1691 = vadd.xlane.f32.xlu0 %v1690
    %v1692 = vpop.xlane.xlu0 %1691
    %v1693 = vsel %vm77, %v1687, 0.0
    %1694 = vadd.xlane.f32.xlu0 %v1693
    %v1695 = vpop.xlane.xlu0 %1694
    %v1696 = vmul.f32 %v1692, %v84
    %v1697 = vmul.f32 %v1695, %v84
    %v1698 = vsub.f32 %v1686, %v1696
    %v1699 = vsub.f32 %v1687, %v1697
    %v1700 = vmul.f32 %v1698, %v1698
    %v1701 = vmul.f32 %v1699, %v1699
    %v1702 = vsel %vm77, %v1700, 0.0
    %1703 = vadd.xlane.f32.xlu0 %v1702
    %v1704 = vpop.xlane.xlu0 %1703
    %v1705 = vsel %vm77, %v1701, 0.0
    %1706 = vadd.xlane.f32.xlu0 %v1705
    %v1707 = vpop.xlane.xlu0 %1706
    %v1708 = vmul.f32 %v1704, %v84
    %v1709 = vmul.f32 %v1707, %v84
    %v1710 = vadd.f32 %v1708, 1e-12
    %v1711 = vadd.f32 %v1709, 1e-12
    %v1712 = vrsqrt.pop %v1710
    %v1713 = vrsqrt.pop %v1711
    %v1714 = vmul.f32 %v1698, %v1712
    %v1715 = vmul.f32 %v1699, %v1713
    %v1717 = vlaneseq
    %v1718 = vshrl.u32 %v1717, 7
    %v1719 = vsub.s32 0, %v1718
    %v1720 = vrot.slane %v1688, %v1719
    %v1722 = vmul.f32 %v1714, %v1720
    %v1723 = vmul.f32 %v1715, %v1720
    %v1725 = vlaneseq
    %v1726 = vshrl.u32 %v1725, 7
    %v1727 = vsub.s32 0, %v1726
    %v1728 = vrot.slane %v1689, %v1727
    %v1730 = vadd.f32 %v1722, %v1728
    %v1731 = vadd.f32 %v1723, %v1728
    %v1732 = vpack.c.bf16 %v1731, %v1730
    %v1733 = vld [vmem:[%s10] sm:$0xf]
    %v1734 = vld [vmem:[%s10 + $0x4] sm:$0xf]
    %v1735 = vld [vmem:[%s10 + $0x8] sm:$0xf]
    %v1736 = vld [vmem:[%s10 + $0xc] sm:$0xf]
    %v1737 = vld [vmem:[%s11] sm:$0x1]
    %v1739 = vlaneseq
    %v1740 = vshrl.u32 %v1739, 7
    %v1741 = vsub.s32 0, %v1740
    %v1742 = vrot.slane %v1737, %v1741
    %v1748 = vunpack.c.l.b16 %v1733
    %v1749 = vunpack.c.l.b16 %v1734
    %v1750 = vunpack.c.l.b16 %v1735
    %v1751 = vunpack.c.l.b16 %v1736
    %v1752 = vpack.c.b16 %v1749, %v1748
    %v1753 = vpack.c.b16 %v1751, %v1750
    %v1757 = vsel %vm77, %v1732, 0
    %1759 = vmatprep.subr.bf16.mxu0 0
    %1760 = vmatpush1.bf16.msra.mxu0 0
    %1761 = vmatprep.subr.bf16.mxu0 0
    %1762 = vmatpush1.bf16.msra.mxu0 0
    %1763 = vmatprep.subr.bf16.mxu0 0
    %1764 = vmatpush1.bf16.msra.mxu0 0
    %1765 = vmatprep.subr.bf16.mxu0 0
    %1766 = vmatpush1.bf16.msra.mxu0 0
    %1767 = vmatprep.subr.bf16.mxu0 0
    %1768 = vmatpush1.bf16.msra.mxu0 0
    %1769 = vmatprep.subr.bf16.mxu0 0
    %1770 = vmatpush1.bf16.msra.mxu0 0
    %1771 = vmatprep.subr.bf16.mxu0 0
    %1772 = vmatpush1.bf16.msra.mxu0 %v1753
    %1773 = vmatprep.subr.bf16.mxu0 0
    %1774 = vmatpush1.bf16.msra.mxu0 %v1752
    %1775 = vmatprep.subr.bf16.mxu0 0
    %1776 = vmatpush2.bf16.msra.mxu0 0
    %1777 = vmatprep.subr.bf16.mxu0 0
    %1778 = vmatpush2.bf16.msra.mxu0 0
    %1779 = vmatprep.subr.bf16.mxu0 0
    %1780 = vmatpush2.bf16.msra.mxu0 0
    %1781 = vmatprep.subr.bf16.mxu0 0
    %1782 = vmatpush2.bf16.msra.mxu0 0
    %1783 = vmatprep.subr.bf16.mxu0 0
    %1784 = vmatpush2.bf16.msra.mxu0 0
    %1785 = vmatprep.subr.bf16.mxu0 0
    %1786 = vmatpush2.bf16.msra.mxu0 0
    %1787 = vmatprep.subr.bf16.mxu0 0
    %1788 = vmatpush2.bf16.msra.mxu0 0
    %1789 = vmatprep.subr.bf16.mxu0 0
    %1790 = vmatpush2.bf16.msra.mxu0 0
    %1791 = vmatprep.mubr.bf16.mxu0 0
    %1792 = vmatmul.mubr.bf16.gmra.mxu0 %v1757
    %v1793 = vpop.f32.mrf.mxu0
    %v1794 = vadd.f32 %v1742, %v1793
    %v1795 = vpop.f32.mrf.mxu0
    %v1796 = vpop.f32.mrf.mxu0
    %v1797 = vadd.f32 %v1742, %v1796
    %v1798 = vpop.f32.mrf.mxu0
    %1799 = vdwg.mxu0
    %v1800 = vmul.f32 %v1794, 0.5
    %v1801 = vmul.f32 %v1797, 0.5
    %v1802 = vmul.f32 %v1794, 0.044715
    %v1803 = vmul.f32 %v1797, 0.044715
    %v1804 = vmul.f32 %v1802, %v1794
    %v1805 = vmul.f32 %v1803, %v1797
    %v1806 = vmul.f32 %v1804, %v1794
    %v1807 = vmul.f32 %v1805, %v1797
    %v1808 = vadd.f32 %v1794, %v1806
    %v1809 = vadd.f32 %v1797, %v1807
    %v1810 = vmul.f32 %v1808, 0.7978846
    %v1811 = vmul.f32 %v1809, 0.7978846
    %v1812 = vtanh.pop %v1810
    %v1813 = vtanh.pop %v1811
    %v1814 = vadd.f32 %v1812, 1.0
    %v1815 = vadd.f32 %v1813, 1.0
    %v1816 = vmul.f32 %v1800, %v1814
    %v1817 = vmul.f32 %v1801, %v1815
    %v1818 = vpack.c.bf16 %v1817, %v1816
    %v1819 = vld [vmem:[%s12] sm:$0xf]
    %v1820 = vld [vmem:[%s12 + $0x4] sm:$0xf]
    %v1821 = vld [vmem:[%s12 + $0x8] sm:$0xf]
    %v1822 = vld [vmem:[%s12 + $0xc] sm:$0xf]
    %v1823 = vld [vmem:[%s12 + $0x10] sm:$0xf]
    %v1824 = vld [vmem:[%s12 + $0x14] sm:$0xf]
    %v1825 = vld [vmem:[%s12 + $0x18] sm:$0xf]
    %v1826 = vld [vmem:[%s12 + $0x1c] sm:$0xf]
    %v1827 = vld [vmem:[%s13] sm:$0x1]
    %v1829 = vlaneseq
    %v1830 = vshrl.u32 %v1829, 7
    %v1831 = vsub.s32 0, %v1830
    %v1832 = vrot.slane %v1827, %v1831
    %v1842 = vunpack.c.l.b16 %v1819
    %v1843 = vunpack.c.l.b16 %v1820
    %v1844 = vunpack.c.l.b16 %v1821
    %v1845 = vunpack.c.l.b16 %v1822
    %v1846 = vunpack.c.l.b16 %v1823
    %v1847 = vunpack.c.l.b16 %v1824
    %v1848 = vunpack.c.l.b16 %v1825
    %v1849 = vunpack.c.l.b16 %v1826
    %v1850 = vpack.c.b16 %v1843, %v1842
    %v1851 = vpack.c.b16 %v1845, %v1844
    %v1852 = vpack.c.b16 %v1847, %v1846
    %v1853 = vpack.c.b16 %v1849, %v1848
    %vm1858 = vcmask 523264
    %v1860 = vsel %vm1858, %v1818, 0
    %1862 = vmatprep.subr.bf16.mxu0 0
    %1863 = vmatpush1.bf16.msra.mxu0 0
    %1864 = vmatprep.subr.bf16.mxu0 0
    %1865 = vmatpush1.bf16.msra.mxu0 0
    %1866 = vmatprep.subr.bf16.mxu0 0
    %1867 = vmatpush1.bf16.msra.mxu0 0
    %1868 = vmatprep.subr.bf16.mxu0 0
    %1869 = vmatpush1.bf16.msra.mxu0 0
    %1870 = vmatprep.subr.bf16.mxu0 0
    %1871 = vmatpush1.bf16.msra.mxu0 %v1853
    %1872 = vmatprep.subr.bf16.mxu0 0
    %1873 = vmatpush1.bf16.msra.mxu0 %v1852
    %1874 = vmatprep.subr.bf16.mxu0 0
    %1875 = vmatpush1.bf16.msra.mxu0 %v1851
    %1876 = vmatprep.subr.bf16.mxu0 0
    %1877 = vmatpush1.bf16.msra.mxu0 %v1850
    %1878 = vmatprep.subr.bf16.mxu0 0
    %1879 = vmatpush2.bf16.msra.mxu0 0
    %1880 = vmatprep.subr.bf16.mxu0 0
    %1881 = vmatpush2.bf16.msra.mxu0 0
    %1882 = vmatprep.subr.bf16.mxu0 0
    %1883 = vmatpush2.bf16.msra.mxu0 0
    %1884 = vmatprep.subr.bf16.mxu0 0
    %1885 = vmatpush2.bf16.msra.mxu0 0
    %1886 = vmatprep.subr.bf16.mxu0 0
    %1887 = vmatpush2.bf16.msra.mxu0 0
    %1888 = vmatprep.subr.bf16.mxu0 0
    %1889 = vmatpush2.bf16.msra.mxu0 0
    %1890 = vmatprep.subr.bf16.mxu0 0
    %1891 = vmatpush2.bf16.msra.mxu0 0
    %1892 = vmatprep.subr.bf16.mxu0 0
    %1893 = vmatpush2.bf16.msra.mxu0 0
    %1894 = vmatprep.mubr.bf16.mxu0 0
    %1895 = vmatmul.mubr.bf16.gmra.mxu0 %v1860
    %v1896 = vpop.f32.mrf.mxu0
    %v1897 = vadd.f32 %v1832, %v1896
    %v1898 = vpop.f32.mrf.mxu0
    %v1899 = vpop.f32.mrf.mxu0
    %v1900 = vadd.f32 %v1832, %v1899
    %v1901 = vpop.f32.mrf.mxu0
    %1902 = vdwg.mxu0
    %v1903 = vadd.f32 %v1897, %v1730
    %v1904 = vadd.f32 %v1900, %v1731
    %v1905 = vld [vmem:[%s14] sm:$0x1]
    %v1906 = vld [vmem:[%s15] sm:$0x1]
    %v1907 = vsel %vm77, %v1903, 0.0
    %1908 = vadd.xlane.f32.xlu0 %v1907
    %v1909 = vpop.xlane.xlu0 %1908
    %v1910 = vsel %vm77, %v1904, 0.0
    %1911 = vadd.xlane.f32.xlu0 %v1910
    %v1912 = vpop.xlane.xlu0 %1911
    %v1913 = vmul.f32 %v1909, %v84
    %v1914 = vmul.f32 %v1912, %v84
    %v1915 = vsub.f32 %v1903, %v1913
    %v1916 = vsub.f32 %v1904, %v1914
    %v1917 = vmul.f32 %v1915, %v1915
    %v1918 = vmul.f32 %v1916, %v1916
    %v1919 = vsel %vm77, %v1917, 0.0
    %1920 = vadd.xlane.f32.xlu0 %v1919
    %v1921 = vpop.xlane.xlu0 %1920
    %v1922 = vsel %vm77, %v1918, 0.0
    %1923 = vadd.xlane.f32.xlu0 %v1922
    %v1924 = vpop.xlane.xlu0 %1923
    %v1925 = vmul.f32 %v1921, %v84
    %v1926 = vmul.f32 %v1924, %v84
    %v1927 = vadd.f32 %v1925, 1e-12
    %v1928 = vadd.f32 %v1926, 1e-12
    %v1929 = vrsqrt.pop %v1927
    %v1930 = vrsqrt.pop %v1928
    %v1931 = vmul.f32 %v1915, %v1929
    %v1932 = vmul.f32 %v1916, %v1930
    %v1934 = vlaneseq
    %v1935 = vshrl.u32 %v1934, 7
    %v1936 = vsub.s32 0, %v1935
    %v1937 = vrot.slane %v1905, %v1936
    %v1939 = vmul.f32 %v1931, %v1937
    %v1940 = vmul.f32 %v1932, %v1937
    %v1942 = vlaneseq
    %v1943 = vshrl.u32 %v1942, 7
    %v1944 = vsub.s32 0, %v1943
    %v1945 = vrot.slane %v1906, %v1944
    %v1947 = vadd.f32 %v1939, %v1945
    %v1948 = vadd.f32 %v1940, %v1945
    %v1949 = vpack.c.bf16 %v1948, %v1947
    %s1950 = scalar_lea.vmem %s4, 16
    %v1951 = vld [vmem:[%s1950] sm:$0xf]
    %v1952 = vld [vmem:[%s1950 + $0x4] sm:$0xf]
    %v1953 = vld [vmem:[%s1950 + $0x8] sm:$0xf]
    %v1954 = vld [vmem:[%s1950 + $0xc] sm:$0xf]
    %s1955 = scalar_lea.vmem %s5, 1
    %v1956 = vld [vmem:[%s1955] sm:$0x1]
    %v1958 = vlaneseq
    %v1959 = vshrl.u32 %v1958, 7
    %v1960 = vsub.s32 0, %v1959
    %v1961 = vrot.slane %v1956, %v1960
    %v1967 = vunpack.c.l.b16 %v1951
    %v1968 = vunpack.c.l.b16 %v1952
    %v1969 = vunpack.c.l.b16 %v1953
    %v1970 = vunpack.c.l.b16 %v1954
    %v1971 = vpack.c.b16 %v1968, %v1967
    %v1972 = vpack.c.b16 %v1970, %v1969
    %v1976 = vsel %vm77, %v1949, 0
    %1978 = vmatprep.subr.bf16.mxu0 0
    %1979 = vmatpush1.bf16.msra.mxu0 0
    %1980 = vmatprep.subr.bf16.mxu0 0
    %1981 = vmatpush1.bf16.msra.mxu0 0
    %1982 = vmatprep.subr.bf16.mxu0 0
    %1983 = vmatpush1.bf16.msra.mxu0 0
    %1984 = vmatprep.subr.bf16.mxu0 0
    %1985 = vmatpush1.bf16.msra.mxu0 0
    %1986 = vmatprep.subr.bf16.mxu0 0
    %1987 = vmatpush1.bf16.msra.mxu0 0
    %1988 = vmatprep.subr.bf16.mxu0 0
    %1989 = vmatpush1.bf16.msra.mxu0 0
    %1990 = vmatprep.subr.bf16.mxu0 0
    %1991 = vmatpush1.bf16.msra.mxu0 %v1972
    %1992 = vmatprep.subr.bf16.mxu0 0
    %1993 = vmatpush1.bf16.msra.mxu0 %v1971
    %1994 = vmatprep.subr.bf16.mxu0 0
    %1995 = vmatpush2.bf16.msra.mxu0 0
    %1996 = vmatprep.subr.bf16.mxu0 0
    %1997 = vmatpush2.bf16.msra.mxu0 0
    %1998 = vmatprep.subr.bf16.mxu0 0
    %1999 = vmatpush2.bf16.msra.mxu0 0
    %2000 = vmatprep.subr.bf16.mxu0 0
    %2001 = vmatpush2.bf16.msra.mxu0 0
    %2002 = vmatprep.subr.bf16.mxu0 0
    %2003 = vmatpush2.bf16.msra.mxu0 0
    %2004 = vmatprep.subr.bf16.mxu0 0
    %2005 = vmatpush2.bf16.msra.mxu0 0
    %2006 = vmatprep.subr.bf16.mxu0 0
    %2007 = vmatpush2.bf16.msra.mxu0 0
    %2008 = vmatprep.subr.bf16.mxu0 0
    %2009 = vmatpush2.bf16.msra.mxu0 0
    %2010 = vmatprep.mubr.bf16.mxu0 0
    %2011 = vmatmul.mubr.bf16.gmra.mxu0 %v1976
    %v2012 = vpop.f32.mrf.mxu0
    %v2013 = vadd.f32 %v1961, %v2012
    %v2014 = vpop.f32.mrf.mxu0
    %v2015 = vpop.f32.mrf.mxu0
    %v2016 = vadd.f32 %v1961, %v2015
    %v2017 = vpop.f32.mrf.mxu0
    %2018 = vdwg.mxu0
    %2021 = vrot.lane.b32.xlu0 %v2013, 112
    %v2022 = vpop.permute.xlu0 %2021
    %2023 = vrot.lane.b32.xlu0 %v2016, 112
    %v2024 = vpop.permute.xlu0 %2023
    %v2027 = vcombine.high %v2013, 0.0
    %v2029 = vunpack.c.l.s4 1983009808
    %v2030 = vunpack.c.0.s8 %v2029
    %v2031 = vlaneseq
    %v2032 = vshrl.u32 %v2031, 7
    %v2033 = vsub.s32 %v2030, %v2032
    %v2034 = vrot.slane %v2013, %v2033
    %v2036 = vunpack.c.l.s4 1983009808
    %v2037 = vunpack.c.0.s8 %v2036
    %v2038 = vlaneseq
    %v2039 = vshrl.u32 %v2038, 7
    %v2040 = vsub.s32 %v2037, %v2039
    %v2041 = vrot.slane %v2027, %v2040
    %v2042 = vcombine.high %v2022, 0.0
    %v2044 = vunpack.c.l.s4 1983009808
    %v2045 = vunpack.c.0.s8 %v2044
    %v2046 = vlaneseq
    %v2047 = vshrl.u32 %v2046, 7
    %v2048 = vsub.s32 %v2045, %v2047
    %v2049 = vrot.slane %v2022, %v2048
    %v2051 = vunpack.c.l.s4 1983009808
    %v2052 = vunpack.c.0.s8 %v2051
    %v2053 = vlaneseq
    %v2054 = vshrl.u32 %v2053, 7
    %v2055 = vsub.s32 %v2052, %v2054
    %v2056 = vrot.slane %v2042, %v2055
    %v2057 = vcombine.low %v2034, %v2049
    %v2058 = vcombine.high %v2034, %v2049
    %v2060 = vunpack.c.l.s4 1934713408
    %v2061 = vunpack.c.0.s8 %v2060
    %v2062 = vlaneseq
    %v2063 = vshrl.u32 %v2062, 7
    %v2064 = vsub.s32 %v2061, %v2063
    %v2065 = vrot.slane %v2057, %v2064
    %v2067 = vunpack.c.l.s4 1934713408
    %v2068 = vunpack.c.0.s8 %v2067
    %v2069 = vlaneseq
    %v2070 = vshrl.u32 %v2069, 7
    %v2071 = vsub.s32 %v2068, %v2070
    %v2072 = vrot.slane %v2058, %v2071
    %v2073 = vcombine.low %v2041, %v2056
    %v2074 = vcombine.high %v2041, %v2056
    %v2076 = vunpack.c.l.s4 1934713408
    %v2077 = vunpack.c.0.s8 %v2076
    %v2078 = vlaneseq
    %v2079 = vshrl.u32 %v2078, 7
    %v2080 = vsub.s32 %v2077, %v2079
    %v2081 = vrot.slane %v2073, %v2080
    %v2083 = vunpack.c.l.s4 1934713408
    %v2084 = vunpack.c.0.s8 %v2083
    %v2085 = vlaneseq
    %v2086 = vshrl.u32 %v2085, 7
    %v2087 = vsub.s32 %v2084, %v2086
    %v2088 = vrot.slane %v2074, %v2087
    %v2089 = vcombine.high %v2065, 0.0
    %v2090 = vcombine.high %v2072, 0.0
    %v2091 = vcombine.high %v2081, 0.0
    %v2092 = vcombine.high %v2088, 0.0
    %v2093 = vcombine.high %v2016, 0.0
    %v2095 = vunpack.c.l.s4 1983009808
    %v2096 = vunpack.c.0.s8 %v2095
    %v2097 = vlaneseq
    %v2098 = vshrl.u32 %v2097, 7
    %v2099 = vsub.s32 %v2096, %v2098
    %v2100 = vrot.slane %v2016, %v2099
    %v2102 = vunpack.c.l.s4 1983009808
    %v2103 = vunpack.c.0.s8 %v2102
    %v2104 = vlaneseq
    %v2105 = vshrl.u32 %v2104, 7
    %v2106 = vsub.s32 %v2103, %v2105
    %v2107 = vrot.slane %v2093, %v2106
    %v2108 = vcombine.high %v2024, 0.0
    %v2110 = vunpack.c.l.s4 1983009808
    %v2111 = vunpack.c.0.s8 %v2110
    %v2112 = vlaneseq
    %v2113 = vshrl.u32 %v2112, 7
    %v2114 = vsub.s32 %v2111, %v2113
    %v2115 = vrot.slane %v2024, %v2114
    %v2117 = vunpack.c.l.s4 1983009808
    %v2118 = vunpack.c.0.s8 %v2117
    %v2119 = vlaneseq
    %v2120 = vshrl.u32 %v2119, 7
    %v2121 = vsub.s32 %v2118, %v2120
    %v2122 = vrot.slane %v2108, %v2121
    %v2123 = vcombine.low %v2100, %v2115
    %v2124 = vcombine.high %v2100, %v2115
    %v2126 = vunpack.c.l.s4 1934713408
    %v2127 = vunpack.c.0.s8 %v2126
    %v2128 = vlaneseq
    %v2129 = vshrl.u32 %v2128, 7
    %v2130 = vsub.s32 %v2127, %v2129
    %v2131 = vrot.slane %v2123, %v2130
    %v2133 = vunpack.c.l.s4 1934713408
    %v2134 = vunpack.c.0.s8 %v2133
    %v2135 = vlaneseq
    %v2136 = vshrl.u32 %v2135, 7
    %v2137 = vsub.s32 %v2134, %v2136
    %v2138 = vrot.slane %v2124, %v2137
    %v2139 = vcombine.low %v2107, %v2122
    %v2140 = vcombine.high %v2107, %v2122
    %v2142 = vunpack.c.l.s4 1934713408
    %v2143 = vunpack.c.0.s8 %v2142
    %v2144 = vlaneseq
    %v2145 = vshrl.u32 %v2144, 7
    %v2146 = vsub.s32 %v2143, %v2145
    %v2147 = vrot.slane %v2139, %v2146
    %v2149 = vunpack.c.l.s4 1934713408
    %v2150 = vunpack.c.0.s8 %v2149
    %v2151 = vlaneseq
    %v2152 = vshrl.u32 %v2151, 7
    %v2153 = vsub.s32 %v2150, %v2152
    %v2154 = vrot.slane %v2140, %v2153
    %v2155 = vcombine.high %v2131, 0.0
    %v2156 = vcombine.high %v2138, 0.0
    %v2157 = vcombine.high %v2147, 0.0
    %v2158 = vcombine.high %v2154, 0.0
    %v2159 = vcombine.low %v2065, %v2072
    %v2161 = vunpack.c.l.s4 1983009808
    %v2162 = vunpack.c.0.s8 %v2161
    %v2163 = vlaneseq
    %v2164 = vshrl.u32 %v2163, 7
    %v2165 = vsub.s32 %v2162, %v2164
    %v2166 = vrot.slane %v2159, %v2165
    %v2167 = vcombine.low %v2089, %v2090
    %v2169 = vunpack.c.l.s4 1983009808
    %v2170 = vunpack.c.0.s8 %v2169
    %v2171 = vlaneseq
    %v2172 = vshrl.u32 %v2171, 7
    %v2173 = vsub.s32 %v2170, %v2172
    %v2174 = vrot.slane %v2167, %v2173
    %v2175 = vcombine.low %v2081, %v2088
    %v2177 = vunpack.c.l.s4 1983009808
    %v2178 = vunpack.c.0.s8 %v2177
    %v2179 = vlaneseq
    %v2180 = vshrl.u32 %v2179, 7
    %v2181 = vsub.s32 %v2178, %v2180
    %v2182 = vrot.slane %v2175, %v2181
    %v2183 = vcombine.low %v2091, %v2092
    %v2185 = vunpack.c.l.s4 1983009808
    %v2186 = vunpack.c.0.s8 %v2185
    %v2187 = vlaneseq
    %v2188 = vshrl.u32 %v2187, 7
    %v2189 = vsub.s32 %v2186, %v2188
    %v2190 = vrot.slane %v2183, %v2189
    %v2191 = vcombine.low %v2166, %v2174
    %v2193 = vunpack.c.l.s4 1934713408
    %v2194 = vunpack.c.0.s8 %v2193
    %v2195 = vlaneseq
    %v2196 = vshrl.u32 %v2195, 7
    %v2197 = vsub.s32 %v2194, %v2196
    %v2198 = vrot.slane %v2191, %v2197
    %v2199 = vcombine.low %v2182, %v2190
    %v2201 = vunpack.c.l.s4 1934713408
    %v2202 = vunpack.c.0.s8 %v2201
    %v2203 = vlaneseq
    %v2204 = vshrl.u32 %v2203, 7
    %v2205 = vsub.s32 %v2202, %v2204
    %v2206 = vrot.slane %v2199, %v2205
    %v2207 = vcombine.low %v2198, %v2206
    %v2208 = vcombine.high %v2198, %v2206
    %v2209 = vcombine.low %v2131, %v2138
    %v2211 = vunpack.c.l.s4 1983009808
    %v2212 = vunpack.c.0.s8 %v2211
    %v2213 = vlaneseq
    %v2214 = vshrl.u32 %v2213, 7
    %v2215 = vsub.s32 %v2212, %v2214
    %v2216 = vrot.slane %v2209, %v2215
    %v2217 = vcombine.low %v2155, %v2156
    %v2219 = vunpack.c.l.s4 1983009808
    %v2220 = vunpack.c.0.s8 %v2219
    %v2221 = vlaneseq
    %v2222 = vshrl.u32 %v2221, 7
    %v2223 = vsub.s32 %v2220, %v2222
    %v2224 = vrot.slane %v2217, %v2223
    %v2225 = vcombine.low %v2147, %v2154
    %v2227 = vunpack.c.l.s4 1983009808
    %v2228 = vunpack.c.0.s8 %v2227
    %v2229 = vlaneseq
    %v2230 = vshrl.u32 %v2229, 7
    %v2231 = vsub.s32 %v2228, %v2230
    %v2232 = vrot.slane %v2225, %v2231
    %v2233 = vcombine.low %v2157, %v2158
    %v2235 = vunpack.c.l.s4 1983009808
    %v2236 = vunpack.c.0.s8 %v2235
    %v2237 = vlaneseq
    %v2238 = vshrl.u32 %v2237, 7
    %v2239 = vsub.s32 %v2236, %v2238
    %v2240 = vrot.slane %v2233, %v2239
    %v2241 = vcombine.low %v2216, %v2224
    %v2243 = vunpack.c.l.s4 1934713408
    %v2244 = vunpack.c.0.s8 %v2243
    %v2245 = vlaneseq
    %v2246 = vshrl.u32 %v2245, 7
    %v2247 = vsub.s32 %v2244, %v2246
    %v2248 = vrot.slane %v2241, %v2247
    %v2249 = vcombine.low %v2232, %v2240
    %v2251 = vunpack.c.l.s4 1934713408
    %v2252 = vunpack.c.0.s8 %v2251
    %v2253 = vlaneseq
    %v2254 = vshrl.u32 %v2253, 7
    %v2255 = vsub.s32 %v2252, %v2254
    %v2256 = vrot.slane %v2249, %v2255
    %v2257 = vcombine.low %v2248, %v2256
    %v2258 = vcombine.high %v2248, %v2256
    %v2259 = vpack.c.bf16 %v2207, %v2207
    %v2260 = vpack.c.bf16 %v2208, %v2208
    %v2261 = vpack.c.bf16 %v2257, %v2257
    %v2262 = vpack.c.bf16 %v2258, %v2258
    %2263 = vrot.lane.b32.xlu0 %v2013, 96
    %v2264 = vpop.permute.xlu0 %2263
    %2265 = vrot.lane.b32.xlu0 %v2016, 96
    %v2266 = vpop.permute.xlu0 %2265
    %2267 = vrot.lane.b32.xlu0 %v2022, 96
    %v2268 = vpop.permute.xlu0 %2267
    %2269 = vrot.lane.b32.xlu0 %v2024, 96
    %v2270 = vpop.permute.xlu0 %2269
    %v2275 = vcombine.high %v2264, 0.0
    %v2277 = vunpack.c.l.s4 1983009808
    %v2278 = vunpack.c.0.s8 %v2277
    %v2279 = vlaneseq
    %v2280 = vshrl.u32 %v2279, 7
    %v2281 = vsub.s32 %v2278, %v2280
    %v2282 = vrot.slane %v2264, %v2281
    %v2284 = vunpack.c.l.s4 1983009808
    %v2285 = vunpack.c.0.s8 %v2284
    %v2286 = vlaneseq
    %v2287 = vshrl.u32 %v2286, 7
    %v2288 = vsub.s32 %v2285, %v2287
    %v2289 = vrot.slane %v2275, %v2288
    %v2290 = vcombine.high %v2268, 0.0
    %v2292 = vunpack.c.l.s4 1983009808
    %v2293 = vunpack.c.0.s8 %v2292
    %v2294 = vlaneseq
    %v2295 = vshrl.u32 %v2294, 7
    %v2296 = vsub.s32 %v2293, %v2295
    %v2297 = vrot.slane %v2268, %v2296
    %v2299 = vunpack.c.l.s4 1983009808
    %v2300 = vunpack.c.0.s8 %v2299
    %v2301 = vlaneseq
    %v2302 = vshrl.u32 %v2301, 7
    %v2303 = vsub.s32 %v2300, %v2302
    %v2304 = vrot.slane %v2290, %v2303
    %v2305 = vcombine.low %v2282, %v2297
    %v2306 = vcombine.high %v2282, %v2297
    %v2308 = vunpack.c.l.s4 1934713408
    %v2309 = vunpack.c.0.s8 %v2308
    %v2310 = vlaneseq
    %v2311 = vshrl.u32 %v2310, 7
    %v2312 = vsub.s32 %v2309, %v2311
    %v2313 = vrot.slane %v2305, %v2312
    %v2315 = vunpack.c.l.s4 1934713408
    %v2316 = vunpack.c.0.s8 %v2315
    %v2317 = vlaneseq
    %v2318 = vshrl.u32 %v2317, 7
    %v2319 = vsub.s32 %v2316, %v2318
    %v2320 = vrot.slane %v2306, %v2319
    %v2321 = vcombine.low %v2289, %v2304
    %v2322 = vcombine.high %v2289, %v2304
    %v2324 = vunpack.c.l.s4 1934713408
    %v2325 = vunpack.c.0.s8 %v2324
    %v2326 = vlaneseq
    %v2327 = vshrl.u32 %v2326, 7
    %v2328 = vsub.s32 %v2325, %v2327
    %v2329 = vrot.slane %v2321, %v2328
    %v2331 = vunpack.c.l.s4 1934713408
    %v2332 = vunpack.c.0.s8 %v2331
    %v2333 = vlaneseq
    %v2334 = vshrl.u32 %v2333, 7
    %v2335 = vsub.s32 %v2332, %v2334
    %v2336 = vrot.slane %v2322, %v2335
    %v2337 = vcombine.high %v2313, 0.0
    %v2338 = vcombine.high %v2320, 0.0
    %v2339 = vcombine.high %v2329, 0.0
    %v2340 = vcombine.high %v2336, 0.0
    %v2341 = vcombine.high %v2266, 0.0
    %v2343 = vunpack.c.l.s4 1983009808
    %v2344 = vunpack.c.0.s8 %v2343
    %v2345 = vlaneseq
    %v2346 = vshrl.u32 %v2345, 7
    %v2347 = vsub.s32 %v2344, %v2346
    %v2348 = vrot.slane %v2266, %v2347
    %v2350 = vunpack.c.l.s4 1983009808
    %v2351 = vunpack.c.0.s8 %v2350
    %v2352 = vlaneseq
    %v2353 = vshrl.u32 %v2352, 7
    %v2354 = vsub.s32 %v2351, %v2353
    %v2355 = vrot.slane %v2341, %v2354
    %v2356 = vcombine.high %v2270, 0.0
    %v2358 = vunpack.c.l.s4 1983009808
    %v2359 = vunpack.c.0.s8 %v2358
    %v2360 = vlaneseq
    %v2361 = vshrl.u32 %v2360, 7
    %v2362 = vsub.s32 %v2359, %v2361
    %v2363 = vrot.slane %v2270, %v2362
    %v2365 = vunpack.c.l.s4 1983009808
    %v2366 = vunpack.c.0.s8 %v2365
    %v2367 = vlaneseq
    %v2368 = vshrl.u32 %v2367, 7
    %v2369 = vsub.s32 %v2366, %v2368
    %v2370 = vrot.slane %v2356, %v2369
    %v2371 = vcombine.low %v2348, %v2363
    %v2372 = vcombine.high %v2348, %v2363
    %v2374 = vunpack.c.l.s4 1934713408
    %v2375 = vunpack.c.0.s8 %v2374
    %v2376 = vlaneseq
    %v2377 = vshrl.u32 %v2376, 7
    %v2378 = vsub.s32 %v2375, %v2377
    %v2379 = vrot.slane %v2371, %v2378
    %v2381 = vunpack.c.l.s4 1934713408
    %v2382 = vunpack.c.0.s8 %v2381
    %v2383 = vlaneseq
    %v2384 = vshrl.u32 %v2383, 7
    %v2385 = vsub.s32 %v2382, %v2384
    %v2386 = vrot.slane %v2372, %v2385
    %v2387 = vcombine.low %v2355, %v2370
    %v2388 = vcombine.high %v2355, %v2370
    %v2390 = vunpack.c.l.s4 1934713408
    %v2391 = vunpack.c.0.s8 %v2390
    %v2392 = vlaneseq
    %v2393 = vshrl.u32 %v2392, 7
    %v2394 = vsub.s32 %v2391, %v2393
    %v2395 = vrot.slane %v2387, %v2394
    %v2397 = vunpack.c.l.s4 1934713408
    %v2398 = vunpack.c.0.s8 %v2397
    %v2399 = vlaneseq
    %v2400 = vshrl.u32 %v2399, 7
    %v2401 = vsub.s32 %v2398, %v2400
    %v2402 = vrot.slane %v2388, %v2401
    %v2403 = vcombine.high %v2379, 0.0
    %v2404 = vcombine.high %v2386, 0.0
    %v2405 = vcombine.high %v2395, 0.0
    %v2406 = vcombine.high %v2402, 0.0
    %v2407 = vcombine.low %v2313, %v2320
    %v2409 = vunpack.c.l.s4 1983009808
    %v2410 = vunpack.c.0.s8 %v2409
    %v2411 = vlaneseq
    %v2412 = vshrl.u32 %v2411, 7
    %v2413 = vsub.s32 %v2410, %v2412
    %v2414 = vrot.slane %v2407, %v2413
    %v2415 = vcombine.low %v2337, %v2338
    %v2417 = vunpack.c.l.s4 1983009808
    %v2418 = vunpack.c.0.s8 %v2417
    %v2419 = vlaneseq
    %v2420 = vshrl.u32 %v2419, 7
    %v2421 = vsub.s32 %v2418, %v2420
    %v2422 = vrot.slane %v2415, %v2421
    %v2423 = vcombine.low %v2329, %v2336
    %v2425 = vunpack.c.l.s4 1983009808
    %v2426 = vunpack.c.0.s8 %v2425
    %v2427 = vlaneseq
    %v2428 = vshrl.u32 %v2427, 7
    %v2429 = vsub.s32 %v2426, %v2428
    %v2430 = vrot.slane %v2423, %v2429
    %v2431 = vcombine.low %v2339, %v2340
    %v2433 = vunpack.c.l.s4 1983009808
    %v2434 = vunpack.c.0.s8 %v2433
    %v2435 = vlaneseq
    %v2436 = vshrl.u32 %v2435, 7
    %v2437 = vsub.s32 %v2434, %v2436
    %v2438 = vrot.slane %v2431, %v2437
    %v2439 = vcombine.low %v2414, %v2422
    %v2441 = vunpack.c.l.s4 1934713408
    %v2442 = vunpack.c.0.s8 %v2441
    %v2443 = vlaneseq
    %v2444 = vshrl.u32 %v2443, 7
    %v2445 = vsub.s32 %v2442, %v2444
    %v2446 = vrot.slane %v2439, %v2445
    %v2447 = vcombine.low %v2430, %v2438
    %v2449 = vunpack.c.l.s4 1934713408
    %v2450 = vunpack.c.0.s8 %v2449
    %v2451 = vlaneseq
    %v2452 = vshrl.u32 %v2451, 7
    %v2453 = vsub.s32 %v2450, %v2452
    %v2454 = vrot.slane %v2447, %v2453
    %v2455 = vcombine.low %v2446, %v2454
    %v2456 = vcombine.high %v2446, %v2454
    %v2457 = vcombine.low %v2379, %v2386
    %v2459 = vunpack.c.l.s4 1983009808
    %v2460 = vunpack.c.0.s8 %v2459
    %v2461 = vlaneseq
    %v2462 = vshrl.u32 %v2461, 7
    %v2463 = vsub.s32 %v2460, %v2462
    %v2464 = vrot.slane %v2457, %v2463
    %v2465 = vcombine.low %v2403, %v2404
    %v2467 = vunpack.c.l.s4 1983009808
    %v2468 = vunpack.c.0.s8 %v2467
    %v2469 = vlaneseq
    %v2470 = vshrl.u32 %v2469, 7
    %v2471 = vsub.s32 %v2468, %v2470
    %v2472 = vrot.slane %v2465, %v2471
    %v2473 = vcombine.low %v2395, %v2402
    %v2475 = vunpack.c.l.s4 1983009808
    %v2476 = vunpack.c.0.s8 %v2475
    %v2477 = vlaneseq
    %v2478 = vshrl.u32 %v2477, 7
    %v2479 = vsub.s32 %v2476, %v2478
    %v2480 = vrot.slane %v2473, %v2479
    %v2481 = vcombine.low %v2405, %v2406
    %v2483 = vunpack.c.l.s4 1983009808
    %v2484 = vunpack.c.0.s8 %v2483
    %v2485 = vlaneseq
    %v2486 = vshrl.u32 %v2485, 7
    %v2487 = vsub.s32 %v2484, %v2486
    %v2488 = vrot.slane %v2481, %v2487
    %v2489 = vcombine.low %v2464, %v2472
    %v2491 = vunpack.c.l.s4 1934713408
    %v2492 = vunpack.c.0.s8 %v2491
    %v2493 = vlaneseq
    %v2494 = vshrl.u32 %v2493, 7
    %v2495 = vsub.s32 %v2492, %v2494
    %v2496 = vrot.slane %v2489, %v2495
    %v2497 = vcombine.low %v2480, %v2488
    %v2499 = vunpack.c.l.s4 1934713408
    %v2500 = vunpack.c.0.s8 %v2499
    %v2501 = vlaneseq
    %v2502 = vshrl.u32 %v2501, 7
    %v2503 = vsub.s32 %v2500, %v2502
    %v2504 = vrot.slane %v2497, %v2503
    %v2505 = vcombine.low %v2496, %v2504
    %v2506 = vcombine.high %v2496, %v2504
    %v2507 = vpack.c.bf16 %v2455, %v2455
    %v2508 = vpack.c.bf16 %v2456, %v2456
    %v2509 = vpack.c.bf16 %v2505, %v2505
    %v2510 = vpack.c.bf16 %v2506, %v2506
    %2511 = vrot.lane.b32.xlu0 %v2013, 64
    %v2512 = vpop.permute.xlu0 %2511
    %2513 = vrot.lane.b32.xlu0 %v2016, 64
    %v2514 = vpop.permute.xlu0 %2513
    %2515 = vrot.lane.b32.xlu0 %v2022, 64
    %v2516 = vpop.permute.xlu0 %2515
    %2517 = vrot.lane.b32.xlu0 %v2024, 64
    %v2518 = vpop.permute.xlu0 %2517
    %v2523 = vcombine.high %v2512, 0.0
    %v2525 = vunpack.c.l.s4 1983009808
    %v2526 = vunpack.c.0.s8 %v2525
    %v2527 = vlaneseq
    %v2528 = vshrl.u32 %v2527, 7
    %v2529 = vsub.s32 %v2526, %v2528
    %v2530 = vrot.slane %v2512, %v2529
    %v2532 = vunpack.c.l.s4 1983009808
    %v2533 = vunpack.c.0.s8 %v2532
    %v2534 = vlaneseq
    %v2535 = vshrl.u32 %v2534, 7
    %v2536 = vsub.s32 %v2533, %v2535
    %v2537 = vrot.slane %v2523, %v2536
    %v2538 = vcombine.high %v2516, 0.0
    %v2540 = vunpack.c.l.s4 1983009808
    %v2541 = vunpack.c.0.s8 %v2540
    %v2542 = vlaneseq
    %v2543 = vshrl.u32 %v2542, 7
    %v2544 = vsub.s32 %v2541, %v2543
    %v2545 = vrot.slane %v2516, %v2544
    %v2547 = vunpack.c.l.s4 1983009808
    %v2548 = vunpack.c.0.s8 %v2547
    %v2549 = vlaneseq
    %v2550 = vshrl.u32 %v2549, 7
    %v2551 = vsub.s32 %v2548, %v2550
    %v2552 = vrot.slane %v2538, %v2551
    %v2553 = vcombine.low %v2530, %v2545
    %v2554 = vcombine.high %v2530, %v2545
    %v2556 = vunpack.c.l.s4 1934713408
    %v2557 = vunpack.c.0.s8 %v2556
    %v2558 = vlaneseq
    %v2559 = vshrl.u32 %v2558, 7
    %v2560 = vsub.s32 %v2557, %v2559
    %v2561 = vrot.slane %v2553, %v2560
    %v2563 = vunpack.c.l.s4 1934713408
    %v2564 = vunpack.c.0.s8 %v2563
    %v2565 = vlaneseq
    %v2566 = vshrl.u32 %v2565, 7
    %v2567 = vsub.s32 %v2564, %v2566
    %v2568 = vrot.slane %v2554, %v2567
    %v2569 = vcombine.low %v2537, %v2552
    %v2570 = vcombine.high %v2537, %v2552
    %v2572 = vunpack.c.l.s4 1934713408
    %v2573 = vunpack.c.0.s8 %v2572
    %v2574 = vlaneseq
    %v2575 = vshrl.u32 %v2574, 7
    %v2576 = vsub.s32 %v2573, %v2575
    %v2577 = vrot.slane %v2569, %v2576
    %v2579 = vunpack.c.l.s4 1934713408
    %v2580 = vunpack.c.0.s8 %v2579
    %v2581 = vlaneseq
    %v2582 = vshrl.u32 %v2581, 7
    %v2583 = vsub.s32 %v2580, %v2582
    %v2584 = vrot.slane %v2570, %v2583
    %v2585 = vcombine.high %v2561, 0.0
    %v2586 = vcombine.high %v2568, 0.0
    %v2587 = vcombine.high %v2577, 0.0
    %v2588 = vcombine.high %v2584, 0.0
    %v2589 = vcombine.high %v2514, 0.0
    %v2591 = vunpack.c.l.s4 1983009808
    %v2592 = vunpack.c.0.s8 %v2591
    %v2593 = vlaneseq
    %v2594 = vshrl.u32 %v2593, 7
    %v2595 = vsub.s32 %v2592, %v2594
    %v2596 = vrot.slane %v2514, %v2595
    %v2598 = vunpack.c.l.s4 1983009808
    %v2599 = vunpack.c.0.s8 %v2598
    %v2600 = vlaneseq
    %v2601 = vshrl.u32 %v2600, 7
    %v2602 = vsub.s32 %v2599, %v2601
    %v2603 = vrot.slane %v2589, %v2602
    %v2604 = vcombine.high %v2518, 0.0
    %v2606 = vunpack.c.l.s4 1983009808
    %v2607 = vunpack.c.0.s8 %v2606
    %v2608 = vlaneseq
    %v2609 = vshrl.u32 %v2608, 7
    %v2610 = vsub.s32 %v2607, %v2609
    %v2611 = vrot.slane %v2518, %v2610
    %v2613 = vunpack.c.l.s4 1983009808
    %v2614 = vunpack.c.0.s8 %v2613
    %v2615 = vlaneseq
    %v2616 = vshrl.u32 %v2615, 7
    %v2617 = vsub.s32 %v2614, %v2616
    %v2618 = vrot.slane %v2604, %v2617
    %v2619 = vcombine.low %v2596, %v2611
    %v2620 = vcombine.high %v2596, %v2611
    %v2622 = vunpack.c.l.s4 1934713408
    %v2623 = vunpack.c.0.s8 %v2622
    %v2624 = vlaneseq
    %v2625 = vshrl.u32 %v2624, 7
    %v2626 = vsub.s32 %v2623, %v2625
    %v2627 = vrot.slane %v2619, %v2626
    %v2629 = vunpack.c.l.s4 1934713408
    %v2630 = vunpack.c.0.s8 %v2629
    %v2631 = vlaneseq
    %v2632 = vshrl.u32 %v2631, 7
    %v2633 = vsub.s32 %v2630, %v2632
    %v2634 = vrot.slane %v2620, %v2633
    %v2635 = vcombine.low %v2603, %v2618
    %v2636 = vcombine.high %v2603, %v2618
    %v2638 = vunpack.c.l.s4 1934713408
    %v2639 = vunpack.c.0.s8 %v2638
    %v2640 = vlaneseq
    %v2641 = vshrl.u32 %v2640, 7
    %v2642 = vsub.s32 %v2639, %v2641
    %v2643 = vrot.slane %v2635, %v2642
    %v2645 = vunpack.c.l.s4 1934713408
    %v2646 = vunpack.c.0.s8 %v2645
    %v2647 = vlaneseq
    %v2648 = vshrl.u32 %v2647, 7
    %v2649 = vsub.s32 %v2646, %v2648
    %v2650 = vrot.slane %v2636, %v2649
    %v2651 = vcombine.high %v2627, 0.0
    %v2652 = vcombine.high %v2634, 0.0
    %v2653 = vcombine.high %v2643, 0.0
    %v2654 = vcombine.high %v2650, 0.0
    %v2655 = vcombine.low %v2561, %v2568
    %v2657 = vunpack.c.l.s4 1983009808
    %v2658 = vunpack.c.0.s8 %v2657
    %v2659 = vlaneseq
    %v2660 = vshrl.u32 %v2659, 7
    %v2661 = vsub.s32 %v2658, %v2660
    %v2662 = vrot.slane %v2655, %v2661
    %v2663 = vcombine.low %v2585, %v2586
    %v2665 = vunpack.c.l.s4 1983009808
    %v2666 = vunpack.c.0.s8 %v2665
    %v2667 = vlaneseq
    %v2668 = vshrl.u32 %v2667, 7
    %v2669 = vsub.s32 %v2666, %v2668
    %v2670 = vrot.slane %v2663, %v2669
    %v2671 = vcombine.low %v2577, %v2584
    %v2673 = vunpack.c.l.s4 1983009808
    %v2674 = vunpack.c.0.s8 %v2673
    %v2675 = vlaneseq
    %v2676 = vshrl.u32 %v2675, 7
    %v2677 = vsub.s32 %v2674, %v2676
    %v2678 = vrot.slane %v2671, %v2677
    %v2679 = vcombine.low %v2587, %v2588
    %v2681 = vunpack.c.l.s4 1983009808
    %v2682 = vunpack.c.0.s8 %v2681
    %v2683 = vlaneseq
    %v2684 = vshrl.u32 %v2683, 7
    %v2685 = vsub.s32 %v2682, %v2684
    %v2686 = vrot.slane %v2679, %v2685
    %v2687 = vcombine.low %v2662, %v2670
    %v2689 = vunpack.c.l.s4 1934713408
    %v2690 = vunpack.c.0.s8 %v2689
    %v2691 = vlaneseq
    %v2692 = vshrl.u32 %v2691, 7
    %v2693 = vsub.s32 %v2690, %v2692
    %v2694 = vrot.slane %v2687, %v2693
    %v2695 = vcombine.low %v2678, %v2686
    %v2697 = vunpack.c.l.s4 1934713408
    %v2698 = vunpack.c.0.s8 %v2697
    %v2699 = vlaneseq
    %v2700 = vshrl.u32 %v2699, 7
    %v2701 = vsub.s32 %v2698, %v2700
    %v2702 = vrot.slane %v2695, %v2701
    %v2703 = vcombine.low %v2694, %v2702
    %v2704 = vcombine.high %v2694, %v2702
    %v2705 = vcombine.low %v2627, %v2634
    %v2707 = vunpack.c.l.s4 1983009808
    %v2708 = vunpack.c.0.s8 %v2707
    %v2709 = vlaneseq
    %v2710 = vshrl.u32 %v2709, 7
    %v2711 = vsub.s32 %v2708, %v2710
    %v2712 = vrot.slane %v2705, %v2711
    %v2713 = vcombine.low %v2651, %v2652
    %v2715 = vunpack.c.l.s4 1983009808
    %v2716 = vunpack.c.0.s8 %v2715
    %v2717 = vlaneseq
    %v2718 = vshrl.u32 %v2717, 7
    %v2719 = vsub.s32 %v2716, %v2718
    %v2720 = vrot.slane %v2713, %v2719
    %v2721 = vcombine.low %v2643, %v2650
    %v2723 = vunpack.c.l.s4 1983009808
    %v2724 = vunpack.c.0.s8 %v2723
    %v2725 = vlaneseq
    %v2726 = vshrl.u32 %v2725, 7
    %v2727 = vsub.s32 %v2724, %v2726
    %v2728 = vrot.slane %v2721, %v2727
    %v2729 = vcombine.low %v2653, %v2654
    %v2731 = vunpack.c.l.s4 1983009808
    %v2732 = vunpack.c.0.s8 %v2731
    %v2733 = vlaneseq
    %v2734 = vshrl.u32 %v2733, 7
    %v2735 = vsub.s32 %v2732, %v2734
    %v2736 = vrot.slane %v2729, %v2735
    %v2737 = vcombine.low %v2712, %v2720
    %v2739 = vunpack.c.l.s4 1934713408
    %v2740 = vunpack.c.0.s8 %v2739
    %v2741 = vlaneseq
    %v2742 = vshrl.u32 %v2741, 7
    %v2743 = vsub.s32 %v2740, %v2742
    %v2744 = vrot.slane %v2737, %v2743
    %v2745 = vcombine.low %v2728, %v2736
    %v2747 = vunpack.c.l.s4 1934713408
    %v2748 = vunpack.c.0.s8 %v2747
    %v2749 = vlaneseq
    %v2750 = vshrl.u32 %v2749, 7
    %v2751 = vsub.s32 %v2748, %v2750
    %v2752 = vrot.slane %v2745, %v2751
    %v2753 = vcombine.low %v2744, %v2752
    %v2754 = vcombine.high %v2744, %v2752
    %v2755 = vpack.c.bf16 %v2703, %v2703
    %v2756 = vpack.c.bf16 %v2704, %v2704
    %v2757 = vpack.c.bf16 %v2753, %v2753
    %v2758 = vpack.c.bf16 %v2754, %v2754
    %v2760 = vsel %vm957, %v2259, 0
    %v2763 = vsel %vm957, %v2507, 0
    %2765 = vmatprep.subr.bf16.mxu0 0
    %2766 = vmatpush1.bf16.xpose.msra.mxu0 0
    %2767 = vmatprep.subr.bf16.mxu0 0
    %2768 = vmatpush1.bf16.xpose.msra.mxu0 0
    %2769 = vmatprep.subr.bf16.mxu0 0
    %2770 = vmatpush1.bf16.xpose.msra.mxu0 0
    %2771 = vmatprep.subr.bf16.mxu0 0
    %2772 = vmatpush1.bf16.xpose.msra.mxu0 0
    %2773 = vmatprep.subr.bf16.mxu0 0
    %2774 = vmatpush1.bf16.xpose.msra.mxu0 0
    %2775 = vmatprep.subr.bf16.mxu0 0
    %2776 = vmatpush1.bf16.xpose.msra.mxu0 0
    %2777 = vmatprep.subr.bf16.mxu0 0
    %2778 = vmatpush1.bf16.xpose.msra.mxu0 0
    %2779 = vmatprep.subr.bf16.mxu0 0
    %2780 = vmatpush1.bf16.xpose.msra.mxu0 %v2763
    %2781 = vmatprep.subr.bf16.mxu0 0
    %2782 = vmatpush2.bf16.xpose.msra.mxu0 0
    %2783 = vmatprep.subr.bf16.mxu0 0
    %2784 = vmatpush2.bf16.xpose.msra.mxu0 0
    %2785 = vmatprep.subr.bf16.mxu0 0
    %2786 = vmatpush2.bf16.xpose.msra.mxu0 0
    %2787 = vmatprep.subr.bf16.mxu0 0
    %2788 = vmatpush2.bf16.xpose.msra.mxu0 0
    %2789 = vmatprep.subr.bf16.mxu0 0
    %2790 = vmatpush2.bf16.xpose.msra.mxu0 0
    %2791 = vmatprep.subr.bf16.mxu0 0
    %2792 = vmatpush2.bf16.xpose.msra.mxu0 0
    %2793 = vmatprep.subr.bf16.mxu0 0
    %2794 = vmatpush2.bf16.xpose.msra.mxu0 0
    %2795 = vmatprep.subr.bf16.mxu0 0
    %2796 = vmatpush2.bf16.xpose.msra.mxu0 0
    %2797 = vmatprep.mubr.bf16.mxu0 0
    %2798 = vmatmul.mubr.bf16.gmra.mxu0 %v2760
    %v2799 = vpop.f32.mrf.mxu0
    %v2800 = vadd.f32 %v940, %v2799
    %v2801 = vpop.f32.mrf.mxu0
    %v2802 = vpop.f32.mrf.mxu0
    %v2803 = vpop.f32.mrf.mxu0
    %2804 = vdwg.mxu0
    %v2806 = vsel %vm957, %v2260, 0
    %v2809 = vsel %vm957, %v2508, 0
    %2811 = vmatprep.subr.bf16.mxu0 0
    %2812 = vmatpush1.bf16.xpose.msra.mxu0 0
    %2813 = vmatprep.subr.bf16.mxu0 0
    %2814 = vmatpush1.bf16.xpose.msra.mxu0 0
    %2815 = vmatprep.subr.bf16.mxu0 0
    %2816 = vmatpush1.bf16.xpose.msra.mxu0 0
    %2817 = vmatprep.subr.bf16.mxu0 0
    %2818 = vmatpush1.bf16.xpose.msra.mxu0 0
    %2819 = vmatprep.subr.bf16.mxu0 0
    %2820 = vmatpush1.bf16.xpose.msra.mxu0 0
    %2821 = vmatprep.subr.bf16.mxu0 0
    %2822 = vmatpush1.bf16.xpose.msra.mxu0 0
    %2823 = vmatprep.subr.bf16.mxu0 0
    %2824 = vmatpush1.bf16.xpose.msra.mxu0 0
    %2825 = vmatprep.subr.bf16.mxu0 0
    %2826 = vmatpush1.bf16.xpose.msra.mxu0 %v2809
    %2827 = vmatprep.subr.bf16.mxu0 0
    %2828 = vmatpush2.bf16.xpose.msra.mxu0 0
    %2829 = vmatprep.subr.bf16.mxu0 0
    %2830 = vmatpush2.bf16.xpose.msra.mxu0 0
    %2831 = vmatprep.subr.bf16.mxu0 0
    %2832 = vmatpush2.bf16.xpose.msra.mxu0 0
    %2833 = vmatprep.subr.bf16.mxu0 0
    %2834 = vmatpush2.bf16.xpose.msra.mxu0 0
    %2835 = vmatprep.subr.bf16.mxu0 0
    %2836 = vmatpush2.bf16.xpose.msra.mxu0 0
    %2837 = vmatprep.subr.bf16.mxu0 0
    %2838 = vmatpush2.bf16.xpose.msra.mxu0 0
    %2839 = vmatprep.subr.bf16.mxu0 0
    %2840 = vmatpush2.bf16.xpose.msra.mxu0 0
    %2841 = vmatprep.subr.bf16.mxu0 0
    %2842 = vmatpush2.bf16.xpose.msra.mxu0 0
    %2843 = vmatprep.mubr.bf16.mxu0 0
    %2844 = vmatmul.mubr.bf16.gmra.mxu0 %v2806
    %v2845 = vpop.f32.mrf.mxu0
    %v2846 = vadd.f32 %v944, %v2845
    %v2847 = vpop.f32.mrf.mxu0
    %v2848 = vpop.f32.mrf.mxu0
    %v2849 = vpop.f32.mrf.mxu0
    %2850 = vdwg.mxu0
    %v2852 = vsel %vm957, %v2261, 0
    %v2855 = vsel %vm957, %v2509, 0
    %2857 = vmatprep.subr.bf16.mxu0 0
    %2858 = vmatpush1.bf16.xpose.msra.mxu0 0
    %2859 = vmatprep.subr.bf16.mxu0 0
    %2860 = vmatpush1.bf16.xpose.msra.mxu0 0
    %2861 = vmatprep.subr.bf16.mxu0 0
    %2862 = vmatpush1.bf16.xpose.msra.mxu0 0
    %2863 = vmatprep.subr.bf16.mxu0 0
    %2864 = vmatpush1.bf16.xpose.msra.mxu0 0
    %2865 = vmatprep.subr.bf16.mxu0 0
    %2866 = vmatpush1.bf16.xpose.msra.mxu0 0
    %2867 = vmatprep.subr.bf16.mxu0 0
    %2868 = vmatpush1.bf16.xpose.msra.mxu0 0
    %2869 = vmatprep.subr.bf16.mxu0 0
    %2870 = vmatpush1.bf16.xpose.msra.mxu0 0
    %2871 = vmatprep.subr.bf16.mxu0 0
    %2872 = vmatpush1.bf16.xpose.msra.mxu0 %v2855
    %2873 = vmatprep.subr.bf16.mxu0 0
    %2874 = vmatpush2.bf16.xpose.msra.mxu0 0
    %2875 = vmatprep.subr.bf16.mxu0 0
    %2876 = vmatpush2.bf16.xpose.msra.mxu0 0
    %2877 = vmatprep.subr.bf16.mxu0 0
    %2878 = vmatpush2.bf16.xpose.msra.mxu0 0
    %2879 = vmatprep.subr.bf16.mxu0 0
    %2880 = vmatpush2.bf16.xpose.msra.mxu0 0
    %2881 = vmatprep.subr.bf16.mxu0 0
    %2882 = vmatpush2.bf16.xpose.msra.mxu0 0
    %2883 = vmatprep.subr.bf16.mxu0 0
    %2884 = vmatpush2.bf16.xpose.msra.mxu0 0
    %2885 = vmatprep.subr.bf16.mxu0 0
    %2886 = vmatpush2.bf16.xpose.msra.mxu0 0
    %2887 = vmatprep.subr.bf16.mxu0 0
    %2888 = vmatpush2.bf16.xpose.msra.mxu0 0
    %2889 = vmatprep.mubr.bf16.mxu0 0
    %2890 = vmatmul.mubr.bf16.gmra.mxu0 %v2852
    %v2891 = vpop.f32.mrf.mxu0
    %v2892 = vadd.f32 %v948, %v2891
    %v2893 = vpop.f32.mrf.mxu0
    %v2894 = vpop.f32.mrf.mxu0
    %v2895 = vpop.f32.mrf.mxu0
    %2896 = vdwg.mxu0
    %v2898 = vsel %vm957, %v2262, 0
    %v2901 = vsel %vm957, %v2510, 0
    %2903 = vmatprep.subr.bf16.mxu0 0
    %2904 = vmatpush1.bf16.xpose.msra.mxu0 0
    %2905 = vmatprep.subr.bf16.mxu0 0
    %2906 = vmatpush1.bf16.xpose.msra.mxu0 0
    %2907 = vmatprep.subr.bf16.mxu0 0
    %2908 = vmatpush1.bf16.xpose.msra.mxu0 0
    %2909 = vmatprep.subr.bf16.mxu0 0
    %2910 = vmatpush1.bf16.xpose.msra.mxu0 0
    %2911 = vmatprep.subr.bf16.mxu0 0
    %2912 = vmatpush1.bf16.xpose.msra.mxu0 0
    %2913 = vmatprep.subr.bf16.mxu0 0
    %2914 = vmatpush1.bf16.xpose.msra.mxu0 0
    %2915 = vmatprep.subr.bf16.mxu0 0
    %2916 = vmatpush1.bf16.xpose.msra.mxu0 0
    %2917 = vmatprep.subr.bf16.mxu0 0
    %2918 = vmatpush1.bf16.xpose.msra.mxu0 %v2901
    %2919 = vmatprep.subr.bf16.mxu0 0
    %2920 = vmatpush2.bf16.xpose.msra.mxu0 0
    %2921 = vmatprep.subr.bf16.mxu0 0
    %2922 = vmatpush2.bf16.xpose.msra.mxu0 0
    %2923 = vmatprep.subr.bf16.mxu0 0
    %2924 = vmatpush2.bf16.xpose.msra.mxu0 0
    %2925 = vmatprep.subr.bf16.mxu0 0
    %2926 = vmatpush2.bf16.xpose.msra.mxu0 0
    %2927 = vmatprep.subr.bf16.mxu0 0
    %2928 = vmatpush2.bf16.xpose.msra.mxu0 0
    %2929 = vmatprep.subr.bf16.mxu0 0
    %2930 = vmatpush2.bf16.xpose.msra.mxu0 0
    %2931 = vmatprep.subr.bf16.mxu0 0
    %2932 = vmatpush2.bf16.xpose.msra.mxu0 0
    %2933 = vmatprep.subr.bf16.mxu0 0
    %2934 = vmatpush2.bf16.xpose.msra.mxu0 0
    %2935 = vmatprep.mubr.bf16.mxu0 0
    %2936 = vmatmul.mubr.bf16.gmra.mxu0 %v2898
    %v2937 = vpop.f32.mrf.mxu0
    %v2938 = vadd.f32 %v952, %v2937
    %v2939 = vpop.f32.mrf.mxu0
    %v2940 = vpop.f32.mrf.mxu0
    %v2941 = vpop.f32.mrf.mxu0
    %2942 = vdwg.mxu0
    %v2943 = vsel %vm1142, %v2800, -inf
    %2944 = vmax.xlane.f32.xlu0 %v2943
    %v2945 = vpop.xlane.xlu0 %2944
    %v2946 = vsel %vm1142, %v2846, -inf
    %2947 = vmax.xlane.f32.xlu0 %v2946
    %v2948 = vpop.xlane.xlu0 %2947
    %v2949 = vsel %vm1142, %v2892, -inf
    %2950 = vmax.xlane.f32.xlu0 %v2949
    %v2951 = vpop.xlane.xlu0 %2950
    %v2952 = vsel %vm1142, %v2938, -inf
    %2953 = vmax.xlane.f32.xlu0 %v2952
    %v2954 = vpop.xlane.xlu0 %2953
    %v2955 = vsub.f32 %v2800, %v2945
    %v2956 = vsub.f32 %v2846, %v2948
    %v2957 = vsub.f32 %v2892, %v2951
    %v2958 = vsub.f32 %v2938, %v2954
    %v2959 = vmul.f32 %v2955, 1.442695
    %v2960 = vpow.pop %v2959
    %v2961 = vmul.f32 %v2956, 1.442695
    %v2962 = vpow.pop %v2961
    %v2963 = vmul.f32 %v2957, 1.442695
    %v2964 = vpow.pop %v2963
    %v2965 = vmul.f32 %v2958, 1.442695
    %v2966 = vpow.pop %v2965
    %v2967 = vsel %vm1142, %v2960, 0.0
    %2968 = vadd.xlane.f32.xlu0 %v2967
    %v2969 = vpop.xlane.xlu0 %2968
    %v2970 = vsel %vm1142, %v2962, 0.0
    %2971 = vadd.xlane.f32.xlu0 %v2970
    %v2972 = vpop.xlane.xlu0 %2971
    %v2973 = vsel %vm1142, %v2964, 0.0
    %2974 = vadd.xlane.f32.xlu0 %v2973
    %v2975 = vpop.xlane.xlu0 %2974
    %v2976 = vsel %vm1142, %v2966, 0.0
    %2977 = vadd.xlane.f32.xlu0 %v2976
    %v2978 = vpop.xlane.xlu0 %2977
    %v2979 = vrcp.pop %v2969
    %v2980 = vrcp.pop %v2972
    %v2981 = vrcp.pop %v2975
    %v2982 = vrcp.pop %v2978
    %v2983 = vmul.f32 %v2960, %v2979
    %v2984 = vmul.f32 %v2962, %v2980
    %v2985 = vmul.f32 %v2964, %v2981
    %v2986 = vmul.f32 %v2966, %v2982
    %v2987 = vpack.c.bf16 %v2983, %v2983
    %v2988 = vpack.c.bf16 %v2984, %v2984
    %v2989 = vpack.c.bf16 %v2985, %v2985
    %v2990 = vpack.c.bf16 %v2986, %v2986
    %v2992 = vsel %vm1142, %v2987, 0
    %v2995 = vsel %vm1194, %v2755, 0
    %2997 = vmatprep.subr.bf16.mxu0 0
    %2998 = vmatpush1.bf16.msra.mxu0 0
    %2999 = vmatprep.subr.bf16.mxu0 0
    %3000 = vmatpush1.bf16.msra.mxu0 0
    %3001 = vmatprep.subr.bf16.mxu0 0
    %3002 = vmatpush1.bf16.msra.mxu0 0
    %3003 = vmatprep.subr.bf16.mxu0 0
    %3004 = vmatpush1.bf16.msra.mxu0 0
    %3005 = vmatprep.subr.bf16.mxu0 0
    %3006 = vmatpush1.bf16.msra.mxu0 0
    %3007 = vmatprep.subr.bf16.mxu0 0
    %3008 = vmatpush1.bf16.msra.mxu0 0
    %3009 = vmatprep.subr.bf16.mxu0 0
    %3010 = vmatpush1.bf16.msra.mxu0 0
    %3011 = vmatprep.subr.bf16.mxu0 0
    %3012 = vmatpush1.bf16.msra.mxu0 %v2995
    %3013 = vmatprep.subr.bf16.mxu0 0
    %3014 = vmatpush2.bf16.msra.mxu0 0
    %3015 = vmatprep.subr.bf16.mxu0 0
    %3016 = vmatpush2.bf16.msra.mxu0 0
    %3017 = vmatprep.subr.bf16.mxu0 0
    %3018 = vmatpush2.bf16.msra.mxu0 0
    %3019 = vmatprep.subr.bf16.mxu0 0
    %3020 = vmatpush2.bf16.msra.mxu0 0
    %3021 = vmatprep.subr.bf16.mxu0 0
    %3022 = vmatpush2.bf16.msra.mxu0 0
    %3023 = vmatprep.subr.bf16.mxu0 0
    %3024 = vmatpush2.bf16.msra.mxu0 0
    %3025 = vmatprep.subr.bf16.mxu0 0
    %3026 = vmatpush2.bf16.msra.mxu0 0
    %3027 = vmatprep.subr.bf16.mxu0 0
    %3028 = vmatpush2.bf16.msra.mxu0 0
    %3029 = vmatprep.mubr.bf16.mxu0 0
    %3030 = vmatmul.mubr.bf16.gmra.mxu0 %v2992
    %v3031 = vpop.f32.mrf.mxu0
    %v3032 = vadd.f32 0.0, %v3031
    %v3033 = vpop.f32.mrf.mxu0
    %v3034 = vpop.f32.mrf.mxu0
    %v3035 = vpop.f32.mrf.mxu0
    %3036 = vdwg.mxu0
    %v3038 = vsel %vm1142, %v2988, 0
    %v3041 = vsel %vm1194, %v2756, 0
    %3043 = vmatprep.subr.bf16.mxu0 0
    %3044 = vmatpush1.bf16.msra.mxu0 0
    %3045 = vmatprep.subr.bf16.mxu0 0
    %3046 = vmatpush1.bf16.msra.mxu0 0
    %3047 = vmatprep.subr.bf16.mxu0 0
    %3048 = vmatpush1.bf16.msra.mxu0 0
    %3049 = vmatprep.subr.bf16.mxu0 0
    %3050 = vmatpush1.bf16.msra.mxu0 0
    %3051 = vmatprep.subr.bf16.mxu0 0
    %3052 = vmatpush1.bf16.msra.mxu0 0
    %3053 = vmatprep.subr.bf16.mxu0 0
    %3054 = vmatpush1.bf16.msra.mxu0 0
    %3055 = vmatprep.subr.bf16.mxu0 0
    %3056 = vmatpush1.bf16.msra.mxu0 0
    %3057 = vmatprep.subr.bf16.mxu0 0
    %3058 = vmatpush1.bf16.msra.mxu0 %v3041
    %3059 = vmatprep.subr.bf16.mxu0 0
    %3060 = vmatpush2.bf16.msra.mxu0 0
    %3061 = vmatprep.subr.bf16.mxu0 0
    %3062 = vmatpush2.bf16.msra.mxu0 0
    %3063 = vmatprep.subr.bf16.mxu0 0
    %3064 = vmatpush2.bf16.msra.mxu0 0
    %3065 = vmatprep.subr.bf16.mxu0 0
    %3066 = vmatpush2.bf16.msra.mxu0 0
    %3067 = vmatprep.subr.bf16.mxu0 0
    %3068 = vmatpush2.bf16.msra.mxu0 0
    %3069 = vmatprep.subr.bf16.mxu0 0
    %3070 = vmatpush2.bf16.msra.mxu0 0
    %3071 = vmatprep.subr.bf16.mxu0 0
    %3072 = vmatpush2.bf16.msra.mxu0 0
    %3073 = vmatprep.subr.bf16.mxu0 0
    %3074 = vmatpush2.bf16.msra.mxu0 0
    %3075 = vmatprep.mubr.bf16.mxu0 0
    %3076 = vmatmul.mubr.bf16.gmra.mxu0 %v3038
    %v3077 = vpop.f32.mrf.mxu0
    %v3078 = vadd.f32 0.0, %v3077
    %v3079 = vpop.f32.mrf.mxu0
    %v3080 = vpop.f32.mrf.mxu0
    %v3081 = vpop.f32.mrf.mxu0
    %3082 = vdwg.mxu0
    %v3084 = vsel %vm1142, %v2989, 0
    %v3087 = vsel %vm1194, %v2757, 0
    %3089 = vmatprep.subr.bf16.mxu0 0
    %3090 = vmatpush1.bf16.msra.mxu0 0
    %3091 = vmatprep.subr.bf16.mxu0 0
    %3092 = vmatpush1.bf16.msra.mxu0 0
    %3093 = vmatprep.subr.bf16.mxu0 0
    %3094 = vmatpush1.bf16.msra.mxu0 0
    %3095 = vmatprep.subr.bf16.mxu0 0
    %3096 = vmatpush1.bf16.msra.mxu0 0
    %3097 = vmatprep.subr.bf16.mxu0 0
    %3098 = vmatpush1.bf16.msra.mxu0 0
    %3099 = vmatprep.subr.bf16.mxu0 0
    %3100 = vmatpush1.bf16.msra.mxu0 0
    %3101 = vmatprep.subr.bf16.mxu0 0
    %3102 = vmatpush1.bf16.msra.mxu0 0
    %3103 = vmatprep.subr.bf16.mxu0 0
    %3104 = vmatpush1.bf16.msra.mxu0 %v3087
    %3105 = vmatprep.subr.bf16.mxu0 0
    %3106 = vmatpush2.bf16.msra.mxu0 0
    %3107 = vmatprep.subr.bf16.mxu0 0
    %3108 = vmatpush2.bf16.msra.mxu0 0
    %3109 = vmatprep.subr.bf16.mxu0 0
    %3110 = vmatpush2.bf16.msra.mxu0 0
    %3111 = vmatprep.subr.bf16.mxu0 0
    %3112 = vmatpush2.bf16.msra.mxu0 0
    %3113 = vmatprep.subr.bf16.mxu0 0
    %3114 = vmatpush2.bf16.msra.mxu0 0
    %3115 = vmatprep.subr.bf16.mxu0 0
    %3116 = vmatpush2.bf16.msra.mxu0 0
    %3117 = vmatprep.subr.bf16.mxu0 0
    %3118 = vmatpush2.bf16.msra.mxu0 0
    %3119 = vmatprep.subr.bf16.mxu0 0
    %3120 = vmatpush2.bf16.msra.mxu0 0
    %3121 = vmatprep.mubr.bf16.mxu0 0
    %3122 = vmatmul.mubr.bf16.gmra.mxu0 %v3084
    %v3123 = vpop.f32.mrf.mxu0
    %v3124 = vadd.f32 0.0, %v3123
    %v3125 = vpop.f32.mrf.mxu0
    %v3126 = vpop.f32.mrf.mxu0
    %v3127 = vpop.f32.mrf.mxu0
    %3128 = vdwg.mxu0
    %v3130 = vsel %vm1142, %v2990, 0
    %v3133 = vsel %vm1194, %v2758, 0
    %3135 = vmatprep.subr.bf16.mxu0 0
    %3136 = vmatpush1.bf16.msra.mxu0 0
    %3137 = vmatprep.subr.bf16.mxu0 0
    %3138 = vmatpush1.bf16.msra.mxu0 0
    %3139 = vmatprep.subr.bf16.mxu0 0
    %3140 = vmatpush1.bf16.msra.mxu0 0
    %3141 = vmatprep.subr.bf16.mxu0 0
    %3142 = vmatpush1.bf16.msra.mxu0 0
    %3143 = vmatprep.subr.bf16.mxu0 0
    %3144 = vmatpush1.bf16.msra.mxu0 0
    %3145 = vmatprep.subr.bf16.mxu0 0
    %3146 = vmatpush1.bf16.msra.mxu0 0
    %3147 = vmatprep.subr.bf16.mxu0 0
    %3148 = vmatpush1.bf16.msra.mxu0 0
    %3149 = vmatprep.subr.bf16.mxu0 0
    %3150 = vmatpush1.bf16.msra.mxu0 %v3133
    %3151 = vmatprep.subr.bf16.mxu0 0
    %3152 = vmatpush2.bf16.msra.mxu0 0
    %3153 = vmatprep.subr.bf16.mxu0 0
    %3154 = vmatpush2.bf16.msra.mxu0 0
    %3155 = vmatprep.subr.bf16.mxu0 0
    %3156 = vmatpush2.bf16.msra.mxu0 0
    %3157 = vmatprep.subr.bf16.mxu0 0
    %3158 = vmatpush2.bf16.msra.mxu0 0
    %3159 = vmatprep.subr.bf16.mxu0 0
    %3160 = vmatpush2.bf16.msra.mxu0 0
    %3161 = vmatprep.subr.bf16.mxu0 0
    %3162 = vmatpush2.bf16.msra.mxu0 0
    %3163 = vmatprep.subr.bf16.mxu0 0
    %3164 = vmatpush2.bf16.msra.mxu0 0
    %3165 = vmatprep.subr.bf16.mxu0 0
    %3166 = vmatpush2.bf16.msra.mxu0 0
    %3167 = vmatprep.mubr.bf16.mxu0 0
    %3168 = vmatmul.mubr.bf16.gmra.mxu0 %v3130
    %v3169 = vpop.f32.mrf.mxu0
    %v3170 = vadd.f32 0.0, %v3169
    %v3171 = vpop.f32.mrf.mxu0
    %v3172 = vpop.f32.mrf.mxu0
    %v3173 = vpop.f32.mrf.mxu0
    %3174 = vdwg.mxu0
    %v3175 = vcombine.high %v3032, 0.0
    %v3177 = vunpack.c.l.s4 1983009808
    %v3178 = vunpack.c.0.s8 %v3177
    %v3179 = vlaneseq
    %v3180 = vshrl.u32 %v3179, 7
    %v3181 = vsub.s32 %v3178, %v3180
    %v3182 = vrot.slane %v3032, %v3181
    %v3184 = vunpack.c.l.s4 1983009808
    %v3185 = vunpack.c.0.s8 %v3184
    %v3186 = vlaneseq
    %v3187 = vshrl.u32 %v3186, 7
    %v3188 = vsub.s32 %v3185, %v3187
    %v3189 = vrot.slane %v3175, %v3188
    %v3190 = vcombine.high %v3078, 0.0
    %v3192 = vunpack.c.l.s4 1983009808
    %v3193 = vunpack.c.0.s8 %v3192
    %v3194 = vlaneseq
    %v3195 = vshrl.u32 %v3194, 7
    %v3196 = vsub.s32 %v3193, %v3195
    %v3197 = vrot.slane %v3078, %v3196
    %v3199 = vunpack.c.l.s4 1983009808
    %v3200 = vunpack.c.0.s8 %v3199
    %v3201 = vlaneseq
    %v3202 = vshrl.u32 %v3201, 7
    %v3203 = vsub.s32 %v3200, %v3202
    %v3204 = vrot.slane %v3190, %v3203
    %v3205 = vcombine.low %v3182, %v3197
    %v3206 = vcombine.high %v3182, %v3197
    %v3208 = vunpack.c.l.s4 1934713408
    %v3209 = vunpack.c.0.s8 %v3208
    %v3210 = vlaneseq
    %v3211 = vshrl.u32 %v3210, 7
    %v3212 = vsub.s32 %v3209, %v3211
    %v3213 = vrot.slane %v3205, %v3212
    %v3215 = vunpack.c.l.s4 1934713408
    %v3216 = vunpack.c.0.s8 %v3215
    %v3217 = vlaneseq
    %v3218 = vshrl.u32 %v3217, 7
    %v3219 = vsub.s32 %v3216, %v3218
    %v3220 = vrot.slane %v3206, %v3219
    %v3221 = vcombine.low %v3189, %v3204
    %v3222 = vcombine.high %v3189, %v3204
    %v3224 = vunpack.c.l.s4 1934713408
    %v3225 = vunpack.c.0.s8 %v3224
    %v3226 = vlaneseq
    %v3227 = vshrl.u32 %v3226, 7
    %v3228 = vsub.s32 %v3225, %v3227
    %v3229 = vrot.slane %v3221, %v3228
    %v3231 = vunpack.c.l.s4 1934713408
    %v3232 = vunpack.c.0.s8 %v3231
    %v3233 = vlaneseq
    %v3234 = vshrl.u32 %v3233, 7
    %v3235 = vsub.s32 %v3232, %v3234
    %v3236 = vrot.slane %v3222, %v3235
    %v3237 = vcombine.high %v3213, 0.0
    %v3238 = vcombine.high %v3220, 0.0
    %v3239 = vcombine.high %v3229, 0.0
    %v3240 = vcombine.high %v3236, 0.0
    %v3241 = vcombine.high %v3124, 0.0
    %v3243 = vunpack.c.l.s4 1983009808
    %v3244 = vunpack.c.0.s8 %v3243
    %v3245 = vlaneseq
    %v3246 = vshrl.u32 %v3245, 7
    %v3247 = vsub.s32 %v3244, %v3246
    %v3248 = vrot.slane %v3124, %v3247
    %v3250 = vunpack.c.l.s4 1983009808
    %v3251 = vunpack.c.0.s8 %v3250
    %v3252 = vlaneseq
    %v3253 = vshrl.u32 %v3252, 7
    %v3254 = vsub.s32 %v3251, %v3253
    %v3255 = vrot.slane %v3241, %v3254
    %v3256 = vcombine.high %v3170, 0.0
    %v3258 = vunpack.c.l.s4 1983009808
    %v3259 = vunpack.c.0.s8 %v3258
    %v3260 = vlaneseq
    %v3261 = vshrl.u32 %v3260, 7
    %v3262 = vsub.s32 %v3259, %v3261
    %v3263 = vrot.slane %v3170, %v3262
    %v3265 = vunpack.c.l.s4 1983009808
    %v3266 = vunpack.c.0.s8 %v3265
    %v3267 = vlaneseq
    %v3268 = vshrl.u32 %v3267, 7
    %v3269 = vsub.s32 %v3266, %v3268
    %v3270 = vrot.slane %v3256, %v3269
    %v3271 = vcombine.low %v3248, %v3263
    %v3272 = vcombine.high %v3248, %v3263
    %v3274 = vunpack.c.l.s4 1934713408
    %v3275 = vunpack.c.0.s8 %v3274
    %v3276 = vlaneseq
    %v3277 = vshrl.u32 %v3276, 7
    %v3278 = vsub.s32 %v3275, %v3277
    %v3279 = vrot.slane %v3271, %v3278
    %v3281 = vunpack.c.l.s4 1934713408
    %v3282 = vunpack.c.0.s8 %v3281
    %v3283 = vlaneseq
    %v3284 = vshrl.u32 %v3283, 7
    %v3285 = vsub.s32 %v3282, %v3284
    %v3286 = vrot.slane %v3272, %v3285
    %v3287 = vcombine.low %v3255, %v3270
    %v3288 = vcombine.high %v3255, %v3270
    %v3290 = vunpack.c.l.s4 1934713408
    %v3291 = vunpack.c.0.s8 %v3290
    %v3292 = vlaneseq
    %v3293 = vshrl.u32 %v3292, 7
    %v3294 = vsub.s32 %v3291, %v3293
    %v3295 = vrot.slane %v3287, %v3294
    %v3297 = vunpack.c.l.s4 1934713408
    %v3298 = vunpack.c.0.s8 %v3297
    %v3299 = vlaneseq
    %v3300 = vshrl.u32 %v3299, 7
    %v3301 = vsub.s32 %v3298, %v3300
    %v3302 = vrot.slane %v3288, %v3301
    %v3303 = vcombine.high %v3279, 0.0
    %v3304 = vcombine.high %v3286, 0.0
    %v3305 = vcombine.high %v3295, 0.0
    %v3306 = vcombine.high %v3302, 0.0
    %v3307 = vcombine.low %v3213, %v3220
    %v3309 = vunpack.c.l.s4 1983009808
    %v3310 = vunpack.c.0.s8 %v3309
    %v3311 = vlaneseq
    %v3312 = vshrl.u32 %v3311, 7
    %v3313 = vsub.s32 %v3310, %v3312
    %v3314 = vrot.slane %v3307, %v3313
    %v3315 = vcombine.low %v3237, %v3238
    %v3317 = vunpack.c.l.s4 1983009808
    %v3318 = vunpack.c.0.s8 %v3317
    %v3319 = vlaneseq
    %v3320 = vshrl.u32 %v3319, 7
    %v3321 = vsub.s32 %v3318, %v3320
    %v3322 = vrot.slane %v3315, %v3321
    %v3323 = vcombine.low %v3229, %v3236
    %v3325 = vunpack.c.l.s4 1983009808
    %v3326 = vunpack.c.0.s8 %v3325
    %v3327 = vlaneseq
    %v3328 = vshrl.u32 %v3327, 7
    %v3329 = vsub.s32 %v3326, %v3328
    %v3330 = vrot.slane %v3323, %v3329
    %v3331 = vcombine.low %v3239, %v3240
    %v3333 = vunpack.c.l.s4 1983009808
    %v3334 = vunpack.c.0.s8 %v3333
    %v3335 = vlaneseq
    %v3336 = vshrl.u32 %v3335, 7
    %v3337 = vsub.s32 %v3334, %v3336
    %v3338 = vrot.slane %v3331, %v3337
    %v3339 = vcombine.low %v3314, %v3322
    %v3341 = vunpack.c.l.s4 1934713408
    %v3342 = vunpack.c.0.s8 %v3341
    %v3343 = vlaneseq
    %v3344 = vshrl.u32 %v3343, 7
    %v3345 = vsub.s32 %v3342, %v3344
    %v3346 = vrot.slane %v3339, %v3345
    %v3347 = vcombine.low %v3330, %v3338
    %v3349 = vunpack.c.l.s4 1934713408
    %v3350 = vunpack.c.0.s8 %v3349
    %v3351 = vlaneseq
    %v3352 = vshrl.u32 %v3351, 7
    %v3353 = vsub.s32 %v3350, %v3352
    %v3354 = vrot.slane %v3347, %v3353
    %v3355 = vcombine.low %v3346, %v3354
    %v3356 = vcombine.high %v3346, %v3354
    %v3357 = vcombine.low %v3279, %v3286
    %v3359 = vunpack.c.l.s4 1983009808
    %v3360 = vunpack.c.0.s8 %v3359
    %v3361 = vlaneseq
    %v3362 = vshrl.u32 %v3361, 7
    %v3363 = vsub.s32 %v3360, %v3362
    %v3364 = vrot.slane %v3357, %v3363
    %v3365 = vcombine.low %v3303, %v3304
    %v3367 = vunpack.c.l.s4 1983009808
    %v3368 = vunpack.c.0.s8 %v3367
    %v3369 = vlaneseq
    %v3370 = vshrl.u32 %v3369, 7
    %v3371 = vsub.s32 %v3368, %v3370
    %v3372 = vrot.slane %v3365, %v3371
    %v3373 = vcombine.low %v3295, %v3302
    %v3375 = vunpack.c.l.s4 1983009808
    %v3376 = vunpack.c.0.s8 %v3375
    %v3377 = vlaneseq
    %v3378 = vshrl.u32 %v3377, 7
    %v3379 = vsub.s32 %v3376, %v3378
    %v3380 = vrot.slane %v3373, %v3379
    %v3381 = vcombine.low %v3305, %v3306
    %v3383 = vunpack.c.l.s4 1983009808
    %v3384 = vunpack.c.0.s8 %v3383
    %v3385 = vlaneseq
    %v3386 = vshrl.u32 %v3385, 7
    %v3387 = vsub.s32 %v3384, %v3386
    %v3388 = vrot.slane %v3381, %v3387
    %v3389 = vcombine.low %v3364, %v3372
    %v3391 = vunpack.c.l.s4 1934713408
    %v3392 = vunpack.c.0.s8 %v3391
    %v3393 = vlaneseq
    %v3394 = vshrl.u32 %v3393, 7
    %v3395 = vsub.s32 %v3392, %v3394
    %v3396 = vrot.slane %v3389, %v3395
    %v3397 = vcombine.low %v3380, %v3388
    %v3399 = vunpack.c.l.s4 1934713408
    %v3400 = vunpack.c.0.s8 %v3399
    %v3401 = vlaneseq
    %v3402 = vshrl.u32 %v3401, 7
    %v3403 = vsub.s32 %v3400, %v3402
    %v3404 = vrot.slane %v3397, %v3403
    %v3405 = vcombine.low %v3396, %v3404
    %v3406 = vcombine.high %v3396, %v3404
    %3409 = vrot.lane.b32.xlu0 %v3356, 16
    %v3410 = vpop.permute.xlu0 %3409
    %3411 = vrot.lane.b32.xlu0 %v3406, 16
    %v3412 = vpop.permute.xlu0 %3411
    %v3415 = vsel %vm957, %v3355, %v3410
    %v3416 = vsel %vm957, %v3405, %v3412
    %v3417 = vpack.c.bf16 %v3416, %v3415
    %s3418 = scalar_lea.vmem %s6, 16
    %v3419 = vld [vmem:[%s3418] sm:$0xf]
    %v3420 = vld [vmem:[%s3418 + $0x4] sm:$0xf]
    %v3421 = vld [vmem:[%s3418 + $0x8] sm:$0xf]
    %v3422 = vld [vmem:[%s3418 + $0xc] sm:$0xf]
    %s3423 = scalar_lea.vmem %s7, 1
    %v3424 = vld [vmem:[%s3423] sm:$0x1]
    %v3426 = vlaneseq
    %v3427 = vshrl.u32 %v3426, 7
    %v3428 = vsub.s32 0, %v3427
    %v3429 = vrot.slane %v3424, %v3428
    %v3435 = vunpack.c.l.b16 %v3419
    %v3436 = vunpack.c.l.b16 %v3420
    %v3437 = vunpack.c.l.b16 %v3421
    %v3438 = vunpack.c.l.b16 %v3422
    %v3439 = vpack.c.b16 %v3436, %v3435
    %v3440 = vpack.c.b16 %v3438, %v3437
    %v3444 = vsel %vm77, %v3417, 0
    %3446 = vmatprep.subr.bf16.mxu0 0
    %3447 = vmatpush1.bf16.msra.mxu0 0
    %3448 = vmatprep.subr.bf16.mxu0 0
    %3449 = vmatpush1.bf16.msra.mxu0 0
    %3450 = vmatprep.subr.bf16.mxu0 0
    %3451 = vmatpush1.bf16.msra.mxu0 0
    %3452 = vmatprep.subr.bf16.mxu0 0
    %3453 = vmatpush1.bf16.msra.mxu0 0
    %3454 = vmatprep.subr.bf16.mxu0 0
    %3455 = vmatpush1.bf16.msra.mxu0 0
    %3456 = vmatprep.subr.bf16.mxu0 0
    %3457 = vmatpush1.bf16.msra.mxu0 0
    %3458 = vmatprep.subr.bf16.mxu0 0
    %3459 = vmatpush1.bf16.msra.mxu0 %v3440
    %3460 = vmatprep.subr.bf16.mxu0 0
    %3461 = vmatpush1.bf16.msra.mxu0 %v3439
    %3462 = vmatprep.subr.bf16.mxu0 0
    %3463 = vmatpush2.bf16.msra.mxu0 0
    %3464 = vmatprep.subr.bf16.mxu0 0
    %3465 = vmatpush2.bf16.msra.mxu0 0
    %3466 = vmatprep.subr.bf16.mxu0 0
    %3467 = vmatpush2.bf16.msra.mxu0 0
    %3468 = vmatprep.subr.bf16.mxu0 0
    %3469 = vmatpush2.bf16.msra.mxu0 0
    %3470 = vmatprep.subr.bf16.mxu0 0
    %3471 = vmatpush2.bf16.msra.mxu0 0
    %3472 = vmatprep.subr.bf16.mxu0 0
    %3473 = vmatpush2.bf16.msra.mxu0 0
    %3474 = vmatprep.subr.bf16.mxu0 0
    %3475 = vmatpush2.bf16.msra.mxu0 0
    %3476 = vmatprep.subr.bf16.mxu0 0
    %3477 = vmatpush2.bf16.msra.mxu0 0
    %3478 = vmatprep.mubr.bf16.mxu0 0
    %3479 = vmatmul.mubr.bf16.gmra.mxu0 %v3444
    %v3480 = vpop.f32.mrf.mxu0
    %v3481 = vadd.f32 %v3429, %v3480
    %v3482 = vpop.f32.mrf.mxu0
    %v3483 = vpop.f32.mrf.mxu0
    %v3484 = vadd.f32 %v3429, %v3483
    %v3485 = vpop.f32.mrf.mxu0
    %3486 = vdwg.mxu0
    %v3487 = vadd.f32 %v3481, %v1947
    %v3488 = vadd.f32 %v3484, %v1948
    %s3489 = scalar_lea.vmem %s8, 1
    %v3490 = vld [vmem:[%s3489] sm:$0x1]
    %s3491 = scalar_lea.vmem %s9, 1
    %v3492 = vld [vmem:[%s3491] sm:$0x1]
    %v3493 = vsel %vm77, %v3487, 0.0
    %3494 = vadd.xlane.f32.xlu0 %v3493
    %v3495 = vpop.xlane.xlu0 %3494
    %v3496 = vsel %vm77, %v3488, 0.0
    %3497 = vadd.xlane.f32.xlu0 %v3496
    %v3498 = vpop.xlane.xlu0 %3497
    %v3499 = vmul.f32 %v3495, %v84
    %v3500 = vmul.f32 %v3498, %v84
    %v3501 = vsub.f32 %v3487, %v3499
    %v3502 = vsub.f32 %v3488, %v3500
    %v3503 = vmul.f32 %v3501, %v3501
    %v3504 = vmul.f32 %v3502, %v3502
    %v3505 = vsel %vm77, %v3503, 0.0
    %3506 = vadd.xlane.f32.xlu0 %v3505
    %v3507 = vpop.xlane.xlu0 %3506
    %v3508 = vsel %vm77, %v3504, 0.0
    %3509 = vadd.xlane.f32.xlu0 %v3508
    %v3510 = vpop.xlane.xlu0 %3509
    %v3511 = vmul.f32 %v3507, %v84
    %v3512 = vmul.f32 %v3510, %v84
    %v3513 = vadd.f32 %v3511, 1e-12
    %v3514 = vadd.f32 %v3512, 1e-12
    %v3515 = vrsqrt.pop %v3513
    %v3516 = vrsqrt.pop %v3514
    %v3517 = vmul.f32 %v3501, %v3515
    %v3518 = vmul.f32 %v3502, %v3516
    %v3520 = vlaneseq
    %v3521 = vshrl.u32 %v3520, 7
    %v3522 = vsub.s32 0, %v3521
    %v3523 = vrot.slane %v3490, %v3522
    %v3525 = vmul.f32 %v3517, %v3523
    %v3526 = vmul.f32 %v3518, %v3523
    %v3528 = vlaneseq
    %v3529 = vshrl.u32 %v3528, 7
    %v3530 = vsub.s32 0, %v3529
    %v3531 = vrot.slane %v3492, %v3530
    %v3533 = vadd.f32 %v3525, %v3531
    %v3534 = vadd.f32 %v3526, %v3531
    %v3535 = vpack.c.bf16 %v3534, %v3533
    %s3536 = scalar_lea.vmem %s10, 16
    %v3537 = vld [vmem:[%s3536] sm:$0xf]
    %v3538 = vld [vmem:[%s3536 + $0x4] sm:$0xf]
    %v3539 = vld [vmem:[%s3536 + $0x8] sm:$0xf]
    %v3540 = vld [vmem:[%s3536 + $0xc] sm:$0xf]
    %s3541 = scalar_lea.vmem %s11, 1
    %v3542 = vld [vmem:[%s3541] sm:$0x1]
    %v3544 = vlaneseq
    %v3545 = vshrl.u32 %v3544, 7
    %v3546 = vsub.s32 0, %v3545
    %v3547 = vrot.slane %v3542, %v3546
    %v3553 = vunpack.c.l.b16 %v3537
    %v3554 = vunpack.c.l.b16 %v3538
    %v3555 = vunpack.c.l.b16 %v3539
    %v3556 = vunpack.c.l.b16 %v3540
    %v3557 = vpack.c.b16 %v3554, %v3553
    %v3558 = vpack.c.b16 %v3556, %v3555
    %v3562 = vsel %vm77, %v3535, 0
    %3564 = vmatprep.subr.bf16.mxu0 0
    %3565 = vmatpush1.bf16.msra.mxu0 0
    %3566 = vmatprep.subr.bf16.mxu0 0
    %3567 = vmatpush1.bf16.msra.mxu0 0
    %3568 = vmatprep.subr.bf16.mxu0 0
    %3569 = vmatpush1.bf16.msra.mxu0 0
    %3570 = vmatprep.subr.bf16.mxu0 0
    %3571 = vmatpush1.bf16.msra.mxu0 0
    %3572 = vmatprep.subr.bf16.mxu0 0
    %3573 = vmatpush1.bf16.msra.mxu0 0
    %3574 = vmatprep.subr.bf16.mxu0 0
    %3575 = vmatpush1.bf16.msra.mxu0 0
    %3576 = vmatprep.subr.bf16.mxu0 0
    %3577 = vmatpush1.bf16.msra.mxu0 %v3558
    %3578 = vmatprep.subr.bf16.mxu0 0
    %3579 = vmatpush1.bf16.msra.mxu0 %v3557
    %3580 = vmatprep.subr.bf16.mxu0 0
    %3581 = vmatpush2.bf16.msra.mxu0 0
    %3582 = vmatprep.subr.bf16.mxu0 0
    %3583 = vmatpush2.bf16.msra.mxu0 0
    %3584 = vmatprep.subr.bf16.mxu0 0
    %3585 = vmatpush2.bf16.msra.mxu0 0
    %3586 = vmatprep.subr.bf16.mxu0 0
    %3587 = vmatpush2.bf16.msra.mxu0 0
    %3588 = vmatprep.subr.bf16.mxu0 0
    %3589 = vmatpush2.bf16.msra.mxu0 0
    %3590 = vmatprep.subr.bf16.mxu0 0
    %3591 = vmatpush2.bf16.msra.mxu0 0
    %3592 = vmatprep.subr.bf16.mxu0 0
    %3593 = vmatpush2.bf16.msra.mxu0 0
    %3594 = vmatprep.subr.bf16.mxu0 0
    %3595 = vmatpush2.bf16.msra.mxu0 0
    %3596 = vmatprep.mubr.bf16.mxu0 0
    %3597 = vmatmul.mubr.bf16.gmra.mxu0 %v3562
    %v3598 = vpop.f32.mrf.mxu0
    %v3599 = vadd.f32 %v3547, %v3598
    %v3600 = vpop.f32.mrf.mxu0
    %v3601 = vpop.f32.mrf.mxu0
    %v3602 = vadd.f32 %v3547, %v3601
    %v3603 = vpop.f32.mrf.mxu0
    %3604 = vdwg.mxu0
    %v3605 = vmul.f32 %v3599, 0.5
    %v3606 = vmul.f32 %v3602, 0.5
    %v3607 = vmul.f32 %v3599, 0.044715
    %v3608 = vmul.f32 %v3602, 0.044715
    %v3609 = vmul.f32 %v3607, %v3599
    %v3610 = vmul.f32 %v3608, %v3602
    %v3611 = vmul.f32 %v3609, %v3599
    %v3612 = vmul.f32 %v3610, %v3602
    %v3613 = vadd.f32 %v3599, %v3611
    %v3614 = vadd.f32 %v3602, %v3612
    %v3615 = vmul.f32 %v3613, 0.7978846
    %v3616 = vmul.f32 %v3614, 0.7978846
    %v3617 = vtanh.pop %v3615
    %v3618 = vtanh.pop %v3616
    %v3619 = vadd.f32 %v3617, 1.0
    %v3620 = vadd.f32 %v3618, 1.0
    %v3621 = vmul.f32 %v3605, %v3619
    %v3622 = vmul.f32 %v3606, %v3620
    %v3623 = vpack.c.bf16 %v3622, %v3621
    %s3624 = scalar_lea.vmem %s12, 32
    %v3625 = vld [vmem:[%s3624] sm:$0xf]
    %v3626 = vld [vmem:[%s3624 + $0x4] sm:$0xf]
    %v3627 = vld [vmem:[%s3624 + $0x8] sm:$0xf]
    %v3628 = vld [vmem:[%s3624 + $0xc] sm:$0xf]
    %v3629 = vld [vmem:[%s3624 + $0x10] sm:$0xf]
    %v3630 = vld [vmem:[%s3624 + $0x14] sm:$0xf]
    %v3631 = vld [vmem:[%s3624 + $0x18] sm:$0xf]
    %v3632 = vld [vmem:[%s3624 + $0x1c] sm:$0xf]
    %s3633 = scalar_lea.vmem %s13, 1
    %v3634 = vld [vmem:[%s3633] sm:$0x1]
    %v3636 = vlaneseq
    %v3637 = vshrl.u32 %v3636, 7
    %v3638 = vsub.s32 0, %v3637
    %v3639 = vrot.slane %v3634, %v3638
    %v3649 = vunpack.c.l.b16 %v3625
    %v3650 = vunpack.c.l.b16 %v3626
    %v3651 = vunpack.c.l.b16 %v3627
    %v3652 = vunpack.c.l.b16 %v3628
    %v3653 = vunpack.c.l.b16 %v3629
    %v3654 = vunpack.c.l.b16 %v3630
    %v3655 = vunpack.c.l.b16 %v3631
    %v3656 = vunpack.c.l.b16 %v3632
    %v3657 = vpack.c.b16 %v3650, %v3649
    %v3658 = vpack.c.b16 %v3652, %v3651
    %v3659 = vpack.c.b16 %v3654, %v3653
    %v3660 = vpack.c.b16 %v3656, %v3655
    %v3666 = vsel %vm1858, %v3623, 0
    %3668 = vmatprep.subr.bf16.mxu0 0
    %3669 = vmatpush1.bf16.msra.mxu0 0
    %3670 = vmatprep.subr.bf16.mxu0 0
    %3671 = vmatpush1.bf16.msra.mxu0 0
    %3672 = vmatprep.subr.bf16.mxu0 0
    %3673 = vmatpush1.bf16.msra.mxu0 0
    %3674 = vmatprep.subr.bf16.mxu0 0
    %3675 = vmatpush1.bf16.msra.mxu0 0
    %3676 = vmatprep.subr.bf16.mxu0 0
    %3677 = vmatpush1.bf16.msra.mxu0 %v3660
    %3678 = vmatprep.subr.bf16.mxu0 0
    %3679 = vmatpush1.bf16.msra.mxu0 %v3659
    %3680 = vmatprep.subr.bf16.mxu0 0
    %3681 = vmatpush1.bf16.msra.mxu0 %v3658
    %3682 = vmatprep.subr.bf16.mxu0 0
    %3683 = vmatpush1.bf16.msra.mxu0 %v3657
    %3684 = vmatprep.subr.bf16.mxu0 0
    %3685 = vmatpush2.bf16.msra.mxu0 0
    %3686 = vmatprep.subr.bf16.mxu0 0
    %3687 = vmatpush2.bf16.msra.mxu0 0
    %3688 = vmatprep.subr.bf16.mxu0 0
    %3689 = vmatpush2.bf16.msra.mxu0 0
    %3690 = vmatprep.subr.bf16.mxu0 0
    %3691 = vmatpush2.bf16.msra.mxu0 0
    %3692 = vmatprep.subr.bf16.mxu0 0
    %3693 = vmatpush2.bf16.msra.mxu0 0
    %3694 = vmatprep.subr.bf16.mxu0 0
    %3695 = vmatpush2.bf16.msra.mxu0 0
    %3696 = vmatprep.subr.bf16.mxu0 0
    %3697 = vmatpush2.bf16.msra.mxu0 0
    %3698 = vmatprep.subr.bf16.mxu0 0
    %3699 = vmatpush2.bf16.msra.mxu0 0
    %3700 = vmatprep.mubr.bf16.mxu0 0
    %3701 = vmatmul.mubr.bf16.gmra.mxu0 %v3666
    %v3702 = vpop.f32.mrf.mxu0
    %v3703 = vadd.f32 %v3639, %v3702
    %v3704 = vpop.f32.mrf.mxu0
    %v3705 = vpop.f32.mrf.mxu0
    %v3706 = vadd.f32 %v3639, %v3705
    %v3707 = vpop.f32.mrf.mxu0
    %3708 = vdwg.mxu0
    %v3709 = vadd.f32 %v3703, %v3533
    %v3710 = vadd.f32 %v3706, %v3534
    %s3711 = scalar_lea.vmem %s14, 1
    %v3712 = vld [vmem:[%s3711] sm:$0x1]
    %s3713 = scalar_lea.vmem %s15, 1
    %v3714 = vld [vmem:[%s3713] sm:$0x1]
    %v3715 = vsel %vm77, %v3709, 0.0
    %3716 = vadd.xlane.f32.xlu0 %v3715
    %v3717 = vpop.xlane.xlu0 %3716
    %v3718 = vsel %vm77, %v3710, 0.0
    %3719 = vadd.xlane.f32.xlu0 %v3718
    %v3720 = vpop.xlane.xlu0 %3719
    %v3721 = vmul.f32 %v3717, %v84
    %v3722 = vmul.f32 %v3720, %v84
    %v3723 = vsub.f32 %v3709, %v3721
    %v3724 = vsub.f32 %v3710, %v3722
    %v3725 = vmul.f32 %v3723, %v3723
    %v3726 = vmul.f32 %v3724, %v3724
    %v3727 = vsel %vm77, %v3725, 0.0
    %3728 = vadd.xlane.f32.xlu0 %v3727
    %v3729 = vpop.xlane.xlu0 %3728
    %v3730 = vsel %vm77, %v3726, 0.0
    %3731 = vadd.xlane.f32.xlu0 %v3730
    %v3732 = vpop.xlane.xlu0 %3731
    %v3733 = vmul.f32 %v3729, %v84
    %v3734 = vmul.f32 %v3732, %v84
    %v3735 = vadd.f32 %v3733, 1e-12
    %v3736 = vadd.f32 %v3734, 1e-12
    %v3737 = vrsqrt.pop %v3735
    %v3738 = vrsqrt.pop %v3736
    %v3739 = vmul.f32 %v3723, %v3737
    %v3740 = vmul.f32 %v3724, %v3738
    %v3742 = vlaneseq
    %v3743 = vshrl.u32 %v3742, 7
    %v3744 = vsub.s32 0, %v3743
    %v3745 = vrot.slane %v3712, %v3744
    %v3747 = vmul.f32 %v3739, %v3745
    %v3748 = vmul.f32 %v3740, %v3745
    %v3750 = vlaneseq
    %v3751 = vshrl.u32 %v3750, 7
    %v3752 = vsub.s32 0, %v3751
    %v3753 = vrot.slane %v3714, %v3752
    %v3755 = vadd.f32 %v3747, %v3753
    %v3756 = vadd.f32 %v3748, %v3753
    %v3757 = vpack.c.bf16 %v3755, %v3755
    %v3758 = vpack.c.bf16 %v3756, %v3756
    %v3759 = vld [vmem:[%s16] sm:$0xf]
    %v3760 = vld [vmem:[%s16 + $0x4] sm:$0xf]
    %v3761 = vld [vmem:[%s16 + $0x8] sm:$0xf]
    %v3762 = vld [vmem:[%s16 + $0xc] sm:$0xf]
    %v3763 = vld [vmem:[%s17] sm:$0x1]
    %v3765 = vlaneseq
    %v3766 = vshrl.u32 %v3765, 7
    %v3767 = vsub.s32 0, %v3766
    %v3768 = vrot.slane %v3763, %v3767
    %v3772 = vunpack.c.l.b16 %v3757
    %v3773 = vunpack.c.l.b16 %v3758
    %v3774 = vrot.slane %v3773, 7
    %vm3775 = vcmask 1041409
    %v3776 = vsel %vm3775, %v3774, %v3772
    %v3777 = vpack.c.b16 %v3776, %v3776
    %v3782 = vunpack.c.l.b16 %v3759
    %v3783 = vunpack.c.l.b16 %v3760
    %v3784 = vunpack.c.l.b16 %v3761
    %v3785 = vunpack.c.l.b16 %v3762
    %v3786 = vpack.c.b16 %v3783, %v3782
    %v3787 = vpack.c.b16 %v3785, %v3784
    %v3791 = vsel %vm77, %v3777, 0
    %3793 = vmatprep.subr.bf16.mxu0 0
    %3794 = vmatpush1.bf16.msra.mxu0 0
    %3795 = vmatprep.subr.bf16.mxu0 0
    %3796 = vmatpush1.bf16.msra.mxu0 0
    %3797 = vmatprep.subr.bf16.mxu0 0
    %3798 = vmatpush1.bf16.msra.mxu0 0
    %3799 = vmatprep.subr.bf16.mxu0 0
    %3800 = vmatpush1.bf16.msra.mxu0 0
    %3801 = vmatprep.subr.bf16.mxu0 0
    %3802 = vmatpush1.bf16.msra.mxu0 0
    %3803 = vmatprep.subr.bf16.mxu0 0
    %3804 = vmatpush1.bf16.msra.mxu0 0
    %3805 = vmatprep.subr.bf16.mxu0 0
    %3806 = vmatpush1.bf16.msra.mxu0 %v3787
    %3807 = vmatprep.subr.bf16.mxu0 0
    %3808 = vmatpush1.bf16.msra.mxu0 %v3786
    %3809 = vmatprep.subr.bf16.mxu0 0
    %3810 = vmatpush2.bf16.msra.mxu0 0
    %3811 = vmatprep.subr.bf16.mxu0 0
    %3812 = vmatpush2.bf16.msra.mxu0 0
    %3813 = vmatprep.subr.bf16.mxu0 0
    %3814 = vmatpush2.bf16.msra.mxu0 0
    %3815 = vmatprep.subr.bf16.mxu0 0
    %3816 = vmatpush2.bf16.msra.mxu0 0
    %3817 = vmatprep.subr.bf16.mxu0 0
    %3818 = vmatpush2.bf16.msra.mxu0 0
    %3819 = vmatprep.subr.bf16.mxu0 0
    %3820 = vmatpush2.bf16.msra.mxu0 0
    %3821 = vmatprep.subr.bf16.mxu0 0
    %3822 = vmatpush2.bf16.msra.mxu0 0
    %3823 = vmatprep.subr.bf16.mxu0 0
    %3824 = vmatpush2.bf16.msra.mxu0 0
    %3825 = vmatprep.mubr.bf16.mxu0 0
    %3826 = vmatmul.mubr.bf16.gmra.mxu0 %v3791
    %v3827 = vpop.f32.mrf.mxu0
    %v3828 = vadd.f32 %v3768, %v3827
    %v3829 = vpop.f32.mrf.mxu0
    %v3830 = vpop.f32.mrf.mxu0
    %v3831 = vpop.f32.mrf.mxu0
    %3832 = vdwg.mxu0
    %v3833 = vtanh.pop %v3828
    %v3834 = vpack.c.bf16 %v3833, %v3833
    %v3835 = vld [vmem:[%s18] sm:$0xf]
    %v3836 = vld [vmem:[%s18 + $0x4] sm:$0xf]
    %v3837 = vld [vmem:[%s18 + $0x8] sm:$0xf]
    %v3838 = vld [vmem:[%s18 + $0xc] sm:$0xf]
    %v3839 = vld [vmem:[%s19] sm:$0x1]
    %v3841 = vlaneseq
    %v3842 = vshrl.u32 %v3841, 7
    %v3843 = vsub.s32 0, %v3842
    %v3844 = vrot.slane %v3839, %v3843
    %v3850 = vunpack.c.l.b16 %v3835
    %v3851 = vunpack.c.l.b16 %v3836
    %v3852 = vunpack.c.l.b16 %v3837
    %v3853 = vunpack.c.l.b16 %v3838
    %v3854 = vpack.c.b16 %v3851, %v3850
    %v3855 = vpack.c.b16 %v3853, %v3852
    %v3859 = vsel %vm77, %v3834, 0
    %3861 = vmatprep.subr.bf16.mxu0 0
    %3862 = vmatpush1.bf16.msra.mxu0 0
    %3863 = vmatprep.subr.bf16.mxu0 0
    %3864 = vmatpush1.bf16.msra.mxu0 0
    %3865 = vmatprep.subr.bf16.mxu0 0
    %3866 = vmatpush1.bf16.msra.mxu0 0
    %3867 = vmatprep.subr.bf16.mxu0 0
    %3868 = vmatpush1.bf16.msra.mxu0 0
    %3869 = vmatprep.subr.bf16.mxu0 0
    %3870 = vmatpush1.bf16.msra.mxu0 0
    %3871 = vmatprep.subr.bf16.mxu0 0
    %3872 = vmatpush1.bf16.msra.mxu0 0
    %3873 = vmatprep.subr.bf16.mxu0 0
    %3874 = vmatpush1.bf16.msra.mxu0 %v3855
    %3875 = vmatprep.subr.bf16.mxu0 0
    %3876 = vmatpush1.bf16.msra.mxu0 %v3854
    %3877 = vmatprep.subr.bf16.mxu0 0
    %3878 = vmatpush2.bf16.msra.mxu0 0
    %3879 = vmatprep.subr.bf16.mxu0 0
    %3880 = vmatpush2.bf16.msra.mxu0 0
    %3881 = vmatprep.subr.bf16.mxu0 0
    %3882 = vmatpush2.bf16.msra.mxu0 0
    %3883 = vmatprep.subr.bf16.mxu0 0
    %3884 = vmatpush2.bf16.msra.mxu0 0
    %3885 = vmatprep.subr.bf16.mxu0 0
    %3886 = vmatpush2.bf16.msra.mxu0 0
    %3887 = vmatprep.subr.bf16.mxu0 0
    %3888 = vmatpush2.bf16.msra.mxu0 0
    %3889 = vmatprep.subr.bf16.mxu0 0
    %3890 = vmatpush2.bf16.msra.mxu0 0
    %3891 = vmatprep.subr.bf16.mxu0 0
    %3892 = vmatpush2.bf16.msra.mxu0 0
    %3893 = vmatprep.mubr.bf16.mxu0 0
    %3894 = vmatmul.mubr.bf16.gmra.mxu0 %v3859
    %v3895 = vpop.f32.mrf.mxu0
    %v3896 = vadd.f32 %v3844, %v3895
    %v3897 = vpop.f32.mrf.mxu0
    %v3898 = vpop.f32.mrf.mxu0
    %v3899 = vpop.f32.mrf.mxu0
    %3900 = vdwg.mxu0
    %v3901 = vmax.f32 %v3896, 0.0
    %v3902 = vpack.c.bf16 %v3901, %v3901
    %v3903 = vld [vmem:[%s20] sm:$0xf]
    %v3904 = vld [vmem:[%s20 + $0x4] sm:$0xf]
    %v3905 = vld [vmem:[%s21] sm:$0x1]
    %v3907 = vlaneseq
    %v3908 = vshrl.u32 %v3907, 7
    %v3909 = vsub.s32 0, %v3908
    %v3910 = vrot.slane %v3905, %v3909
    %v3914 = vunpack.c.l.b16 %v3903
    %v3915 = vunpack.c.l.b16 %v3904
    %v3916 = vpack.c.b16 %v3915, %v3914
    %v3919 = vsel %vm957, %v3902, 0
    %3921 = vmatprep.subr.bf16.mxu0 0
    %3922 = vmatpush1.bf16.msra.mxu0 0
    %3923 = vmatprep.subr.bf16.mxu0 0
    %3924 = vmatpush1.bf16.msra.mxu0 0
    %3925 = vmatprep.subr.bf16.mxu0 0
    %3926 = vmatpush1.bf16.msra.mxu0 0
    %3927 = vmatprep.subr.bf16.mxu0 0
    %3928 = vmatpush1.bf16.msra.mxu0 0
    %3929 = vmatprep.subr.bf16.mxu0 0
    %3930 = vmatpush1.bf16.msra.mxu0 0
    %3931 = vmatprep.subr.bf16.mxu0 0
    %3932 = vmatpush1.bf16.msra.mxu0 0
    %3933 = vmatprep.subr.bf16.mxu0 0
    %3934 = vmatpush1.bf16.msra.mxu0 0
    %3935 = vmatprep.subr.bf16.mxu0 0
    %3936 = vmatpush1.bf16.msra.mxu0 %v3916
    %3937 = vmatprep.subr.bf16.mxu0 0
    %3938 = vmatpush2.bf16.msra.mxu0 0
    %3939 = vmatprep.subr.bf16.mxu0 0
    %3940 = vmatpush2.bf16.msra.mxu0 0
    %3941 = vmatprep.subr.bf16.mxu0 0
    %3942 = vmatpush2.bf16.msra.mxu0 0
    %3943 = vmatprep.subr.bf16.mxu0 0
    %3944 = vmatpush2.bf16.msra.mxu0 0
    %3945 = vmatprep.subr.bf16.mxu0 0
    %3946 = vmatpush2.bf16.msra.mxu0 0
    %3947 = vmatprep.subr.bf16.mxu0 0
    %3948 = vmatpush2.bf16.msra.mxu0 0
    %3949 = vmatprep.subr.bf16.mxu0 0
    %3950 = vmatpush2.bf16.msra.mxu0 0
    %3951 = vmatprep.subr.bf16.mxu0 0
    %3952 = vmatpush2.bf16.msra.mxu0 0
    %3953 = vmatprep.mubr.bf16.mxu0 0
    %3954 = vmatmul.mubr.bf16.gmra.mxu0 %v3919
    %v3955 = vpop.f32.mrf.mxu0
    %v3956 = vadd.f32 %v3910, %v3955
    %v3957 = vpop.f32.mrf.mxu0
    %v3958 = vpop.f32.mrf.mxu0
    %v3959 = vpop.f32.mrf.mxu0
    %3960 = vdwg.mxu0
    %vm3961 = vcmask 9216
    %v3962 = vsel %vm3961, %v3956, -inf
    %3963 = vmax.xlane.f32.xlu0 %v3962
    %v3964 = vpop.xlane.xlu0 %3963
    %v3965 = vsub.f32 %v3956, %v3964
    %v3966 = vmul.f32 %v3965, 1.442695
    %v3967 = vpow.pop %v3966
    %v3968 = vsel %vm3961, %v3967, 0.0
    %3969 = vadd.xlane.f32.xlu0 %v3968
    %v3970 = vpop.xlane.xlu0 %3969
    %v3971 = vlog2.pop %v3970
    %v3972 = vmul.f32 %v3971, 0.6931472
    %v3973 = vadd.f32 %v3972, %v3964
    %v3974 = vsub.f32 %v3956, %v3973
    %3975 = vst.msk [vmem:[#allocation2] sm:$0x3] %vm3961, %v3974
    // Predicated region
    $region90: #{bert_2fc_forward.1} parent=1 // pred_check
      _
    $region91: #{bert_2fc_forward.1} parent=1 // pred_check_branch
      %3977 = sbr.rel (0) target = $region93
    $region92: #{bert_2fc_forward.1} parent=1 // pred_region
      %s3979 = ssub.s32 32, 32
      %3980 = vsyncadd [#allocation3], %s3979
      %s3982 = sshll.u32 [#allocation2], 4
      %s3983 = int_to_ptr.vmem [resolvable:$true] %s3982
      %3985 = dma.vmem_to_hbm [thread:$0]  %s3983, 32, %s22, [#allocation3]
    $region93: #{bert_2fc_forward.1} parent=1 // pred_fallthru
      _
    // Predicated region
    $region94: #{bert_2fc_forward.1} parent=1 // pred_check
      _
    $region95: #{bert_2fc_forward.1} parent=1 // pred_check_branch
      %3987 = sbr.rel (0) target = $region97
    $region96: #{bert_2fc_forward.1} parent=1 // pred_region
      %3988 = dma.done [#allocation3], 32
    $region97: #{bert_2fc_forward.1} parent=1 // pred_fallthru
      _
    %3989 = vsyncpa [#allocation3], 1

</llo_original>
